<compile_context>
chip_gen: v7x
topology: tpu7x:2x2x1
jax: 0.10.0
libtpu: 0.0.40
codegen_flags: <defaults>
</compile_context>

<pallas_src>
import math
import functools

import jax
import jax.numpy as jnp
from jax.experimental import pallas as pl
from jax.experimental.pallas import tpu as pltpu

# ---- small, self-consistent config (stands in for CONFIG.*) ----
D_MODEL = 32
NHEAD = 4
HEAD_DIM = D_MODEL // NHEAD
NUM_LAYERS = 2
DIM_FF = 64
NUM_CLASS = 10
CLASS_PAD = 128          # lane-dense padded class dimension for the output
EPS = 1e-5
MAX_LEN = 300
NEG_INF = -1e30          # exp() underflows to exactly 0 in f32


# ---------------------------------------------------------------------------
# Fused forward kernel (Bblk batch elements per grid step)
# ---------------------------------------------------------------------------
def _layer_norm(x, g, b):
    mean = jnp.mean(x, axis=-1, keepdims=True)
    var = jnp.mean((x - mean) ** 2, axis=-1, keepdims=True)
    return (x - mean) * jax.lax.rsqrt(var + EPS) * g + b


def fused_forward_kernel(x_ref, pe_ref, pad_ref,
                         wqk_ref, bqk_ref, wvo_ref, bvo_ref, bo_ref,
                         g1_ref, be1_ref,
                         w1_ref, bf1_ref, w2_ref, bf2_ref,
                         g2_ref, be2_ref,
                         gn_ref, bn_ref, wout_ref, bout_ref,
                         o_ref):
    Bblk, S, _ = x_ref.shape

    # Causal mask built in-register (kills the O(S^2) bias DMA from HBM).
    row_ids = jax.lax.broadcasted_iota(jnp.int32, (S, S), 0)
    col_ids = jax.lax.broadcasted_iota(jnp.int32, (S, S), 1)
    causal = jnp.where(col_ids > row_ids, jnp.float32(NEG_INF), jnp.float32(0.0))
    # Per-batch additive bias: causal(-inf) + float key-padding row (PyTorch ADDS it).
    bias_list = [causal + pad_ref[bi] for bi in range(Bblk)]

    # pos-encode fused: x * sqrt(D) + pe_row_b  (module quirk: per-batch row),
    # then flatten (Bblk, S, D) -> (Bblk*S, D) so shared matmuls see M = Bblk*S.
    x = (x_ref[...] * math.sqrt(D_MODEL) + pe_ref[...]).reshape(Bblk * S, D_MODEL)

    # TODO(synk): for larger configs, cast matmul operands to bf16 (keep f32
    # accumulation via preferred_element_type) to halve weight bytes / double MXU rate.
    for l in range(NUM_LAYERS):                               # static -> unrolled
        # ---------------- self-attention block (post-norm) ----------------
        # 1/sqrt(head_dim) is pre-folded into the Q columns of wqk on the host.
        qk = jnp.dot(x, wqk_ref[l], preferred_element_type=jnp.float32) + bqk_ref[l]   # (BS, 2D)
        # V and out-proj folded: Vo[:, h*D:(h+1)*D] == V_h @ Wo_h  (lane-dense 128 wide)
        vo = jnp.dot(x, wvo_ref[l], preferred_element_type=jnp.float32) + bvo_ref[l]   # (BS, H*D)

        ao_parts = []
        for bi in range(Bblk):                                # static -> unrolled
            r0 = bi * S
            bias_b = bias_list[bi]                            # (S, S), shared by all heads
            ao_b = None
            for h in range(NHEAD):                            # static -> unrolled
                lo = h * HEAD_DIM
                q = qk[r0:r0 + S, lo:lo + HEAD_DIM]
                k = qk[r0:r0 + S, D_MODEL + lo:D_MODEL + lo + HEAD_DIM]
                # q @ k.T without materializing the transpose
                s = jax.lax.dot_general(q, k, (((1,), (1,)), ((), ())),
                                        preferred_element_type=jnp.float32)
                s = s + bias_b
                m = jnp.max(s, axis=-1, keepdims=True)
                p = jnp.exp(s - m)                            # unnormalized probs
                inv_l = pl.reciprocal(jnp.sum(p, axis=-1, keepdims=True), approx=True)
                oh = jnp.dot(p, vo[r0:r0 + S, h * D_MODEL:(h + 1) * D_MODEL],
                             preferred_element_type=jnp.float32)          # (S, D)
                contrib = oh * inv_l                          # deferred softmax normalization
                ao_b = contrib if ao_b is None else ao_b + contrib
            ao_parts.append(ao_b)
        ao = ao_parts[0] if Bblk == 1 else jnp.concatenate(ao_parts, axis=0)
        ao = ao + bo_ref[l]
        x = _layer_norm(x + ao, g1_ref[l], be1_ref[l])        # residual + LN fused

        # ---------------------- feed-forward block -------------------------
        hdn = jnp.dot(x, w1_ref[l], preferred_element_type=jnp.float32) + bf1_ref[l]
        hdn = jnp.maximum(hdn, 0.0)                           # relu
        ff = jnp.dot(hdn, w2_ref[l], preferred_element_type=jnp.float32) + bf2_ref[l]
        x = _layer_norm(x + ff, g2_ref[l], be2_ref[l])        # residual + LN fused

    # final encoder LayerNorm + classifier + log_softmax, all fused.
    # Classifier is padded to 128 lanes: padded-class weights are 0 and padded
    # biases are NEG_INF, so they vanish from the softmax; store is lane-dense.
    x = _layer_norm(x, gn_ref[...], bn_ref[...])
    logits = jnp.dot(x, wout_ref[...], preferred_element_type=jnp.float32) + bout_ref[...]
    m = jnp.max(logits, axis=-1, keepdims=True)
    sh = logits - m
    out = sh - jnp.log(jnp.sum(jnp.exp(sh), axis=-1, keepdims=True))
    o_ref[...] = out.reshape(Bblk, S, CLASS_PAD)


# ---------------------------------------------------------------------------
# Pallas wrapper
# ---------------------------------------------------------------------------
def _resident_spec(arr):
    # Full-array VMEM block, same block for every grid step (weights stay resident).
    zeros = (0,) * arr.ndim
    return pl.BlockSpec(arr.shape, lambda b, _z=zeros: _z)


def transformer_forward(params, src, mask=None):
    # `mask` is unused by the reference module's forward as well.
    B, S, D = src.shape
    assert D == D_MODEL

    # Block the batch over at most 2 "parallel" grid steps: amortizes per-step
    # pipeline overhead, and keeps both TensorCores busy on v7x.
    n_steps = 2 if B >= 2 else 1
    Bblk = pl.cdiv(B, n_steps)
    Bp = Bblk * n_steps
    if Bp != B:
        src = jnp.concatenate([src, jnp.zeros((Bp - B, S, D), src.dtype)], axis=0)
    assert Bp <= MAX_LEN  # pe[:B] quirk requires batch <= max_len, as in PyTorch

    pe_b = build_pe_table()[:Bp].reshape(Bp, 1, D_MODEL)   # module quirk: row b over whole seq
    pad = build_pad_mask(src)                              # (Bp, 1, S) float pad row, O(S) DMA

    weights = (
        params["wqk_t"], params["bqk"], params["wvo"], params["bvo"], params["bo"],
        params["ln1_g"], params["ln1_b"],
        params["w1_t"], params["b1"], params["w2_t"], params["b2"],
        params["ln2_g"], params["ln2_b"],
        params["norm_g"], params["norm_b"], params["out_w_pad"], params["out_b_pad"],
    )

    in_specs = [
        pl.BlockSpec((Bblk, S, D_MODEL), lambda b: (b, 0, 0)),     # src block
        pl.BlockSpec((Bblk, 1, D_MODEL), lambda b: (b, 0, 0)),     # pe rows for the block
        pl.BlockSpec((Bblk, 1, S), lambda b: (b, 0, 0)),           # float pad rows
    ] + [_resident_spec(w) for w in weights]

    out = pl.pallas_call(
        fused_forward_kernel,
        out_shape=jax.ShapeDtypeStruct((Bp, S, CLASS_PAD), jnp.float32),
        grid=(n_steps,),
        in_specs=in_specs,
        out_specs=pl.BlockSpec((Bblk, S, CLASS_PAD), lambda b: (b, 0, 0)),
        compiler_params=pltpu.CompilerParams(
            dimension_semantics=("parallel",),        # shards across 2 TCs on v7x
            vmem_limit_bytes=32 * 1024 * 1024,        # explicit; working set is tiny
        ),
    )(src, pe_b, pad, *weights)

    # matches `output.contiguous().view(-1, d_model)` -> Linear -> log_softmax(dim=1)
    return out[:B, :, :NUM_CLASS].reshape(B * S, NUM_CLASS)


# ---------------------------------------------------------------------------
# Glue: parameters (with host-side folding), positional-encoding table, masks
# ---------------------------------------------------------------------------
def init_params(seed=42):
    key = jax.random.PRNGKey(seed)
    keys = jax.random.split(key, 8 * NUM_LAYERS + 2)
    ki = iter(range(8 * NUM_LAYERS + 2))

    def nrm(kk, shape):
        return 0.05 * jax.random.normal(kk, shape, jnp.float32)

    q_scale = 1.0 / math.sqrt(HEAD_DIM)   # folded into the Q projection

    wqk_t, bqk, wvo, bvo, bo = [], [], [], [], []
    w1_t, b1, w2_t, b2 = [], [], [], []
    for _ in range(NUM_LAYERS):
        # PyTorch-layout raw weights
        in_proj_w = nrm(keys[next(ki)], (3 * D_MODEL, D_MODEL))
        in_proj_b = nrm(keys[next(ki)], (3 * D_MODEL,))
        out_proj_w = nrm(keys[next(ki)], (D_MODEL, D_MODEL))
        out_proj_b = nrm(keys[next(ki)], (D_MODEL,))
        lin1_w = nrm(keys[next(ki)], (DIM_FF, D_MODEL))
        lin1_b = nrm(keys[next(ki)], (DIM_FF,))
        lin2_w = nrm(keys[next(ki)], (D_MODEL, DIM_FF))
        lin2_b = nrm(keys[next(ki)], (D_MODEL,))

        # Q/K projection, pre-transposed to (D, 2D); 1/sqrt(dh) folded into Q.
        wq_t = in_proj_w[:D_MODEL].T * q_scale
        wk_t = in_proj_w[D_MODEL:2 * D_MODEL].T
        wqk_t.append(jnp.concatenate([wq_t, wk_t], axis=1))
        bqk.append(jnp.concatenate([in_proj_b[:D_MODEL] * q_scale,
                                    in_proj_b[D_MODEL:2 * D_MODEL]])[None, :])

        # Fold V and out-proj: Wvo_h = Wv_h.T @ Wo_h, stacked -> (D, H*D)=(32,128)
        wv = in_proj_w[2 * D_MODEL:]          # (D, D), rows = output dims
        wo_t = out_proj_w.T                   # concat(heads) @ wo_t == out-proj
        wvo_l, bvo_l = [], []
        for h in range(NHEAD):
            lo = h * HEAD_DIM
            wv_h_t = wv[lo:lo + HEAD_DIM].T                       # (D, Dh)
            wo_h = wo_t[lo:lo + HEAD_DIM]                         # (Dh, D)
            wvo_l.append(wv_h_t @ wo_h)                           # (D, D)
            bvo_l.append(in_proj_b[2 * D_MODEL + lo:2 * D_MODEL + lo + HEAD_DIM] @ wo_h)
        wvo.append(jnp.concatenate(wvo_l, axis=1))                # (D, H*D)
        bvo.append(jnp.concatenate(bvo_l, axis=0)[None, :])       # (1, H*D)
        bo.append(out_proj_b[None, :])

        w1_t.append(lin1_w.T)
        b1.append(lin1_b[None, :])
        w2_t.append(lin2_w.T)
        b2.append(lin2_b[None, :])

    # Classifier: padded to CLASS_PAD lanes. Padded weight cols are 0; padded
    # bias entries are NEG_INF so they contribute exactly 0 to the softmax sum.
    out_w = nrm(keys[next(ki)], (NUM_CLASS, D_MODEL))
    out_b = nrm(keys[next(ki)], (NUM_CLASS,))
    out_w_pad = jnp.zeros((D_MODEL, CLASS_PAD), jnp.float32).at[:, :NUM_CLASS].set(out_w.T)
    out_b_pad = jnp.full((1, CLASS_PAD), NEG_INF, jnp.float32).at[0, :NUM_CLASS].set(out_b)

    return {
        "wqk_t": jnp.stack(wqk_t), "bqk": jnp.stack(bqk),
        "wvo": jnp.stack(wvo), "bvo": jnp.stack(bvo), "bo": jnp.stack(bo),
        "ln1_g": jnp.ones((NUM_LAYERS, 1, D_MODEL), jnp.float32),
        "ln1_b": jnp.zeros((NUM_LAYERS, 1, D_MODEL), jnp.float32),
        "w1_t": jnp.stack(w1_t), "b1": jnp.stack(b1),
        "w2_t": jnp.stack(w2_t), "b2": jnp.stack(b2),
        "ln2_g": jnp.ones((NUM_LAYERS, 1, D_MODEL), jnp.float32),
        "ln2_b": jnp.zeros((NUM_LAYERS, 1, D_MODEL), jnp.float32),
        "norm_g": jnp.ones((1, D_MODEL), jnp.float32),
        "norm_b": jnp.zeros((1, D_MODEL), jnp.float32),
        "out_w_pad": out_w_pad, "out_b_pad": out_b_pad,
    }


def build_pe_table():
    # d_model is even here -> matches the `else` branch of PositionalEncoding
    position = jnp.arange(MAX_LEN, dtype=jnp.float32)[:, None]
    div_term = jnp.exp(jnp.arange(0, D_MODEL, 2, dtype=jnp.float32)
                       * (-math.log(10000.0) / D_MODEL))
    pe = jnp.zeros((MAX_LEN, D_MODEL), jnp.float32)
    pe = pe.at[:, 0::2].set(jnp.sin(position * div_term))
    pe = pe.at[:, 1::2].set(jnp.cos(position * div_term))
    return pe


def build_pad_mask(src):
    # float key_padding_mask, same semantics as the python loop with `break`:
    # frame j is valid (0.0) iff no all-zero frame occurred in 0..j, else 1.0;
    # PyTorch ADDS this float mask to the attention logits (quirk preserved).
    zero_frame = ~jnp.any(src != 0.0, axis=-1)                 # (B, S)
    seen_zero = jnp.cumsum(zero_frame.astype(jnp.int32), axis=1) > 0
    return seen_zero.astype(jnp.float32)[:, None, :]           # (B, 1, S)


# ---------------------------------------------------------------------------
if __name__ == "__main__":
    B, S = 2, 8
    key = jax.random.PRNGKey(0)
    src = jax.random.normal(key, (B, S, D_MODEL), dtype=jnp.float32)
    # make the last two frames of batch element 1 all-zero to exercise the
    # key-padding-mask path
    src = src.at[1, 6:, :].set(0.0)
    dummy_mask = jnp.zeros((S, S), jnp.float32)       # unused, as in the reference

    params = init_params(seed=42)
    fwd = jax.jit(functools.partial(transformer_forward, params))
    out = fwd(src, dummy_mask)
    out = jax.block_until_ready(out)

    assert out.shape == (B * S, NUM_CLASS)
    assert bool(jnp.all(jnp.isfinite(out)))
    # rows of log_softmax must sum (in prob space) to 1
    assert bool(jnp.allclose(jnp.sum(jnp.exp(out), axis=1), 1.0, atol=1e-4))
    print("KERNEL_OK")
</pallas_src>

<mosaic_0001>
module attributes {stable_mosaic.version = 11 : i64} {
  func.func @fused_forward_kernel(%arg0: i32, %arg1: memref<1x8x32xf32, #tpu.memory_space<vmem>>, %arg2: memref<1x1x32xf32, #tpu.memory_space<vmem>>, %arg3: memref<1x1x8xf32, #tpu.memory_space<vmem>>, %arg4: memref<2x32x64xf32, #tpu.memory_space<vmem>>, %arg5: memref<2x1x64xf32, #tpu.memory_space<vmem>>, %arg6: memref<2x32x128xf32, #tpu.memory_space<vmem>>, %arg7: memref<2x1x128xf32, #tpu.memory_space<vmem>>, %arg8: memref<2x1x32xf32, #tpu.memory_space<vmem>>, %arg9: memref<2x1x32xf32, #tpu.memory_space<vmem>>, %arg10: memref<2x1x32xf32, #tpu.memory_space<vmem>>, %arg11: memref<2x32x64xf32, #tpu.memory_space<vmem>>, %arg12: memref<2x1x64xf32, #tpu.memory_space<vmem>>, %arg13: memref<2x64x32xf32, #tpu.memory_space<vmem>>, %arg14: memref<2x1x32xf32, #tpu.memory_space<vmem>>, %arg15: memref<2x1x32xf32, #tpu.memory_space<vmem>>, %arg16: memref<2x1x32xf32, #tpu.memory_space<vmem>>, %arg17: memref<1x32xf32, #tpu.memory_space<vmem>>, %arg18: memref<1x32xf32, #tpu.memory_space<vmem>>, %arg19: memref<32x128xf32, #tpu.memory_space<vmem>>, %arg20: memref<1x128xf32, #tpu.memory_space<vmem>>, %arg21: memref<1x8x128xf32, #tpu.memory_space<vmem>>) attributes {dimension_semantics = [#tpu.dimension_semantics<parallel>], iteration_bounds = array<i64: 2>, scalar_prefetch = 0 : i64, scratch_operands = 0 : i64, tpu.core_type = #tpu.core_type<tc>, window_params = [{transform_indices = @transform_0, window_bounds = array<i64: 1, 8, 32>}, {transform_indices = @transform_1, window_bounds = array<i64: 1, 1, 32>}, {transform_indices = @transform_2, window_bounds = array<i64: 1, 1, 8>}, {pipeline_mode = #tpu.pipeline_mode<synchronous>, transform_indices = @transform_3, window_bounds = array<i64: 2, 32, 64>}, {pipeline_mode = #tpu.pipeline_mode<synchronous>, transform_indices = @transform_4, window_bounds = array<i64: 2, 1, 64>}, {pipeline_mode = #tpu.pipeline_mode<synchronous>, transform_indices = @transform_5, window_bounds = array<i64: 2, 32, 128>}, {pipeline_mode = #tpu.pipeline_mode<synchronous>, transform_indices = @transform_6, window_bounds = array<i64: 2, 1, 128>}, {pipeline_mode = #tpu.pipeline_mode<synchronous>, transform_indices = @transform_7, window_bounds = array<i64: 2, 1, 32>}, {pipeline_mode = #tpu.pipeline_mode<synchronous>, transform_indices = @transform_8, window_bounds = array<i64: 2, 1, 32>}, {pipeline_mode = #tpu.pipeline_mode<synchronous>, transform_indices = @transform_9, window_bounds = array<i64: 2, 1, 32>}, {pipeline_mode = #tpu.pipeline_mode<synchronous>, transform_indices = @transform_10, window_bounds = array<i64: 2, 32, 64>}, {pipeline_mode = #tpu.pipeline_mode<synchronous>, transform_indices = @transform_11, window_bounds = array<i64: 2, 1, 64>}, {pipeline_mode = #tpu.pipeline_mode<synchronous>, transform_indices = @transform_12, window_bounds = array<i64: 2, 64, 32>}, {pipeline_mode = #tpu.pipeline_mode<synchronous>, transform_indices = @transform_13, window_bounds = array<i64: 2, 1, 32>}, {pipeline_mode = #tpu.pipeline_mode<synchronous>, transform_indices = @transform_14, window_bounds = array<i64: 2, 1, 32>}, {pipeline_mode = #tpu.pipeline_mode<synchronous>, transform_indices = @transform_15, window_bounds = array<i64: 2, 1, 32>}, {pipeline_mode = #tpu.pipeline_mode<synchronous>, transform_indices = @transform_16, window_bounds = array<i64: 1, 32>}, {pipeline_mode = #tpu.pipeline_mode<synchronous>, transform_indices = @transform_17, window_bounds = array<i64: 1, 32>}, {pipeline_mode = #tpu.pipeline_mode<synchronous>, transform_indices = @transform_18, window_bounds = array<i64: 32, 128>}, {pipeline_mode = #tpu.pipeline_mode<synchronous>, transform_indices = @transform_19, window_bounds = array<i64: 1, 128>}, {transform_indices = @transform_20, window_bounds = array<i64: 1, 8, 128>}]} {
    %0 = tpu.iota {dimensions = array<i32: 0>} : vector<8x8xi32>
    %1 = tpu.iota {dimensions = array<i32: 1>} : vector<8x8xi32>
    %2 = arith.cmpi sgt, %1, %0 : vector<8x8xi32>
    %cst = arith.constant -1.000000e+30 : f32
    %cst_0 = arith.constant 0.000000e+00 : f32
    %3 = vector.broadcast %cst : f32 to vector<8x8xf32>
    %4 = vector.broadcast %cst_0 : f32 to vector<8x8xf32>
    %5 = arith.select %2, %3, %4 : vector<8x8xi1>, vector<8x8xf32>
    %c0 = arith.constant 0 : index
    %c0_1 = arith.constant 0 : index
    %c0_2 = arith.constant 0 : index
    %6 = vector.load %arg3[%c0, %c0_1, %c0_2] : memref<1x1x8xf32, #tpu.memory_space<vmem>>, vector<1x1x8xf32>
    %7 = vector.shape_cast %6 : vector<1x1x8xf32> to vector<1x8xf32>
    %8 = vector.broadcast %7 : vector<1x8xf32> to vector<8x8xf32>
    %9 = arith.addf %5, %8 : vector<8x8xf32>
    %c0_3 = arith.constant 0 : index
    %c0_4 = arith.constant 0 : index
    %c0_5 = arith.constant 0 : index
    %10 = vector.load %arg1[%c0_3, %c0_4, %c0_5] : memref<1x8x32xf32, #tpu.memory_space<vmem>>, vector<1x8x32xf32>
    %cst_6 = arith.constant 5.65685415 : f32
    %11 = vector.broadcast %cst_6 : f32 to vector<1x8x32xf32>
    %12 = arith.mulf %10, %11 : vector<1x8x32xf32>
    %c0_7 = arith.constant 0 : index
    %c0_8 = arith.constant 0 : index
    %c0_9 = arith.constant 0 : index
    %13 = vector.load %arg2[%c0_7, %c0_8, %c0_9] : memref<1x1x32xf32, #tpu.memory_space<vmem>>, vector<1x1x32xf32>
    %14 = vector.broadcast %13 : vector<1x1x32xf32> to vector<1x8x32xf32>
    %15 = arith.addf %12, %14 : vector<1x8x32xf32>
    %16 = vector.shape_cast %15 : vector<1x8x32xf32> to vector<8x32xf32>
    %c0_10 = arith.constant 0 : index
    %c0_11 = arith.constant 0 : index
    %c0_12 = arith.constant 0 : index
    %17 = vector.load %arg4[%c0_10, %c0_11, %c0_12] : memref<2x32x64xf32, #tpu.memory_space<vmem>>, vector<1x32x64xf32>
    %18 = vector.shape_cast %17 : vector<1x32x64xf32> to vector<32x64xf32>
    %cst_13 = arith.constant dense<0.000000e+00> : vector<8x64xf32>
    %19 = tpu.matmul %16, %18, %cst_13 {dimension_numbers = #tpu.dot_dimension_numbers<[1], [0], [0], [1], [0, 0, 1, 1], [], []>} : vector<8x32xf32>, vector<32x64xf32>, vector<8x64xf32> -> vector<8x64xf32>
    %c0_14 = arith.constant 0 : index
    %c0_15 = arith.constant 0 : index
    %c0_16 = arith.constant 0 : index
    %20 = vector.load %arg5[%c0_14, %c0_15, %c0_16] : memref<2x1x64xf32, #tpu.memory_space<vmem>>, vector<1x1x64xf32>
    %21 = vector.shape_cast %20 : vector<1x1x64xf32> to vector<1x64xf32>
    %22 = vector.broadcast %21 : vector<1x64xf32> to vector<8x64xf32>
    %23 = arith.addf %19, %22 : vector<8x64xf32>
    %c0_17 = arith.constant 0 : index
    %c0_18 = arith.constant 0 : index
    %c0_19 = arith.constant 0 : index
    %24 = vector.load %arg6[%c0_17, %c0_18, %c0_19] : memref<2x32x128xf32, #tpu.memory_space<vmem>>, vector<1x32x128xf32>
    %25 = vector.shape_cast %24 : vector<1x32x128xf32> to vector<32x128xf32>
    %cst_20 = arith.constant dense<0.000000e+00> : vector<8x128xf32>
    %26 = tpu.matmul %16, %25, %cst_20 {dimension_numbers = #tpu.dot_dimension_numbers<[1], [0], [0], [1], [0, 0, 1, 1], [], []>} : vector<8x32xf32>, vector<32x128xf32>, vector<8x128xf32> -> vector<8x128xf32>
    %c0_21 = arith.constant 0 : index
    %c0_22 = arith.constant 0 : index
    %c0_23 = arith.constant 0 : index
    %27 = vector.load %arg7[%c0_21, %c0_22, %c0_23] : memref<2x1x128xf32, #tpu.memory_space<vmem>>, vector<1x1x128xf32>
    %28 = vector.shape_cast %27 : vector<1x1x128xf32> to vector<1x128xf32>
    %29 = vector.broadcast %28 : vector<1x128xf32> to vector<8x128xf32>
    %30 = arith.addf %26, %29 : vector<8x128xf32>
    %31 = vector.extract_strided_slice %23 {offsets = [0, 0], sizes = [8, 8], strides = [1, 1]} : vector<8x64xf32> to vector<8x8xf32>
    %32 = vector.extract_strided_slice %23 {offsets = [0, 32], sizes = [8, 8], strides = [1, 1]} : vector<8x64xf32> to vector<8x8xf32>
    %cst_24 = arith.constant dense<0.000000e+00> : vector<8x8xf32>
    %33 = tpu.matmul %31, %32, %cst_24 {dimension_numbers = #tpu.dot_dimension_numbers<[1], [1], [0], [0], [0, 0, 1, 0], [], []>} : vector<8x8xf32>, vector<8x8xf32>, vector<8x8xf32> -> vector<8x8xf32>
    %34 = arith.addf %33, %9 : vector<8x8xf32>
    %cst_25 = arith.constant dense<0xFF800000> : vector<8xf32>
    %35 = vector.multi_reduction <maximumf>, %34, %cst_25 [1] : vector<8x8xf32> to vector<8xf32>
    %36 = vector.shape_cast %35 : vector<8xf32> to vector<8x1xf32>
    %37 = vector.broadcast %36 : vector<8x1xf32> to vector<8x8xf32>
    %38 = arith.subf %34, %37 : vector<8x8xf32>
    %39 = math.exp %38 : vector<8x8xf32>
    %cst_26 = arith.constant dense<0.000000e+00> : vector<8xf32>
    %40 = vector.multi_reduction <add>, %39, %cst_26 [1] : vector<8x8xf32> to vector<8xf32>
    %41 = vector.shape_cast %40 : vector<8xf32> to vector<8x1xf32>
    %42 = tpu.reciprocal %41 {approx = true} : vector<8x1xf32> -> vector<8x1xf32>
    %43 = vector.extract_strided_slice %30 {offsets = [0, 0], sizes = [8, 32], strides = [1, 1]} : vector<8x128xf32> to vector<8x32xf32>
    %cst_27 = arith.constant dense<0.000000e+00> : vector<8x32xf32>
    %44 = tpu.matmul %39, %43, %cst_27 {dimension_numbers = #tpu.dot_dimension_numbers<[1], [0], [0], [1], [0, 0, 1, 1], [], []>} : vector<8x8xf32>, vector<8x32xf32>, vector<8x32xf32> -> vector<8x32xf32>
    %45 = vector.broadcast %42 : vector<8x1xf32> to vector<8x32xf32>
    %46 = arith.mulf %44, %45 : vector<8x32xf32>
    %47 = vector.extract_strided_slice %23 {offsets = [0, 8], sizes = [8, 8], strides = [1, 1]} : vector<8x64xf32> to vector<8x8xf32>
    %48 = vector.extract_strided_slice %23 {offsets = [0, 40], sizes = [8, 8], strides = [1, 1]} : vector<8x64xf32> to vector<8x8xf32>
    %cst_28 = arith.constant dense<0.000000e+00> : vector<8x8xf32>
    %49 = tpu.matmul %47, %48, %cst_28 {dimension_numbers = #tpu.dot_dimension_numbers<[1], [1], [0], [0], [0, 0, 1, 0], [], []>} : vector<8x8xf32>, vector<8x8xf32>, vector<8x8xf32> -> vector<8x8xf32>
    %50 = arith.addf %49, %9 : vector<8x8xf32>
    %cst_29 = arith.constant dense<0xFF800000> : vector<8xf32>
    %51 = vector.multi_reduction <maximumf>, %50, %cst_29 [1] : vector<8x8xf32> to vector<8xf32>
    %52 = vector.shape_cast %51 : vector<8xf32> to vector<8x1xf32>
    %53 = vector.broadcast %52 : vector<8x1xf32> to vector<8x8xf32>
    %54 = arith.subf %50, %53 : vector<8x8xf32>
    %55 = math.exp %54 : vector<8x8xf32>
    %cst_30 = arith.constant dense<0.000000e+00> : vector<8xf32>
    %56 = vector.multi_reduction <add>, %55, %cst_30 [1] : vector<8x8xf32> to vector<8xf32>
    %57 = vector.shape_cast %56 : vector<8xf32> to vector<8x1xf32>
    %58 = tpu.reciprocal %57 {approx = true} : vector<8x1xf32> -> vector<8x1xf32>
    %59 = vector.extract_strided_slice %30 {offsets = [0, 32], sizes = [8, 32], strides = [1, 1]} : vector<8x128xf32> to vector<8x32xf32>
    %cst_31 = arith.constant dense<0.000000e+00> : vector<8x32xf32>
    %60 = tpu.matmul %55, %59, %cst_31 {dimension_numbers = #tpu.dot_dimension_numbers<[1], [0], [0], [1], [0, 0, 1, 1], [], []>} : vector<8x8xf32>, vector<8x32xf32>, vector<8x32xf32> -> vector<8x32xf32>
    %61 = vector.broadcast %58 : vector<8x1xf32> to vector<8x32xf32>
    %62 = arith.mulf %60, %61 : vector<8x32xf32>
    %63 = arith.addf %46, %62 : vector<8x32xf32>
    %64 = vector.extract_strided_slice %23 {offsets = [0, 16], sizes = [8, 8], strides = [1, 1]} : vector<8x64xf32> to vector<8x8xf32>
    %65 = vector.extract_strided_slice %23 {offsets = [0, 48], sizes = [8, 8], strides = [1, 1]} : vector<8x64xf32> to vector<8x8xf32>
    %cst_32 = arith.constant dense<0.000000e+00> : vector<8x8xf32>
    %66 = tpu.matmul %64, %65, %cst_32 {dimension_numbers = #tpu.dot_dimension_numbers<[1], [1], [0], [0], [0, 0, 1, 0], [], []>} : vector<8x8xf32>, vector<8x8xf32>, vector<8x8xf32> -> vector<8x8xf32>
    %67 = arith.addf %66, %9 : vector<8x8xf32>
    %cst_33 = arith.constant dense<0xFF800000> : vector<8xf32>
    %68 = vector.multi_reduction <maximumf>, %67, %cst_33 [1] : vector<8x8xf32> to vector<8xf32>
    %69 = vector.shape_cast %68 : vector<8xf32> to vector<8x1xf32>
    %70 = vector.broadcast %69 : vector<8x1xf32> to vector<8x8xf32>
    %71 = arith.subf %67, %70 : vector<8x8xf32>
    %72 = math.exp %71 : vector<8x8xf32>
    %cst_34 = arith.constant dense<0.000000e+00> : vector<8xf32>
    %73 = vector.multi_reduction <add>, %72, %cst_34 [1] : vector<8x8xf32> to vector<8xf32>
    %74 = vector.shape_cast %73 : vector<8xf32> to vector<8x1xf32>
    %75 = tpu.reciprocal %74 {approx = true} : vector<8x1xf32> -> vector<8x1xf32>
    %76 = vector.extract_strided_slice %30 {offsets = [0, 64], sizes = [8, 32], strides = [1, 1]} : vector<8x128xf32> to vector<8x32xf32>
    %cst_35 = arith.constant dense<0.000000e+00> : vector<8x32xf32>
    %77 = tpu.matmul %72, %76, %cst_35 {dimension_numbers = #tpu.dot_dimension_numbers<[1], [0], [0], [1], [0, 0, 1, 1], [], []>} : vector<8x8xf32>, vector<8x32xf32>, vector<8x32xf32> -> vector<8x32xf32>
    %78 = vector.broadcast %75 : vector<8x1xf32> to vector<8x32xf32>
    %79 = arith.mulf %77, %78 : vector<8x32xf32>
    %80 = arith.addf %63, %79 : vector<8x32xf32>
    %81 = vector.extract_strided_slice %23 {offsets = [0, 24], sizes = [8, 8], strides = [1, 1]} : vector<8x64xf32> to vector<8x8xf32>
    %82 = vector.extract_strided_slice %23 {offsets = [0, 56], sizes = [8, 8], strides = [1, 1]} : vector<8x64xf32> to vector<8x8xf32>
    %cst_36 = arith.constant dense<0.000000e+00> : vector<8x8xf32>
    %83 = tpu.matmul %81, %82, %cst_36 {dimension_numbers = #tpu.dot_dimension_numbers<[1], [1], [0], [0], [0, 0, 1, 0], [], []>} : vector<8x8xf32>, vector<8x8xf32>, vector<8x8xf32> -> vector<8x8xf32>
    %84 = arith.addf %83, %9 : vector<8x8xf32>
    %cst_37 = arith.constant dense<0xFF800000> : vector<8xf32>
    %85 = vector.multi_reduction <maximumf>, %84, %cst_37 [1] : vector<8x8xf32> to vector<8xf32>
    %86 = vector.shape_cast %85 : vector<8xf32> to vector<8x1xf32>
    %87 = vector.broadcast %86 : vector<8x1xf32> to vector<8x8xf32>
    %88 = arith.subf %84, %87 : vector<8x8xf32>
    %89 = math.exp %88 : vector<8x8xf32>
    %cst_38 = arith.constant dense<0.000000e+00> : vector<8xf32>
    %90 = vector.multi_reduction <add>, %89, %cst_38 [1] : vector<8x8xf32> to vector<8xf32>
    %91 = vector.shape_cast %90 : vector<8xf32> to vector<8x1xf32>
    %92 = tpu.reciprocal %91 {approx = true} : vector<8x1xf32> -> vector<8x1xf32>
    %93 = vector.extract_strided_slice %30 {offsets = [0, 96], sizes = [8, 32], strides = [1, 1]} : vector<8x128xf32> to vector<8x32xf32>
    %cst_39 = arith.constant dense<0.000000e+00> : vector<8x32xf32>
    %94 = tpu.matmul %89, %93, %cst_39 {dimension_numbers = #tpu.dot_dimension_numbers<[1], [0], [0], [1], [0, 0, 1, 1], [], []>} : vector<8x8xf32>, vector<8x32xf32>, vector<8x32xf32> -> vector<8x32xf32>
    %95 = vector.broadcast %92 : vector<8x1xf32> to vector<8x32xf32>
    %96 = arith.mulf %94, %95 : vector<8x32xf32>
    %97 = arith.addf %80, %96 : vector<8x32xf32>
    %c0_40 = arith.constant 0 : index
    %c0_41 = arith.constant 0 : index
    %c0_42 = arith.constant 0 : index
    %98 = vector.load %arg8[%c0_40, %c0_41, %c0_42] : memref<2x1x32xf32, #tpu.memory_space<vmem>>, vector<1x1x32xf32>
    %99 = vector.shape_cast %98 : vector<1x1x32xf32> to vector<1x32xf32>
    %100 = vector.broadcast %99 : vector<1x32xf32> to vector<8x32xf32>
    %101 = arith.addf %97, %100 : vector<8x32xf32>
    %102 = arith.addf %16, %101 : vector<8x32xf32>
    %c0_43 = arith.constant 0 : index
    %c0_44 = arith.constant 0 : index
    %c0_45 = arith.constant 0 : index
    %103 = vector.load %arg9[%c0_43, %c0_44, %c0_45] : memref<2x1x32xf32, #tpu.memory_space<vmem>>, vector<1x1x32xf32>
    %104 = vector.shape_cast %103 : vector<1x1x32xf32> to vector<1x32xf32>
    %c0_46 = arith.constant 0 : index
    %c0_47 = arith.constant 0 : index
    %c0_48 = arith.constant 0 : index
    %105 = vector.load %arg10[%c0_46, %c0_47, %c0_48] : memref<2x1x32xf32, #tpu.memory_space<vmem>>, vector<1x1x32xf32>
    %106 = vector.shape_cast %105 : vector<1x1x32xf32> to vector<1x32xf32>
    %cst_49 = arith.constant dense<0.000000e+00> : vector<8xf32>
    %107 = vector.multi_reduction <add>, %102, %cst_49 [1] : vector<8x32xf32> to vector<8xf32>
    %108 = vector.shape_cast %107 : vector<8xf32> to vector<8x1xf32>
    %cst_50 = arith.constant 3.200000e+01 : f32
    %109 = vector.broadcast %cst_50 : f32 to vector<8x1xf32>
    %110 = arith.divf %108, %109 : vector<8x1xf32>
    %111 = vector.broadcast %110 : vector<8x1xf32> to vector<8x32xf32>
    %112 = arith.subf %102, %111 : vector<8x32xf32>
    %113 = arith.mulf %112, %112 : vector<8x32xf32>
    %cst_51 = arith.constant dense<0.000000e+00> : vector<8xf32>
    %114 = vector.multi_reduction <add>, %113, %cst_51 [1] : vector<8x32xf32> to vector<8xf32>
    %115 = vector.shape_cast %114 : vector<8xf32> to vector<8x1xf32>
    %cst_52 = arith.constant 3.200000e+01 : f32
    %116 = vector.broadcast %cst_52 : f32 to vector<8x1xf32>
    %117 = arith.divf %115, %116 : vector<8x1xf32>
    %118 = vector.broadcast %110 : vector<8x1xf32> to vector<8x32xf32>
    %119 = arith.subf %102, %118 : vector<8x32xf32>
    %cst_53 = arith.constant 9.99999974E-6 : f32
    %120 = vector.broadcast %cst_53 : f32 to vector<8x1xf32>
    %121 = arith.addf %117, %120 : vector<8x1xf32>
    %122 = math.rsqrt %121 : vector<8x1xf32>
    %123 = vector.broadcast %122 : vector<8x1xf32> to vector<8x32xf32>
    %124 = arith.mulf %119, %123 : vector<8x32xf32>
    %125 = vector.broadcast %104 : vector<1x32xf32> to vector<8x32xf32>
    %126 = arith.mulf %124, %125 : vector<8x32xf32>
    %127 = vector.broadcast %106 : vector<1x32xf32> to vector<8x32xf32>
    %128 = arith.addf %126, %127 : vector<8x32xf32>
    %c0_54 = arith.constant 0 : index
    %c0_55 = arith.constant 0 : index
    %c0_56 = arith.constant 0 : index
    %129 = vector.load %arg11[%c0_54, %c0_55, %c0_56] : memref<2x32x64xf32, #tpu.memory_space<vmem>>, vector<1x32x64xf32>
    %130 = vector.shape_cast %129 : vector<1x32x64xf32> to vector<32x64xf32>
    %cst_57 = arith.constant dense<0.000000e+00> : vector<8x64xf32>
    %131 = tpu.matmul %128, %130, %cst_57 {dimension_numbers = #tpu.dot_dimension_numbers<[1], [0], [0], [1], [0, 0, 1, 1], [], []>} : vector<8x32xf32>, vector<32x64xf32>, vector<8x64xf32> -> vector<8x64xf32>
    %c0_58 = arith.constant 0 : index
    %c0_59 = arith.constant 0 : index
    %c0_60 = arith.constant 0 : index
    %132 = vector.load %arg12[%c0_58, %c0_59, %c0_60] : memref<2x1x64xf32, #tpu.memory_space<vmem>>, vector<1x1x64xf32>
    %133 = vector.shape_cast %132 : vector<1x1x64xf32> to vector<1x64xf32>
    %134 = vector.broadcast %133 : vector<1x64xf32> to vector<8x64xf32>
    %135 = arith.addf %131, %134 : vector<8x64xf32>
    %cst_61 = arith.constant 0.000000e+00 : f32
    %136 = vector.broadcast %cst_61 : f32 to vector<8x64xf32>
    %137 = arith.maximumf %135, %136 : vector<8x64xf32>
    %c0_62 = arith.constant 0 : index
    %c0_63 = arith.constant 0 : index
    %c0_64 = arith.constant 0 : index
    %138 = vector.load %arg13[%c0_62, %c0_63, %c0_64] : memref<2x64x32xf32, #tpu.memory_space<vmem>>, vector<1x64x32xf32>
    %139 = vector.shape_cast %138 : vector<1x64x32xf32> to vector<64x32xf32>
    %cst_65 = arith.constant dense<0.000000e+00> : vector<8x32xf32>
    %140 = tpu.matmul %137, %139, %cst_65 {dimension_numbers = #tpu.dot_dimension_numbers<[1], [0], [0], [1], [0, 0, 1, 1], [], []>} : vector<8x64xf32>, vector<64x32xf32>, vector<8x32xf32> -> vector<8x32xf32>
    %c0_66 = arith.constant 0 : index
    %c0_67 = arith.constant 0 : index
    %c0_68 = arith.constant 0 : index
    %141 = vector.load %arg14[%c0_66, %c0_67, %c0_68] : memref<2x1x32xf32, #tpu.memory_space<vmem>>, vector<1x1x32xf32>
    %142 = vector.shape_cast %141 : vector<1x1x32xf32> to vector<1x32xf32>
    %143 = vector.broadcast %142 : vector<1x32xf32> to vector<8x32xf32>
    %144 = arith.addf %140, %143 : vector<8x32xf32>
    %145 = arith.addf %128, %144 : vector<8x32xf32>
    %c0_69 = arith.constant 0 : index
    %c0_70 = arith.constant 0 : index
    %c0_71 = arith.constant 0 : index
    %146 = vector.load %arg15[%c0_69, %c0_70, %c0_71] : memref<2x1x32xf32, #tpu.memory_space<vmem>>, vector<1x1x32xf32>
    %147 = vector.shape_cast %146 : vector<1x1x32xf32> to vector<1x32xf32>
    %c0_72 = arith.constant 0 : index
    %c0_73 = arith.constant 0 : index
    %c0_74 = arith.constant 0 : index
    %148 = vector.load %arg16[%c0_72, %c0_73, %c0_74] : memref<2x1x32xf32, #tpu.memory_space<vmem>>, vector<1x1x32xf32>
    %149 = vector.shape_cast %148 : vector<1x1x32xf32> to vector<1x32xf32>
    %cst_75 = arith.constant dense<0.000000e+00> : vector<8xf32>
    %150 = vector.multi_reduction <add>, %145, %cst_75 [1] : vector<8x32xf32> to vector<8xf32>
    %151 = vector.shape_cast %150 : vector<8xf32> to vector<8x1xf32>
    %cst_76 = arith.constant 3.200000e+01 : f32
    %152 = vector.broadcast %cst_76 : f32 to vector<8x1xf32>
    %153 = arith.divf %151, %152 : vector<8x1xf32>
    %154 = vector.broadcast %153 : vector<8x1xf32> to vector<8x32xf32>
    %155 = arith.subf %145, %154 : vector<8x32xf32>
    %156 = arith.mulf %155, %155 : vector<8x32xf32>
    %cst_77 = arith.constant dense<0.000000e+00> : vector<8xf32>
    %157 = vector.multi_reduction <add>, %156, %cst_77 [1] : vector<8x32xf32> to vector<8xf32>
    %158 = vector.shape_cast %157 : vector<8xf32> to vector<8x1xf32>
    %cst_78 = arith.constant 3.200000e+01 : f32
    %159 = vector.broadcast %cst_78 : f32 to vector<8x1xf32>
    %160 = arith.divf %158, %159 : vector<8x1xf32>
    %161 = vector.broadcast %153 : vector<8x1xf32> to vector<8x32xf32>
    %162 = arith.subf %145, %161 : vector<8x32xf32>
    %cst_79 = arith.constant 9.99999974E-6 : f32
    %163 = vector.broadcast %cst_79 : f32 to vector<8x1xf32>
    %164 = arith.addf %160, %163 : vector<8x1xf32>
    %165 = math.rsqrt %164 : vector<8x1xf32>
    %166 = vector.broadcast %165 : vector<8x1xf32> to vector<8x32xf32>
    %167 = arith.mulf %162, %166 : vector<8x32xf32>
    %168 = vector.broadcast %147 : vector<1x32xf32> to vector<8x32xf32>
    %169 = arith.mulf %167, %168 : vector<8x32xf32>
    %170 = vector.broadcast %149 : vector<1x32xf32> to vector<8x32xf32>
    %171 = arith.addf %169, %170 : vector<8x32xf32>
    %c1 = arith.constant 1 : index
    %c0_80 = arith.constant 0 : index
    %c0_81 = arith.constant 0 : index
    %172 = vector.load %arg4[%c1, %c0_80, %c0_81] : memref<2x32x64xf32, #tpu.memory_space<vmem>>, vector<1x32x64xf32>
    %173 = vector.shape_cast %172 : vector<1x32x64xf32> to vector<32x64xf32>
    %cst_82 = arith.constant dense<0.000000e+00> : vector<8x64xf32>
    %174 = tpu.matmul %171, %173, %cst_82 {dimension_numbers = #tpu.dot_dimension_numbers<[1], [0], [0], [1], [0, 0, 1, 1], [], []>} : vector<8x32xf32>, vector<32x64xf32>, vector<8x64xf32> -> vector<8x64xf32>
    %c1_83 = arith.constant 1 : index
    %c0_84 = arith.constant 0 : index
    %c0_85 = arith.constant 0 : index
    %175 = vector.load %arg5[%c1_83, %c0_84, %c0_85] : memref<2x1x64xf32, #tpu.memory_space<vmem>>, vector<1x1x64xf32>
    %176 = vector.shape_cast %175 : vector<1x1x64xf32> to vector<1x64xf32>
    %177 = vector.broadcast %176 : vector<1x64xf32> to vector<8x64xf32>
    %178 = arith.addf %174, %177 : vector<8x64xf32>
    %c1_86 = arith.constant 1 : index
    %c0_87 = arith.constant 0 : index
    %c0_88 = arith.constant 0 : index
    %179 = vector.load %arg6[%c1_86, %c0_87, %c0_88] : memref<2x32x128xf32, #tpu.memory_space<vmem>>, vector<1x32x128xf32>
    %180 = vector.shape_cast %179 : vector<1x32x128xf32> to vector<32x128xf32>
    %cst_89 = arith.constant dense<0.000000e+00> : vector<8x128xf32>
    %181 = tpu.matmul %171, %180, %cst_89 {dimension_numbers = #tpu.dot_dimension_numbers<[1], [0], [0], [1], [0, 0, 1, 1], [], []>} : vector<8x32xf32>, vector<32x128xf32>, vector<8x128xf32> -> vector<8x128xf32>
    %c1_90 = arith.constant 1 : index
    %c0_91 = arith.constant 0 : index
    %c0_92 = arith.constant 0 : index
    %182 = vector.load %arg7[%c1_90, %c0_91, %c0_92] : memref<2x1x128xf32, #tpu.memory_space<vmem>>, vector<1x1x128xf32>
    %183 = vector.shape_cast %182 : vector<1x1x128xf32> to vector<1x128xf32>
    %184 = vector.broadcast %183 : vector<1x128xf32> to vector<8x128xf32>
    %185 = arith.addf %181, %184 : vector<8x128xf32>
    %186 = vector.extract_strided_slice %178 {offsets = [0, 0], sizes = [8, 8], strides = [1, 1]} : vector<8x64xf32> to vector<8x8xf32>
    %187 = vector.extract_strided_slice %178 {offsets = [0, 32], sizes = [8, 8], strides = [1, 1]} : vector<8x64xf32> to vector<8x8xf32>
    %cst_93 = arith.constant dense<0.000000e+00> : vector<8x8xf32>
    %188 = tpu.matmul %186, %187, %cst_93 {dimension_numbers = #tpu.dot_dimension_numbers<[1], [1], [0], [0], [0, 0, 1, 0], [], []>} : vector<8x8xf32>, vector<8x8xf32>, vector<8x8xf32> -> vector<8x8xf32>
    %189 = arith.addf %188, %9 : vector<8x8xf32>
    %cst_94 = arith.constant dense<0xFF800000> : vector<8xf32>
    %190 = vector.multi_reduction <maximumf>, %189, %cst_94 [1] : vector<8x8xf32> to vector<8xf32>
    %191 = vector.shape_cast %190 : vector<8xf32> to vector<8x1xf32>
    %192 = vector.broadcast %191 : vector<8x1xf32> to vector<8x8xf32>
    %193 = arith.subf %189, %192 : vector<8x8xf32>
    %194 = math.exp %193 : vector<8x8xf32>
    %cst_95 = arith.constant dense<0.000000e+00> : vector<8xf32>
    %195 = vector.multi_reduction <add>, %194, %cst_95 [1] : vector<8x8xf32> to vector<8xf32>
    %196 = vector.shape_cast %195 : vector<8xf32> to vector<8x1xf32>
    %197 = tpu.reciprocal %196 {approx = true} : vector<8x1xf32> -> vector<8x1xf32>
    %198 = vector.extract_strided_slice %185 {offsets = [0, 0], sizes = [8, 32], strides = [1, 1]} : vector<8x128xf32> to vector<8x32xf32>
    %cst_96 = arith.constant dense<0.000000e+00> : vector<8x32xf32>
    %199 = tpu.matmul %194, %198, %cst_96 {dimension_numbers = #tpu.dot_dimension_numbers<[1], [0], [0], [1], [0, 0, 1, 1], [], []>} : vector<8x8xf32>, vector<8x32xf32>, vector<8x32xf32> -> vector<8x32xf32>
    %200 = vector.broadcast %197 : vector<8x1xf32> to vector<8x32xf32>
    %201 = arith.mulf %199, %200 : vector<8x32xf32>
    %202 = vector.extract_strided_slice %178 {offsets = [0, 8], sizes = [8, 8], strides = [1, 1]} : vector<8x64xf32> to vector<8x8xf32>
    %203 = vector.extract_strided_slice %178 {offsets = [0, 40], sizes = [8, 8], strides = [1, 1]} : vector<8x64xf32> to vector<8x8xf32>
    %cst_97 = arith.constant dense<0.000000e+00> : vector<8x8xf32>
    %204 = tpu.matmul %202, %203, %cst_97 {dimension_numbers = #tpu.dot_dimension_numbers<[1], [1], [0], [0], [0, 0, 1, 0], [], []>} : vector<8x8xf32>, vector<8x8xf32>, vector<8x8xf32> -> vector<8x8xf32>
    %205 = arith.addf %204, %9 : vector<8x8xf32>
    %cst_98 = arith.constant dense<0xFF800000> : vector<8xf32>
    %206 = vector.multi_reduction <maximumf>, %205, %cst_98 [1] : vector<8x8xf32> to vector<8xf32>
    %207 = vector.shape_cast %206 : vector<8xf32> to vector<8x1xf32>
    %208 = vector.broadcast %207 : vector<8x1xf32> to vector<8x8xf32>
    %209 = arith.subf %205, %208 : vector<8x8xf32>
    %210 = math.exp %209 : vector<8x8xf32>
    %cst_99 = arith.constant dense<0.000000e+00> : vector<8xf32>
    %211 = vector.multi_reduction <add>, %210, %cst_99 [1] : vector<8x8xf32> to vector<8xf32>
    %212 = vector.shape_cast %211 : vector<8xf32> to vector<8x1xf32>
    %213 = tpu.reciprocal %212 {approx = true} : vector<8x1xf32> -> vector<8x1xf32>
    %214 = vector.extract_strided_slice %185 {offsets = [0, 32], sizes = [8, 32], strides = [1, 1]} : vector<8x128xf32> to vector<8x32xf32>
    %cst_100 = arith.constant dense<0.000000e+00> : vector<8x32xf32>
    %215 = tpu.matmul %210, %214, %cst_100 {dimension_numbers = #tpu.dot_dimension_numbers<[1], [0], [0], [1], [0, 0, 1, 1], [], []>} : vector<8x8xf32>, vector<8x32xf32>, vector<8x32xf32> -> vector<8x32xf32>
    %216 = vector.broadcast %213 : vector<8x1xf32> to vector<8x32xf32>
    %217 = arith.mulf %215, %216 : vector<8x32xf32>
    %218 = arith.addf %201, %217 : vector<8x32xf32>
    %219 = vector.extract_strided_slice %178 {offsets = [0, 16], sizes = [8, 8], strides = [1, 1]} : vector<8x64xf32> to vector<8x8xf32>
    %220 = vector.extract_strided_slice %178 {offsets = [0, 48], sizes = [8, 8], strides = [1, 1]} : vector<8x64xf32> to vector<8x8xf32>
    %cst_101 = arith.constant dense<0.000000e+00> : vector<8x8xf32>
    %221 = tpu.matmul %219, %220, %cst_101 {dimension_numbers = #tpu.dot_dimension_numbers<[1], [1], [0], [0], [0, 0, 1, 0], [], []>} : vector<8x8xf32>, vector<8x8xf32>, vector<8x8xf32> -> vector<8x8xf32>
    %222 = arith.addf %221, %9 : vector<8x8xf32>
    %cst_102 = arith.constant dense<0xFF800000> : vector<8xf32>
    %223 = vector.multi_reduction <maximumf>, %222, %cst_102 [1] : vector<8x8xf32> to vector<8xf32>
    %224 = vector.shape_cast %223 : vector<8xf32> to vector<8x1xf32>
    %225 = vector.broadcast %224 : vector<8x1xf32> to vector<8x8xf32>
    %226 = arith.subf %222, %225 : vector<8x8xf32>
    %227 = math.exp %226 : vector<8x8xf32>
    %cst_103 = arith.constant dense<0.000000e+00> : vector<8xf32>
    %228 = vector.multi_reduction <add>, %227, %cst_103 [1] : vector<8x8xf32> to vector<8xf32>
    %229 = vector.shape_cast %228 : vector<8xf32> to vector<8x1xf32>
    %230 = tpu.reciprocal %229 {approx = true} : vector<8x1xf32> -> vector<8x1xf32>
    %231 = vector.extract_strided_slice %185 {offsets = [0, 64], sizes = [8, 32], strides = [1, 1]} : vector<8x128xf32> to vector<8x32xf32>
    %cst_104 = arith.constant dense<0.000000e+00> : vector<8x32xf32>
    %232 = tpu.matmul %227, %231, %cst_104 {dimension_numbers = #tpu.dot_dimension_numbers<[1], [0], [0], [1], [0, 0, 1, 1], [], []>} : vector<8x8xf32>, vector<8x32xf32>, vector<8x32xf32> -> vector<8x32xf32>
    %233 = vector.broadcast %230 : vector<8x1xf32> to vector<8x32xf32>
    %234 = arith.mulf %232, %233 : vector<8x32xf32>
    %235 = arith.addf %218, %234 : vector<8x32xf32>
    %236 = vector.extract_strided_slice %178 {offsets = [0, 24], sizes = [8, 8], strides = [1, 1]} : vector<8x64xf32> to vector<8x8xf32>
    %237 = vector.extract_strided_slice %178 {offsets = [0, 56], sizes = [8, 8], strides = [1, 1]} : vector<8x64xf32> to vector<8x8xf32>
    %cst_105 = arith.constant dense<0.000000e+00> : vector<8x8xf32>
    %238 = tpu.matmul %236, %237, %cst_105 {dimension_numbers = #tpu.dot_dimension_numbers<[1], [1], [0], [0], [0, 0, 1, 0], [], []>} : vector<8x8xf32>, vector<8x8xf32>, vector<8x8xf32> -> vector<8x8xf32>
    %239 = arith.addf %238, %9 : vector<8x8xf32>
    %cst_106 = arith.constant dense<0xFF800000> : vector<8xf32>
    %240 = vector.multi_reduction <maximumf>, %239, %cst_106 [1] : vector<8x8xf32> to vector<8xf32>
    %241 = vector.shape_cast %240 : vector<8xf32> to vector<8x1xf32>
    %242 = vector.broadcast %241 : vector<8x1xf32> to vector<8x8xf32>
    %243 = arith.subf %239, %242 : vector<8x8xf32>
    %244 = math.exp %243 : vector<8x8xf32>
    %cst_107 = arith.constant dense<0.000000e+00> : vector<8xf32>
    %245 = vector.multi_reduction <add>, %244, %cst_107 [1] : vector<8x8xf32> to vector<8xf32>
    %246 = vector.shape_cast %245 : vector<8xf32> to vector<8x1xf32>
    %247 = tpu.reciprocal %246 {approx = true} : vector<8x1xf32> -> vector<8x1xf32>
    %248 = vector.extract_strided_slice %185 {offsets = [0, 96], sizes = [8, 32], strides = [1, 1]} : vector<8x128xf32> to vector<8x32xf32>
    %cst_108 = arith.constant dense<0.000000e+00> : vector<8x32xf32>
    %249 = tpu.matmul %244, %248, %cst_108 {dimension_numbers = #tpu.dot_dimension_numbers<[1], [0], [0], [1], [0, 0, 1, 1], [], []>} : vector<8x8xf32>, vector<8x32xf32>, vector<8x32xf32> -> vector<8x32xf32>
    %250 = vector.broadcast %247 : vector<8x1xf32> to vector<8x32xf32>
    %251 = arith.mulf %249, %250 : vector<8x32xf32>
    %252 = arith.addf %235, %251 : vector<8x32xf32>
    %c1_109 = arith.constant 1 : index
    %c0_110 = arith.constant 0 : index
    %c0_111 = arith.constant 0 : index
    %253 = vector.load %arg8[%c1_109, %c0_110, %c0_111] : memref<2x1x32xf32, #tpu.memory_space<vmem>>, vector<1x1x32xf32>
    %254 = vector.shape_cast %253 : vector<1x1x32xf32> to vector<1x32xf32>
    %255 = vector.broadcast %254 : vector<1x32xf32> to vector<8x32xf32>
    %256 = arith.addf %252, %255 : vector<8x32xf32>
    %257 = arith.addf %171, %256 : vector<8x32xf32>
    %c1_112 = arith.constant 1 : index
    %c0_113 = arith.constant 0 : index
    %c0_114 = arith.constant 0 : index
    %258 = vector.load %arg9[%c1_112, %c0_113, %c0_114] : memref<2x1x32xf32, #tpu.memory_space<vmem>>, vector<1x1x32xf32>
    %259 = vector.shape_cast %258 : vector<1x1x32xf32> to vector<1x32xf32>
    %c1_115 = arith.constant 1 : index
    %c0_116 = arith.constant 0 : index
    %c0_117 = arith.constant 0 : index
    %260 = vector.load %arg10[%c1_115, %c0_116, %c0_117] : memref<2x1x32xf32, #tpu.memory_space<vmem>>, vector<1x1x32xf32>
    %261 = vector.shape_cast %260 : vector<1x1x32xf32> to vector<1x32xf32>
    %cst_118 = arith.constant dense<0.000000e+00> : vector<8xf32>
    %262 = vector.multi_reduction <add>, %257, %cst_118 [1] : vector<8x32xf32> to vector<8xf32>
    %263 = vector.shape_cast %262 : vector<8xf32> to vector<8x1xf32>
    %cst_119 = arith.constant 3.200000e+01 : f32
    %264 = vector.broadcast %cst_119 : f32 to vector<8x1xf32>
    %265 = arith.divf %263, %264 : vector<8x1xf32>
    %266 = vector.broadcast %265 : vector<8x1xf32> to vector<8x32xf32>
    %267 = arith.subf %257, %266 : vector<8x32xf32>
    %268 = arith.mulf %267, %267 : vector<8x32xf32>
    %cst_120 = arith.constant dense<0.000000e+00> : vector<8xf32>
    %269 = vector.multi_reduction <add>, %268, %cst_120 [1] : vector<8x32xf32> to vector<8xf32>
    %270 = vector.shape_cast %269 : vector<8xf32> to vector<8x1xf32>
    %cst_121 = arith.constant 3.200000e+01 : f32
    %271 = vector.broadcast %cst_121 : f32 to vector<8x1xf32>
    %272 = arith.divf %270, %271 : vector<8x1xf32>
    %273 = vector.broadcast %265 : vector<8x1xf32> to vector<8x32xf32>
    %274 = arith.subf %257, %273 : vector<8x32xf32>
    %cst_122 = arith.constant 9.99999974E-6 : f32
    %275 = vector.broadcast %cst_122 : f32 to vector<8x1xf32>
    %276 = arith.addf %272, %275 : vector<8x1xf32>
    %277 = math.rsqrt %276 : vector<8x1xf32>
    %278 = vector.broadcast %277 : vector<8x1xf32> to vector<8x32xf32>
    %279 = arith.mulf %274, %278 : vector<8x32xf32>
    %280 = vector.broadcast %259 : vector<1x32xf32> to vector<8x32xf32>
    %281 = arith.mulf %279, %280 : vector<8x32xf32>
    %282 = vector.broadcast %261 : vector<1x32xf32> to vector<8x32xf32>
    %283 = arith.addf %281, %282 : vector<8x32xf32>
    %c1_123 = arith.constant 1 : index
    %c0_124 = arith.constant 0 : index
    %c0_125 = arith.constant 0 : index
    %284 = vector.load %arg11[%c1_123, %c0_124, %c0_125] : memref<2x32x64xf32, #tpu.memory_space<vmem>>, vector<1x32x64xf32>
    %285 = vector.shape_cast %284 : vector<1x32x64xf32> to vector<32x64xf32>
    %cst_126 = arith.constant dense<0.000000e+00> : vector<8x64xf32>
    %286 = tpu.matmul %283, %285, %cst_126 {dimension_numbers = #tpu.dot_dimension_numbers<[1], [0], [0], [1], [0, 0, 1, 1], [], []>} : vector<8x32xf32>, vector<32x64xf32>, vector<8x64xf32> -> vector<8x64xf32>
    %c1_127 = arith.constant 1 : index
    %c0_128 = arith.constant 0 : index
    %c0_129 = arith.constant 0 : index
    %287 = vector.load %arg12[%c1_127, %c0_128, %c0_129] : memref<2x1x64xf32, #tpu.memory_space<vmem>>, vector<1x1x64xf32>
    %288 = vector.shape_cast %287 : vector<1x1x64xf32> to vector<1x64xf32>
    %289 = vector.broadcast %288 : vector<1x64xf32> to vector<8x64xf32>
    %290 = arith.addf %286, %289 : vector<8x64xf32>
    %cst_130 = arith.constant 0.000000e+00 : f32
    %291 = vector.broadcast %cst_130 : f32 to vector<8x64xf32>
    %292 = arith.maximumf %290, %291 : vector<8x64xf32>
    %c1_131 = arith.constant 1 : index
    %c0_132 = arith.constant 0 : index
    %c0_133 = arith.constant 0 : index
    %293 = vector.load %arg13[%c1_131, %c0_132, %c0_133] : memref<2x64x32xf32, #tpu.memory_space<vmem>>, vector<1x64x32xf32>
    %294 = vector.shape_cast %293 : vector<1x64x32xf32> to vector<64x32xf32>
    %cst_134 = arith.constant dense<0.000000e+00> : vector<8x32xf32>
    %295 = tpu.matmul %292, %294, %cst_134 {dimension_numbers = #tpu.dot_dimension_numbers<[1], [0], [0], [1], [0, 0, 1, 1], [], []>} : vector<8x64xf32>, vector<64x32xf32>, vector<8x32xf32> -> vector<8x32xf32>
    %c1_135 = arith.constant 1 : index
    %c0_136 = arith.constant 0 : index
    %c0_137 = arith.constant 0 : index
    %296 = vector.load %arg14[%c1_135, %c0_136, %c0_137] : memref<2x1x32xf32, #tpu.memory_space<vmem>>, vector<1x1x32xf32>
    %297 = vector.shape_cast %296 : vector<1x1x32xf32> to vector<1x32xf32>
    %298 = vector.broadcast %297 : vector<1x32xf32> to vector<8x32xf32>
    %299 = arith.addf %295, %298 : vector<8x32xf32>
    %300 = arith.addf %283, %299 : vector<8x32xf32>
    %c1_138 = arith.constant 1 : index
    %c0_139 = arith.constant 0 : index
    %c0_140 = arith.constant 0 : index
    %301 = vector.load %arg15[%c1_138, %c0_139, %c0_140] : memref<2x1x32xf32, #tpu.memory_space<vmem>>, vector<1x1x32xf32>
    %302 = vector.shape_cast %301 : vector<1x1x32xf32> to vector<1x32xf32>
    %c1_141 = arith.constant 1 : index
    %c0_142 = arith.constant 0 : index
    %c0_143 = arith.constant 0 : index
    %303 = vector.load %arg16[%c1_141, %c0_142, %c0_143] : memref<2x1x32xf32, #tpu.memory_space<vmem>>, vector<1x1x32xf32>
    %304 = vector.shape_cast %303 : vector<1x1x32xf32> to vector<1x32xf32>
    %cst_144 = arith.constant dense<0.000000e+00> : vector<8xf32>
    %305 = vector.multi_reduction <add>, %300, %cst_144 [1] : vector<8x32xf32> to vector<8xf32>
    %306 = vector.shape_cast %305 : vector<8xf32> to vector<8x1xf32>
    %cst_145 = arith.constant 3.200000e+01 : f32
    %307 = vector.broadcast %cst_145 : f32 to vector<8x1xf32>
    %308 = arith.divf %306, %307 : vector<8x1xf32>
    %309 = vector.broadcast %308 : vector<8x1xf32> to vector<8x32xf32>
    %310 = arith.subf %300, %309 : vector<8x32xf32>
    %311 = arith.mulf %310, %310 : vector<8x32xf32>
    %cst_146 = arith.constant dense<0.000000e+00> : vector<8xf32>
    %312 = vector.multi_reduction <add>, %311, %cst_146 [1] : vector<8x32xf32> to vector<8xf32>
    %313 = vector.shape_cast %312 : vector<8xf32> to vector<8x1xf32>
    %cst_147 = arith.constant 3.200000e+01 : f32
    %314 = vector.broadcast %cst_147 : f32 to vector<8x1xf32>
    %315 = arith.divf %313, %314 : vector<8x1xf32>
    %316 = vector.broadcast %308 : vector<8x1xf32> to vector<8x32xf32>
    %317 = arith.subf %300, %316 : vector<8x32xf32>
    %cst_148 = arith.constant 9.99999974E-6 : f32
    %318 = vector.broadcast %cst_148 : f32 to vector<8x1xf32>
    %319 = arith.addf %315, %318 : vector<8x1xf32>
    %320 = math.rsqrt %319 : vector<8x1xf32>
    %321 = vector.broadcast %320 : vector<8x1xf32> to vector<8x32xf32>
    %322 = arith.mulf %317, %321 : vector<8x32xf32>
    %323 = vector.broadcast %302 : vector<1x32xf32> to vector<8x32xf32>
    %324 = arith.mulf %322, %323 : vector<8x32xf32>
    %325 = vector.broadcast %304 : vector<1x32xf32> to vector<8x32xf32>
    %326 = arith.addf %324, %325 : vector<8x32xf32>
    %c0_149 = arith.constant 0 : index
    %c0_150 = arith.constant 0 : index
    %327 = vector.load %arg17[%c0_149, %c0_150] : memref<1x32xf32, #tpu.memory_space<vmem>>, vector<1x32xf32>
    %c0_151 = arith.constant 0 : index
    %c0_152 = arith.constant 0 : index
    %328 = vector.load %arg18[%c0_151, %c0_152] : memref<1x32xf32, #tpu.memory_space<vmem>>, vector<1x32xf32>
    %cst_153 = arith.constant dense<0.000000e+00> : vector<8xf32>
    %329 = vector.multi_reduction <add>, %326, %cst_153 [1] : vector<8x32xf32> to vector<8xf32>
    %330 = vector.shape_cast %329 : vector<8xf32> to vector<8x1xf32>
    %cst_154 = arith.constant 3.200000e+01 : f32
    %331 = vector.broadcast %cst_154 : f32 to vector<8x1xf32>
    %332 = arith.divf %330, %331 : vector<8x1xf32>
    %333 = vector.broadcast %332 : vector<8x1xf32> to vector<8x32xf32>
    %334 = arith.subf %326, %333 : vector<8x32xf32>
    %335 = arith.mulf %334, %334 : vector<8x32xf32>
    %cst_155 = arith.constant dense<0.000000e+00> : vector<8xf32>
    %336 = vector.multi_reduction <add>, %335, %cst_155 [1] : vector<8x32xf32> to vector<8xf32>
    %337 = vector.shape_cast %336 : vector<8xf32> to vector<8x1xf32>
    %cst_156 = arith.constant 3.200000e+01 : f32
    %338 = vector.broadcast %cst_156 : f32 to vector<8x1xf32>
    %339 = arith.divf %337, %338 : vector<8x1xf32>
    %340 = vector.broadcast %332 : vector<8x1xf32> to vector<8x32xf32>
    %341 = arith.subf %326, %340 : vector<8x32xf32>
    %cst_157 = arith.constant 9.99999974E-6 : f32
    %342 = vector.broadcast %cst_157 : f32 to vector<8x1xf32>
    %343 = arith.addf %339, %342 : vector<8x1xf32>
    %344 = math.rsqrt %343 : vector<8x1xf32>
    %345 = vector.broadcast %344 : vector<8x1xf32> to vector<8x32xf32>
    %346 = arith.mulf %341, %345 : vector<8x32xf32>
    %347 = vector.broadcast %327 : vector<1x32xf32> to vector<8x32xf32>
    %348 = arith.mulf %346, %347 : vector<8x32xf32>
    %349 = vector.broadcast %328 : vector<1x32xf32> to vector<8x32xf32>
    %350 = arith.addf %348, %349 : vector<8x32xf32>
    %c0_158 = arith.constant 0 : index
    %c0_159 = arith.constant 0 : index
    %351 = vector.load %arg19[%c0_158, %c0_159] : memref<32x128xf32, #tpu.memory_space<vmem>>, vector<32x128xf32>
    %cst_160 = arith.constant dense<0.000000e+00> : vector<8x128xf32>
    %352 = tpu.matmul %350, %351, %cst_160 {dimension_numbers = #tpu.dot_dimension_numbers<[1], [0], [0], [1], [0, 0, 1, 1], [], []>} : vector<8x32xf32>, vector<32x128xf32>, vector<8x128xf32> -> vector<8x128xf32>
    %c0_161 = arith.constant 0 : index
    %c0_162 = arith.constant 0 : index
    %353 = vector.load %arg20[%c0_161, %c0_162] : memref<1x128xf32, #tpu.memory_space<vmem>>, vector<1x128xf32>
    %354 = vector.broadcast %353 : vector<1x128xf32> to vector<8x128xf32>
    %355 = arith.addf %352, %354 : vector<8x128xf32>
    %cst_163 = arith.constant dense<0xFF800000> : vector<8xf32>
    %356 = vector.multi_reduction <maximumf>, %355, %cst_163 [1] : vector<8x128xf32> to vector<8xf32>
    %357 = vector.shape_cast %356 : vector<8xf32> to vector<8x1xf32>
    %358 = vector.broadcast %357 : vector<8x1xf32> to vector<8x128xf32>
    %359 = arith.subf %355, %358 : vector<8x128xf32>
    %360 = math.exp %359 : vector<8x128xf32>
    %cst_164 = arith.constant dense<0.000000e+00> : vector<8xf32>
    %361 = vector.multi_reduction <add>, %360, %cst_164 [1] : vector<8x128xf32> to vector<8xf32>
    %362 = vector.shape_cast %361 : vector<8xf32> to vector<8x1xf32>
    %363 = math.log %362 : vector<8x1xf32>
    %364 = vector.broadcast %363 : vector<8x1xf32> to vector<8x128xf32>
    %365 = arith.subf %359, %364 : vector<8x128xf32>
    %366 = vector.shape_cast %365 : vector<8x128xf32> to vector<1x8x128xf32>
    %c0_165 = arith.constant 0 : index
    %c0_166 = arith.constant 0 : index
    %c0_167 = arith.constant 0 : index
    %367 = vector.load %arg21[%c0_165, %c0_166, %c0_167] : memref<1x8x128xf32, #tpu.memory_space<vmem>>, vector<1x8x128xf32>
    tpu.vector_store %arg21[%c0_165, %c0_166, %c0_167], %366 {strides = array<i32>} : memref<1x8x128xf32, #tpu.memory_space<vmem>>, vector<1x8x128xf32>,
    return
  }
  func.func @transform_0(%arg0: i32) -> (i32, i32, i32) {
    %c0_i32 = arith.constant 0 : i32
    %c0_i32_0 = arith.constant 0 : i32
    %c0_i32_1 = arith.constant 0 : i32
    return %arg0, %c0_i32, %c0_i32_0 : i32, i32, i32
  }
  func.func @transform_1(%arg0: i32) -> (i32, i32, i32) {
    %c0_i32 = arith.constant 0 : i32
    %c0_i32_0 = arith.constant 0 : i32
    %c0_i32_1 = arith.constant 0 : i32
    return %arg0, %c0_i32, %c0_i32_0 : i32, i32, i32
  }
  func.func @transform_2(%arg0: i32) -> (i32, i32, i32) {
    %c0_i32 = arith.constant 0 : i32
    %c0_i32_0 = arith.constant 0 : i32
    %c0_i32_1 = arith.constant 0 : i32
    return %arg0, %c0_i32, %c0_i32_0 : i32, i32, i32
  }
  func.func @transform_3(%arg0: i32) -> (i32, i32, i32) {
    %c0_i32 = arith.constant 0 : i32
    %c0_i32_0 = arith.constant 0 : i32
    %c0_i32_1 = arith.constant 0 : i32
    %c0_i32_2 = arith.constant 0 : i32
    return %c0_i32, %c0_i32_0, %c0_i32_1 : i32, i32, i32
  }
  func.func @transform_4(%arg0: i32) -> (i32, i32, i32) {
    %c0_i32 = arith.constant 0 : i32
    %c0_i32_0 = arith.constant 0 : i32
    %c0_i32_1 = arith.constant 0 : i32
    %c0_i32_2 = arith.constant 0 : i32
    return %c0_i32, %c0_i32_0, %c0_i32_1 : i32, i32, i32
  }
  func.func @transform_5(%arg0: i32) -> (i32, i32, i32) {
    %c0_i32 = arith.constant 0 : i32
    %c0_i32_0 = arith.constant 0 : i32
    %c0_i32_1 = arith.constant 0 : i32
    %c0_i32_2 = arith.constant 0 : i32
    return %c0_i32, %c0_i32_0, %c0_i32_1 : i32, i32, i32
  }
  func.func @transform_6(%arg0: i32) -> (i32, i32, i32) {
    %c0_i32 = arith.constant 0 : i32
    %c0_i32_0 = arith.constant 0 : i32
    %c0_i32_1 = arith.constant 0 : i32
    %c0_i32_2 = arith.constant 0 : i32
    return %c0_i32, %c0_i32_0, %c0_i32_1 : i32, i32, i32
  }
  func.func @transform_7(%arg0: i32) -> (i32, i32, i32) {
    %c0_i32 = arith.constant 0 : i32
    %c0_i32_0 = arith.constant 0 : i32
    %c0_i32_1 = arith.constant 0 : i32
    %c0_i32_2 = arith.constant 0 : i32
    return %c0_i32, %c0_i32_0, %c0_i32_1 : i32, i32, i32
  }
  func.func @transform_8(%arg0: i32) -> (i32, i32, i32) {
    %c0_i32 = arith.constant 0 : i32
    %c0_i32_0 = arith.constant 0 : i32
    %c0_i32_1 = arith.constant 0 : i32
    %c0_i32_2 = arith.constant 0 : i32
    return %c0_i32, %c0_i32_0, %c0_i32_1 : i32, i32, i32
  }
  func.func @transform_9(%arg0: i32) -> (i32, i32, i32) {
    %c0_i32 = arith.constant 0 : i32
    %c0_i32_0 = arith.constant 0 : i32
    %c0_i32_1 = arith.constant 0 : i32
    %c0_i32_2 = arith.constant 0 : i32
    return %c0_i32, %c0_i32_0, %c0_i32_1 : i32, i32, i32
  }
  func.func @transform_10(%arg0: i32) -> (i32, i32, i32) {
    %c0_i32 = arith.constant 0 : i32
    %c0_i32_0 = arith.constant 0 : i32
    %c0_i32_1 = arith.constant 0 : i32
    %c0_i32_2 = arith.constant 0 : i32
    return %c0_i32, %c0_i32_0, %c0_i32_1 : i32, i32, i32
  }
  func.func @transform_11(%arg0: i32) -> (i32, i32, i32) {
    %c0_i32 = arith.constant 0 : i32
    %c0_i32_0 = arith.constant 0 : i32
    %c0_i32_1 = arith.constant 0 : i32
    %c0_i32_2 = arith.constant 0 : i32
    return %c0_i32, %c0_i32_0, %c0_i32_1 : i32, i32, i32
  }
  func.func @transform_12(%arg0: i32) -> (i32, i32, i32) {
    %c0_i32 = arith.constant 0 : i32
    %c0_i32_0 = arith.constant 0 : i32
    %c0_i32_1 = arith.constant 0 : i32
    %c0_i32_2 = arith.constant 0 : i32
    return %c0_i32, %c0_i32_0, %c0_i32_1 : i32, i32, i32
  }
  func.func @transform_13(%arg0: i32) -> (i32, i32, i32) {
    %c0_i32 = arith.constant 0 : i32
    %c0_i32_0 = arith.constant 0 : i32
    %c0_i32_1 = arith.constant 0 : i32
    %c0_i32_2 = arith.constant 0 : i32
    return %c0_i32, %c0_i32_0, %c0_i32_1 : i32, i32, i32
  }
  func.func @transform_14(%arg0: i32) -> (i32, i32, i32) {
    %c0_i32 = arith.constant 0 : i32
    %c0_i32_0 = arith.constant 0 : i32
    %c0_i32_1 = arith.constant 0 : i32
    %c0_i32_2 = arith.constant 0 : i32
    return %c0_i32, %c0_i32_0, %c0_i32_1 : i32, i32, i32
  }
  func.func @transform_15(%arg0: i32) -> (i32, i32, i32) {
    %c0_i32 = arith.constant 0 : i32
    %c0_i32_0 = arith.constant 0 : i32
    %c0_i32_1 = arith.constant 0 : i32
    %c0_i32_2 = arith.constant 0 : i32
    return %c0_i32, %c0_i32_0, %c0_i32_1 : i32, i32, i32
  }
  func.func @transform_16(%arg0: i32) -> (i32, i32) {
    %c0_i32 = arith.constant 0 : i32
    %c0_i32_0 = arith.constant 0 : i32
    %c0_i32_1 = arith.constant 0 : i32
    return %c0_i32, %c0_i32_0 : i32, i32
  }
  func.func @transform_17(%arg0: i32) -> (i32, i32) {
    %c0_i32 = arith.constant 0 : i32
    %c0_i32_0 = arith.constant 0 : i32
    %c0_i32_1 = arith.constant 0 : i32
    return %c0_i32, %c0_i32_0 : i32, i32
  }
  func.func @transform_18(%arg0: i32) -> (i32, i32) {
    %c0_i32 = arith.constant 0 : i32
    %c0_i32_0 = arith.constant 0 : i32
    %c0_i32_1 = arith.constant 0 : i32
    return %c0_i32, %c0_i32_0 : i32, i32
  }
  func.func @transform_19(%arg0: i32) -> (i32, i32) {
    %c0_i32 = arith.constant 0 : i32
    %c0_i32_0 = arith.constant 0 : i32
    %c0_i32_1 = arith.constant 0 : i32
    return %c0_i32, %c0_i32_0 : i32, i32
  }
  func.func @transform_20(%arg0: i32) -> (i32, i32, i32) {
    %c0_i32 = arith.constant 0 : i32
    %c0_i32_0 = arith.constant 0 : i32
    %c0_i32_1 = arith.constant 0 : i32
    return %arg0, %c0_i32, %c0_i32_0 : i32, i32, i32
  }
}

</mosaic_0001>

<llo_original>
// kernel: transformer_forward.1
$region0: #{transformer_forward.1}
  #allocation0 [shape = 'u32[]', space=smem, size = 0x4, offset = 0x4, fixed_abs, tag = 'smem constant byte address 0x4 - core index']
  #allocation1 [shape = 'u32[144,128]{1,0:T(1,128)}', space=vmem, size = 0x12000, scoped, tag = 'internal scratch']
  %s0 = inlined_call_operand.vmem [shape: f32[2,8,32], index: 0, kind: input, shape index: {}]
  %s1 = inlined_call_operand.vmem [shape: f32[2,1,32], index: 1, kind: input, shape index: {}]
  %s2 = inlined_call_operand.vmem [shape: f32[2,1,8], index: 2, kind: input, shape index: {}]
  %s3 = inlined_call_operand.vmem [shape: f32[2,32,64], index: 3, kind: input, shape index: {}]
  %s4 = inlined_call_operand.vmem [shape: f32[2,1,64], index: 4, kind: input, shape index: {}]
  %s5 = inlined_call_operand.vmem [shape: f32[2,32,128], index: 5, kind: input, shape index: {}]
  %s6 = inlined_call_operand.vmem [shape: f32[2,1,128], index: 6, kind: input, shape index: {}]
  %s7 = inlined_call_operand.vmem [shape: f32[2,1,32], index: 7, kind: input, shape index: {}]
  %s8 = inlined_call_operand.vmem [shape: f32[2,1,32], index: 8, kind: input, shape index: {}, may-alias: {8,14}]
  %s9 = inlined_call_operand.vmem [shape: f32[2,1,32], index: 9, kind: input, shape index: {}, may-alias: {9,15}]
  %s10 = inlined_call_operand.vmem [shape: f32[2,32,64], index: 10, kind: input, shape index: {}]
  %s11 = inlined_call_operand.vmem [shape: f32[2,1,64], index: 11, kind: input, shape index: {}]
  %s12 = inlined_call_operand.vmem [shape: f32[2,64,32], index: 12, kind: input, shape index: {}]
  %s13 = inlined_call_operand.vmem [shape: f32[2,1,32], index: 13, kind: input, shape index: {}]
  %s14 = inlined_call_operand.vmem [shape: f32[2,1,32], index: 14, kind: input, shape index: {}, may-alias: {8,14}]
  %s15 = inlined_call_operand.vmem [shape: f32[2,1,32], index: 15, kind: input, shape index: {}, may-alias: {9,15}]
  %s16 = inlined_call_operand.vmem [shape: f32[1,32], index: 16, kind: input, shape index: {}]
  %s17 = inlined_call_operand.vmem [shape: f32[1,32], index: 17, kind: input, shape index: {}]
  %s18 = inlined_call_operand.hbm [shape: f32[32,128], index: 18, kind: input, shape index: {}]
  %s19 = inlined_call_operand.vmem [shape: f32[1,128], index: 19, kind: input, shape index: {}]
  %s20 = inlined_call_operand.vmem [shape: f32[2,8,128], index: 20, kind: output, shape index: {}]
  %s21 = sld [smem:[#allocation0]]
  $region117: #{transformer_forward.1} parent=0
    _
  %s23 = ssub.s32 1, %s21
  %s24 = scalar_select 0, %s23, %s21
  $region1: #{transformer_forward.1} parent=0
    #allocation2 [shape = 'u8[16384]{0}', space=vmem, size = 0x4000, scoped, tag = 'input window, operand 18, single buffered']
    #allocation3 [shape = 's32[2]{0}', space=sflag, size = 0x8, scoped, tag = 'scoped memory for transformer_forward.1']
    %25 = vsyncpa [#allocation3], 0
    loop: start=0, step=1, limit=4
    $region2: #{transformer_forward.1} parent=1 // loop_pre_header
      _
    $region3: #{transformer_forward.1} parent=1 // loop_header
      %s27 = sphi 0, %s31
      %p28 = scmp.ge.s32.totalorder %s27, 4
      %s37 = sphi 0, %s39
      %s40 = sphi 0, %s37
      %s41 = sphi 0, %s40
      %s57 = sphi 0, %s41
      %s63 = sphi 0, %s65
      %s66 = sphi 0, %s63
      %s67 = sphi 0, %s66
      %s83 = sphi 0, %s67
      %s89 = sphi 0, %s91
      %s92 = sphi 0, %s89
      %s93 = sphi 0, %s92
      %s109 = sphi 0, %s93
      %s113 = sphi 0, %s113
      %s115 = sphi 0, %s113
      %s116 = sphi 0, %s115
      %s130 = sphi 0, %s116
      %s134 = sphi 0, %s134
      %s136 = sphi 0, %s134
      %s137 = sphi 0, %s136
      %s151 = sphi 0, %s137
      %s155 = sphi 0, %s155
      %s157 = sphi 0, %s155
      %s158 = sphi 0, %s157
      %s172 = sphi 0, %s158
      %s176 = sphi 0, %s176
      %s178 = sphi 0, %s176
      %s179 = sphi 0, %s178
      %s193 = sphi 0, %s179
      %s197 = sphi 0, %s197
      %s199 = sphi 0, %s197
      %s200 = sphi 0, %s199
      %s214 = sphi 0, %s200
      %s218 = sphi 0, %s218
      %s220 = sphi 0, %s218
      %s221 = sphi 0, %s220
      %s235 = sphi 0, %s221
      %s239 = sphi 0, %s239
      %s241 = sphi 0, %s239
      %s242 = sphi 0, %s241
      %s256 = sphi 0, %s242
      %s260 = sphi 0, %s260
      %s262 = sphi 0, %s260
      %s263 = sphi 0, %s262
      %s277 = sphi 0, %s263
      %s281 = sphi 0, %s281
      %s283 = sphi 0, %s281
      %s284 = sphi 0, %s283
      %s298 = sphi 0, %s284
      %s302 = sphi 0, %s302
      %s304 = sphi 0, %s302
      %s305 = sphi 0, %s304
      %s319 = sphi 0, %s305
      %s323 = sphi 0, %s323
      %s325 = sphi 0, %s323
      %s326 = sphi 0, %s325
      %s340 = sphi 0, %s326
      %s344 = sphi 0, %s344
      %s346 = sphi 0, %s344
      %s347 = sphi 0, %s346
      %s361 = sphi 0, %s347
      %s365 = sphi 0, %s365
      %s367 = sphi 0, %s365
      %s368 = sphi 0, %s367
      %s382 = sphi 0, %s368
      %s386 = sphi 0, %s386
      %s388 = sphi 0, %s386
      %s389 = sphi 0, %s388
      %s403 = sphi 0, %s389
      %s407 = sphi 0, %s407
      %s409 = sphi 0, %s407
      %s410 = sphi 0, %s409
      %s424 = sphi 0, %s410
      %s428 = sphi 0, %s428
      %s430 = sphi 0, %s428
      %s431 = sphi 0, %s430
      %s445 = sphi 0, %s431
      %s449 = sphi 0, %s449
      %s451 = sphi 0, %s449
      %s452 = sphi 0, %s451
      %s466 = sphi 0, %s452
      %s472 = sphi 0, %s474
      %s475 = sphi 0, %s472
      %s476 = sphi 0, %s475
      %s492 = sphi 0, %s476
    $region4: #{transformer_forward.1} parent=1 // loop_header_branch
      %30 = sbr.rel (%p28) target = $region8
    $region5: #{transformer_forward.1} parent=1 // loop_body
      %s32 = ssub.s32 %s27, 1
      %s33 = ssub.s32 %s27, 2
      %s34 = sadd.s32 %s27, 1
      %s35 = ssub.s32 %s27, %s34
      %p36 = scmp.eq.s32.totalorder %s35, 0
      %s38 = sadd.s32 %s37, 1
      %s39 = scalar_select %p36, %s37, %s38
      %p42 = pneg %p36
      %p43 = scmp.eq.s32.totalorder %s27, 1
      %p44 = por %p42, %p43
      %p45 = scmp.ne.s32.totalorder %s37, %s40
      %p46 = scmp.eq.s32.totalorder %s27, 0
      %p47 = por %p45, %p46
      %p48 = scmp.ne.s32.totalorder %s37, %s40
      %p49 = scmp.eq.s32.totalorder %s32, 1
      %p50 = por %p48, %p49
      %p51 = scmp.ne.s32.totalorder %s40, %s41
      %p52 = scmp.eq.s32.totalorder %s32, 0
      %p53 = por %p51, %p52
      %p54 = scmp.ne.s32.totalorder %s40, %s41
      %p55 = scmp.eq.s32.totalorder %s33, 1
      %p56 = por %p54, %p55
      %p58 = scmp.ne.s32.totalorder %s41, %s57
      %p59 = scmp.eq.s32.totalorder %s33, 0
      %p60 = por %p58, %p59
      %s61 = ssub.s32 %s27, %s34
      %p62 = scmp.eq.s32.totalorder %s61, 0
      %s64 = sadd.s32 %s63, 1
      %s65 = scalar_select %p62, %s63, %s64
      %p68 = pneg %p62
      %p69 = scmp.eq.s32.totalorder %s27, 1
      %p70 = por %p68, %p69
      %p71 = scmp.ne.s32.totalorder %s63, %s66
      %p72 = scmp.eq.s32.totalorder %s27, 0
      %p73 = por %p71, %p72
      %p74 = scmp.ne.s32.totalorder %s63, %s66
      %p75 = scmp.eq.s32.totalorder %s32, 1
      %p76 = por %p74, %p75
      %p77 = scmp.ne.s32.totalorder %s66, %s67
      %p78 = scmp.eq.s32.totalorder %s32, 0
      %p79 = por %p77, %p78
      %p80 = scmp.ne.s32.totalorder %s66, %s67
      %p81 = scmp.eq.s32.totalorder %s33, 1
      %p82 = por %p80, %p81
      %p84 = scmp.ne.s32.totalorder %s67, %s83
      %p85 = scmp.eq.s32.totalorder %s33, 0
      %p86 = por %p84, %p85
      %s87 = ssub.s32 %s27, %s34
      %p88 = scmp.eq.s32.totalorder %s87, 0
      %s90 = sadd.s32 %s89, 1
      %s91 = scalar_select %p88, %s89, %s90
      %p94 = pneg %p88
      %p95 = scmp.eq.s32.totalorder %s27, 1
      %p96 = por %p94, %p95
      %p97 = scmp.ne.s32.totalorder %s89, %s92
      %p98 = scmp.eq.s32.totalorder %s27, 0
      %p99 = por %p97, %p98
      %p100 = scmp.ne.s32.totalorder %s89, %s92
      %p101 = scmp.eq.s32.totalorder %s32, 1
      %p102 = por %p100, %p101
      %p103 = scmp.ne.s32.totalorder %s92, %s93
      %p104 = scmp.eq.s32.totalorder %s32, 0
      %p105 = por %p103, %p104
      %p106 = scmp.ne.s32.totalorder %s92, %s93
      %p107 = scmp.eq.s32.totalorder %s33, 1
      %p108 = por %p106, %p107
      %p110 = scmp.ne.s32.totalorder %s93, %s109
      %p111 = scmp.eq.s32.totalorder %s33, 0
      %p112 = por %p110, %p111
      %s114 = sadd.s32 %s113, 1
      %p117 = scmp.eq.s32.totalorder %s27, 1
      %p118 = scmp.ne.s32.totalorder %s113, %s115
      %p119 = scmp.eq.s32.totalorder %s27, 0
      %p120 = por %p118, %p119
      %p121 = scmp.ne.s32.totalorder %s113, %s115
      %p122 = scmp.eq.s32.totalorder %s32, 1
      %p123 = por %p121, %p122
      %p124 = scmp.ne.s32.totalorder %s115, %s116
      %p125 = scmp.eq.s32.totalorder %s32, 0
      %p126 = por %p124, %p125
      %p127 = scmp.ne.s32.totalorder %s115, %s116
      %p128 = scmp.eq.s32.totalorder %s33, 1
      %p129 = por %p127, %p128
      %p131 = scmp.ne.s32.totalorder %s116, %s130
      %p132 = scmp.eq.s32.totalorder %s33, 0
      %p133 = por %p131, %p132
      %s135 = sadd.s32 %s134, 1
      %p138 = scmp.eq.s32.totalorder %s27, 1
      %p139 = scmp.ne.s32.totalorder %s134, %s136
      %p140 = scmp.eq.s32.totalorder %s27, 0
      %p141 = por %p139, %p140
      %p142 = scmp.ne.s32.totalorder %s134, %s136
      %p143 = scmp.eq.s32.totalorder %s32, 1
      %p144 = por %p142, %p143
      %p145 = scmp.ne.s32.totalorder %s136, %s137
      %p146 = scmp.eq.s32.totalorder %s32, 0
      %p147 = por %p145, %p146
      %p148 = scmp.ne.s32.totalorder %s136, %s137
      %p149 = scmp.eq.s32.totalorder %s33, 1
      %p150 = por %p148, %p149
      %p152 = scmp.ne.s32.totalorder %s137, %s151
      %p153 = scmp.eq.s32.totalorder %s33, 0
      %p154 = por %p152, %p153
      %s156 = sadd.s32 %s155, 1
      %p159 = scmp.eq.s32.totalorder %s27, 1
      %p160 = scmp.ne.s32.totalorder %s155, %s157
      %p161 = scmp.eq.s32.totalorder %s27, 0
      %p162 = por %p160, %p161
      %p163 = scmp.ne.s32.totalorder %s155, %s157
      %p164 = scmp.eq.s32.totalorder %s32, 1
      %p165 = por %p163, %p164
      %p166 = scmp.ne.s32.totalorder %s157, %s158
      %p167 = scmp.eq.s32.totalorder %s32, 0
      %p168 = por %p166, %p167
      %p169 = scmp.ne.s32.totalorder %s157, %s158
      %p170 = scmp.eq.s32.totalorder %s33, 1
      %p171 = por %p169, %p170
      %p173 = scmp.ne.s32.totalorder %s158, %s172
      %p174 = scmp.eq.s32.totalorder %s33, 0
      %p175 = por %p173, %p174
      %s177 = sadd.s32 %s176, 1
      %p180 = scmp.eq.s32.totalorder %s27, 1
      %p181 = scmp.ne.s32.totalorder %s176, %s178
      %p182 = scmp.eq.s32.totalorder %s27, 0
      %p183 = por %p181, %p182
      %p184 = scmp.ne.s32.totalorder %s176, %s178
      %p185 = scmp.eq.s32.totalorder %s32, 1
      %p186 = por %p184, %p185
      %p187 = scmp.ne.s32.totalorder %s178, %s179
      %p188 = scmp.eq.s32.totalorder %s32, 0
      %p189 = por %p187, %p188
      %p190 = scmp.ne.s32.totalorder %s178, %s179
      %p191 = scmp.eq.s32.totalorder %s33, 1
      %p192 = por %p190, %p191
      %p194 = scmp.ne.s32.totalorder %s179, %s193
      %p195 = scmp.eq.s32.totalorder %s33, 0
      %p196 = por %p194, %p195
      %s198 = sadd.s32 %s197, 1
      %p201 = scmp.eq.s32.totalorder %s27, 1
      %p202 = scmp.ne.s32.totalorder %s197, %s199
      %p203 = scmp.eq.s32.totalorder %s27, 0
      %p204 = por %p202, %p203
      %p205 = scmp.ne.s32.totalorder %s197, %s199
      %p206 = scmp.eq.s32.totalorder %s32, 1
      %p207 = por %p205, %p206
      %p208 = scmp.ne.s32.totalorder %s199, %s200
      %p209 = scmp.eq.s32.totalorder %s32, 0
      %p210 = por %p208, %p209
      %p211 = scmp.ne.s32.totalorder %s199, %s200
      %p212 = scmp.eq.s32.totalorder %s33, 1
      %p213 = por %p211, %p212
      %p215 = scmp.ne.s32.totalorder %s200, %s214
      %p216 = scmp.eq.s32.totalorder %s33, 0
      %p217 = por %p215, %p216
      %s219 = sadd.s32 %s218, 1
      %p222 = scmp.eq.s32.totalorder %s27, 1
      %p223 = scmp.ne.s32.totalorder %s218, %s220
      %p224 = scmp.eq.s32.totalorder %s27, 0
      %p225 = por %p223, %p224
      %p226 = scmp.ne.s32.totalorder %s218, %s220
      %p227 = scmp.eq.s32.totalorder %s32, 1
      %p228 = por %p226, %p227
      %p229 = scmp.ne.s32.totalorder %s220, %s221
      %p230 = scmp.eq.s32.totalorder %s32, 0
      %p231 = por %p229, %p230
      %p232 = scmp.ne.s32.totalorder %s220, %s221
      %p233 = scmp.eq.s32.totalorder %s33, 1
      %p234 = por %p232, %p233
      %p236 = scmp.ne.s32.totalorder %s221, %s235
      %p237 = scmp.eq.s32.totalorder %s33, 0
      %p238 = por %p236, %p237
      %s240 = sadd.s32 %s239, 1
      %p243 = scmp.eq.s32.totalorder %s27, 1
      %p244 = scmp.ne.s32.totalorder %s239, %s241
      %p245 = scmp.eq.s32.totalorder %s27, 0
      %p246 = por %p244, %p245
      %p247 = scmp.ne.s32.totalorder %s239, %s241
      %p248 = scmp.eq.s32.totalorder %s32, 1
      %p249 = por %p247, %p248
      %p250 = scmp.ne.s32.totalorder %s241, %s242
      %p251 = scmp.eq.s32.totalorder %s32, 0
      %p252 = por %p250, %p251
      %p253 = scmp.ne.s32.totalorder %s241, %s242
      %p254 = scmp.eq.s32.totalorder %s33, 1
      %p255 = por %p253, %p254
      %p257 = scmp.ne.s32.totalorder %s242, %s256
      %p258 = scmp.eq.s32.totalorder %s33, 0
      %p259 = por %p257, %p258
      %s261 = sadd.s32 %s260, 1
      %p264 = scmp.eq.s32.totalorder %s27, 1
      %p265 = scmp.ne.s32.totalorder %s260, %s262
      %p266 = scmp.eq.s32.totalorder %s27, 0
      %p267 = por %p265, %p266
      %p268 = scmp.ne.s32.totalorder %s260, %s262
      %p269 = scmp.eq.s32.totalorder %s32, 1
      %p270 = por %p268, %p269
      %p271 = scmp.ne.s32.totalorder %s262, %s263
      %p272 = scmp.eq.s32.totalorder %s32, 0
      %p273 = por %p271, %p272
      %p274 = scmp.ne.s32.totalorder %s262, %s263
      %p275 = scmp.eq.s32.totalorder %s33, 1
      %p276 = por %p274, %p275
      %p278 = scmp.ne.s32.totalorder %s263, %s277
      %p279 = scmp.eq.s32.totalorder %s33, 0
      %p280 = por %p278, %p279
      %s282 = sadd.s32 %s281, 1
      %p285 = scmp.eq.s32.totalorder %s27, 1
      %p286 = scmp.ne.s32.totalorder %s281, %s283
      %p287 = scmp.eq.s32.totalorder %s27, 0
      %p288 = por %p286, %p287
      %p289 = scmp.ne.s32.totalorder %s281, %s283
      %p290 = scmp.eq.s32.totalorder %s32, 1
      %p291 = por %p289, %p290
      %p292 = scmp.ne.s32.totalorder %s283, %s284
      %p293 = scmp.eq.s32.totalorder %s32, 0
      %p294 = por %p292, %p293
      %p295 = scmp.ne.s32.totalorder %s283, %s284
      %p296 = scmp.eq.s32.totalorder %s33, 1
      %p297 = por %p295, %p296
      %p299 = scmp.ne.s32.totalorder %s284, %s298
      %p300 = scmp.eq.s32.totalorder %s33, 0
      %p301 = por %p299, %p300
      %s303 = sadd.s32 %s302, 1
      %p306 = scmp.eq.s32.totalorder %s27, 1
      %p307 = scmp.ne.s32.totalorder %s302, %s304
      %p308 = scmp.eq.s32.totalorder %s27, 0
      %p309 = por %p307, %p308
      %p310 = scmp.ne.s32.totalorder %s302, %s304
      %p311 = scmp.eq.s32.totalorder %s32, 1
      %p312 = por %p310, %p311
      %p313 = scmp.ne.s32.totalorder %s304, %s305
      %p314 = scmp.eq.s32.totalorder %s32, 0
      %p315 = por %p313, %p314
      %p316 = scmp.ne.s32.totalorder %s304, %s305
      %p317 = scmp.eq.s32.totalorder %s33, 1
      %p318 = por %p316, %p317
      %p320 = scmp.ne.s32.totalorder %s305, %s319
      %p321 = scmp.eq.s32.totalorder %s33, 0
      %p322 = por %p320, %p321
      %s324 = sadd.s32 %s323, 1
      %p327 = scmp.eq.s32.totalorder %s27, 1
      %p328 = scmp.ne.s32.totalorder %s323, %s325
      %p329 = scmp.eq.s32.totalorder %s27, 0
      %p330 = por %p328, %p329
      %p331 = scmp.ne.s32.totalorder %s323, %s325
      %p332 = scmp.eq.s32.totalorder %s32, 1
      %p333 = por %p331, %p332
      %p334 = scmp.ne.s32.totalorder %s325, %s326
      %p335 = scmp.eq.s32.totalorder %s32, 0
      %p336 = por %p334, %p335
      %p337 = scmp.ne.s32.totalorder %s325, %s326
      %p338 = scmp.eq.s32.totalorder %s33, 1
      %p339 = por %p337, %p338
      %p341 = scmp.ne.s32.totalorder %s326, %s340
      %p342 = scmp.eq.s32.totalorder %s33, 0
      %p343 = por %p341, %p342
      %s345 = sadd.s32 %s344, 1
      %p348 = scmp.eq.s32.totalorder %s27, 1
      %p349 = scmp.ne.s32.totalorder %s344, %s346
      %p350 = scmp.eq.s32.totalorder %s27, 0
      %p351 = por %p349, %p350
      %p352 = scmp.ne.s32.totalorder %s344, %s346
      %p353 = scmp.eq.s32.totalorder %s32, 1
      %p354 = por %p352, %p353
      %p355 = scmp.ne.s32.totalorder %s346, %s347
      %p356 = scmp.eq.s32.totalorder %s32, 0
      %p357 = por %p355, %p356
      %p358 = scmp.ne.s32.totalorder %s346, %s347
      %p359 = scmp.eq.s32.totalorder %s33, 1
      %p360 = por %p358, %p359
      %p362 = scmp.ne.s32.totalorder %s347, %s361
      %p363 = scmp.eq.s32.totalorder %s33, 0
      %p364 = por %p362, %p363
      %s366 = sadd.s32 %s365, 1
      %p369 = scmp.eq.s32.totalorder %s27, 1
      %p370 = scmp.ne.s32.totalorder %s365, %s367
      %p371 = scmp.eq.s32.totalorder %s27, 0
      %p372 = por %p370, %p371
      %p373 = scmp.ne.s32.totalorder %s365, %s367
      %p374 = scmp.eq.s32.totalorder %s32, 1
      %p375 = por %p373, %p374
      %p376 = scmp.ne.s32.totalorder %s367, %s368
      %p377 = scmp.eq.s32.totalorder %s32, 0
      %p378 = por %p376, %p377
      %p379 = scmp.ne.s32.totalorder %s367, %s368
      %p380 = scmp.eq.s32.totalorder %s33, 1
      %p381 = por %p379, %p380
      %p383 = scmp.ne.s32.totalorder %s368, %s382
      %p384 = scmp.eq.s32.totalorder %s33, 0
      %p385 = por %p383, %p384
      %s387 = sadd.s32 %s386, 1
      %p390 = scmp.eq.s32.totalorder %s27, 1
      %p391 = scmp.ne.s32.totalorder %s386, %s388
      %p392 = scmp.eq.s32.totalorder %s27, 0
      %p393 = por %p391, %p392
      %p394 = scmp.ne.s32.totalorder %s386, %s388
      %p395 = scmp.eq.s32.totalorder %s32, 1
      %p396 = por %p394, %p395
      %p397 = scmp.ne.s32.totalorder %s388, %s389
      %p398 = scmp.eq.s32.totalorder %s32, 0
      %p399 = por %p397, %p398
      %p400 = scmp.ne.s32.totalorder %s388, %s389
      %p401 = scmp.eq.s32.totalorder %s33, 1
      %p402 = por %p400, %p401
      %p404 = scmp.ne.s32.totalorder %s389, %s403
      %p405 = scmp.eq.s32.totalorder %s33, 0
      %p406 = por %p404, %p405
      %s408 = sadd.s32 %s407, 1
      %p411 = scmp.eq.s32.totalorder %s27, 1
      %p412 = scmp.ne.s32.totalorder %s407, %s409
      %p413 = scmp.eq.s32.totalorder %s27, 0
      %p414 = por %p412, %p413
      %p415 = scmp.ne.s32.totalorder %s407, %s409
      %p416 = scmp.eq.s32.totalorder %s32, 1
      %p417 = por %p415, %p416
      %p418 = scmp.ne.s32.totalorder %s409, %s410
      %p419 = scmp.eq.s32.totalorder %s32, 0
      %p420 = por %p418, %p419
      %p421 = scmp.ne.s32.totalorder %s409, %s410
      %p422 = scmp.eq.s32.totalorder %s33, 1
      %p423 = por %p421, %p422
      %p425 = scmp.ne.s32.totalorder %s410, %s424
      %p426 = scmp.eq.s32.totalorder %s33, 0
      %p427 = por %p425, %p426
      %s429 = sadd.s32 %s428, 1
      %p432 = scmp.eq.s32.totalorder %s27, 1
      %p433 = scmp.ne.s32.totalorder %s428, %s430
      %p434 = scmp.eq.s32.totalorder %s27, 0
      %p435 = por %p433, %p434
      %p436 = scmp.ne.s32.totalorder %s428, %s430
      %p437 = scmp.eq.s32.totalorder %s32, 1
      %p438 = por %p436, %p437
      %p439 = scmp.ne.s32.totalorder %s430, %s431
      %p440 = scmp.eq.s32.totalorder %s32, 0
      %p441 = por %p439, %p440
      %p442 = scmp.ne.s32.totalorder %s430, %s431
      %p443 = scmp.eq.s32.totalorder %s33, 1
      %p444 = por %p442, %p443
      %p446 = scmp.ne.s32.totalorder %s431, %s445
      %p447 = scmp.eq.s32.totalorder %s33, 0
      %p448 = por %p446, %p447
      %s450 = sadd.s32 %s449, 1
      %p453 = scmp.eq.s32.totalorder %s27, 1
      %p454 = scmp.ne.s32.totalorder %s449, %s451
      %p455 = scmp.eq.s32.totalorder %s27, 0
      %p456 = por %p454, %p455
      %p457 = scmp.ne.s32.totalorder %s449, %s451
      %p458 = scmp.eq.s32.totalorder %s32, 1
      %p459 = por %p457, %p458
      %p460 = scmp.ne.s32.totalorder %s451, %s452
      %p461 = scmp.eq.s32.totalorder %s32, 0
      %p462 = por %p460, %p461
      %p463 = scmp.ne.s32.totalorder %s451, %s452
      %p464 = scmp.eq.s32.totalorder %s33, 1
      %p465 = por %p463, %p464
      %p467 = scmp.ne.s32.totalorder %s452, %s466
      %p468 = scmp.eq.s32.totalorder %s33, 0
      %p469 = por %p467, %p468
      %s470 = ssub.s32 %s27, %s34
      %p471 = scmp.eq.s32.totalorder %s470, 0
      %s473 = sadd.s32 %s472, 1
      %s474 = scalar_select %p471, %s472, %s473
      %p477 = pneg %p471
      %p478 = scmp.eq.s32.totalorder %s27, 1
      %p479 = por %p477, %p478
      %p480 = scmp.ne.s32.totalorder %s472, %s475
      %p481 = scmp.eq.s32.totalorder %s27, 0
      %p482 = por %p480, %p481
      %p483 = scmp.ne.s32.totalorder %s472, %s475
      %p484 = scmp.eq.s32.totalorder %s32, 1
      %p485 = por %p483, %p484
      %p486 = scmp.ne.s32.totalorder %s475, %s476
      %p487 = scmp.eq.s32.totalorder %s32, 0
      %p488 = por %p486, %p487
      %p489 = scmp.ne.s32.totalorder %s475, %s476
      %p490 = scmp.eq.s32.totalorder %s33, 1
      %p491 = por %p489, %p490
      %p493 = scmp.ne.s32.totalorder %s476, %s492
      %p494 = scmp.eq.s32.totalorder %s33, 0
      %p495 = por %p493, %p494
      %p496 = scmp.le.s32.totalorder 1, %s27
      %p497 = scmp.lt.s32.totalorder %s27, 3
      %p498 = pnand %p496, %p497
      %p499 = pneg %p498
      // Predicated region
      $region9: #{transformer_forward.1} parent=5 // pred_check
        _
      $region10: #{transformer_forward.1} parent=5 // pred_check_branch
        %501 = sbr.rel (%p498) target = $region12
      $region11: #{transformer_forward.1} parent=5 // pred_region
        %s502 = ssub.s32 %s27, 1
        // Predicated region
        $region13: #{transformer_forward.1} parent=11 // pred_check
          %p503 = pneg %p126
        $region14: #{transformer_forward.1} parent=11 // pred_check_branch
          %505 = sbr.rel (%p503) target = $region16
        $region15: #{transformer_forward.1} parent=11 // pred_region
          _
        $region16: #{transformer_forward.1} parent=11 // pred_fallthru
          _
        // Predicated region
        $region17: #{transformer_forward.1} parent=11 // pred_check
          %p506 = pneg %p147
        $region18: #{transformer_forward.1} parent=11 // pred_check_branch
          %508 = sbr.rel (%p506) target = $region20
        $region19: #{transformer_forward.1} parent=11 // pred_region
          _
        $region20: #{transformer_forward.1} parent=11 // pred_fallthru
          _
        // Predicated region
        $region21: #{transformer_forward.1} parent=11 // pred_check
          %p509 = pneg %p168
        $region22: #{transformer_forward.1} parent=11 // pred_check_branch
          %511 = sbr.rel (%p509) target = $region24
        $region23: #{transformer_forward.1} parent=11 // pred_region
          _
        $region24: #{transformer_forward.1} parent=11 // pred_fallthru
          _
        // Predicated region
        $region25: #{transformer_forward.1} parent=11 // pred_check
          %p512 = pneg %p189
        $region26: #{transformer_forward.1} parent=11 // pred_check_branch
          %514 = sbr.rel (%p512) target = $region28
        $region27: #{transformer_forward.1} parent=11 // pred_region
          _
        $region28: #{transformer_forward.1} parent=11 // pred_fallthru
          _
        // Predicated region
        $region29: #{transformer_forward.1} parent=11 // pred_check
          %p515 = pneg %p210
        $region30: #{transformer_forward.1} parent=11 // pred_check_branch
          %517 = sbr.rel (%p515) target = $region32
        $region31: #{transformer_forward.1} parent=11 // pred_region
          _
        $region32: #{transformer_forward.1} parent=11 // pred_fallthru
          _
        // Predicated region
        $region33: #{transformer_forward.1} parent=11 // pred_check
          %p518 = pneg %p231
        $region34: #{transformer_forward.1} parent=11 // pred_check_branch
          %520 = sbr.rel (%p518) target = $region36
        $region35: #{transformer_forward.1} parent=11 // pred_region
          _
        $region36: #{transformer_forward.1} parent=11 // pred_fallthru
          _
        // Predicated region
        $region37: #{transformer_forward.1} parent=11 // pred_check
          %p521 = pneg %p252
        $region38: #{transformer_forward.1} parent=11 // pred_check_branch
          %523 = sbr.rel (%p521) target = $region40
        $region39: #{transformer_forward.1} parent=11 // pred_region
          _
        $region40: #{transformer_forward.1} parent=11 // pred_fallthru
          _
        // Predicated region
        $region41: #{transformer_forward.1} parent=11 // pred_check
          %p524 = pneg %p273
        $region42: #{transformer_forward.1} parent=11 // pred_check_branch
          %526 = sbr.rel (%p524) target = $region44
        $region43: #{transformer_forward.1} parent=11 // pred_region
          _
        $region44: #{transformer_forward.1} parent=11 // pred_fallthru
          _
        // Predicated region
        $region45: #{transformer_forward.1} parent=11 // pred_check
          %p527 = pneg %p294
        $region46: #{transformer_forward.1} parent=11 // pred_check_branch
          %529 = sbr.rel (%p527) target = $region48
        $region47: #{transformer_forward.1} parent=11 // pred_region
          _
        $region48: #{transformer_forward.1} parent=11 // pred_fallthru
          _
        // Predicated region
        $region49: #{transformer_forward.1} parent=11 // pred_check
          %p530 = pneg %p315
        $region50: #{transformer_forward.1} parent=11 // pred_check_branch
          %532 = sbr.rel (%p530) target = $region52
        $region51: #{transformer_forward.1} parent=11 // pred_region
          _
        $region52: #{transformer_forward.1} parent=11 // pred_fallthru
          _
        // Predicated region
        $region53: #{transformer_forward.1} parent=11 // pred_check
          %p533 = pneg %p336
        $region54: #{transformer_forward.1} parent=11 // pred_check_branch
          %535 = sbr.rel (%p533) target = $region56
        $region55: #{transformer_forward.1} parent=11 // pred_region
          _
        $region56: #{transformer_forward.1} parent=11 // pred_fallthru
          _
        // Predicated region
        $region57: #{transformer_forward.1} parent=11 // pred_check
          %p536 = pneg %p357
        $region58: #{transformer_forward.1} parent=11 // pred_check_branch
          %538 = sbr.rel (%p536) target = $region60
        $region59: #{transformer_forward.1} parent=11 // pred_region
          _
        $region60: #{transformer_forward.1} parent=11 // pred_fallthru
          _
        // Predicated region
        $region61: #{transformer_forward.1} parent=11 // pred_check
          %p539 = pneg %p378
        $region62: #{transformer_forward.1} parent=11 // pred_check_branch
          %541 = sbr.rel (%p539) target = $region64
        $region63: #{transformer_forward.1} parent=11 // pred_region
          _
        $region64: #{transformer_forward.1} parent=11 // pred_fallthru
          _
        // Predicated region
        $region65: #{transformer_forward.1} parent=11 // pred_check
          %p542 = pneg %p399
        $region66: #{transformer_forward.1} parent=11 // pred_check_branch
          %544 = sbr.rel (%p542) target = $region68
        $region67: #{transformer_forward.1} parent=11 // pred_region
          _
        $region68: #{transformer_forward.1} parent=11 // pred_fallthru
          _
        // Predicated region
        $region69: #{transformer_forward.1} parent=11 // pred_check
          %p545 = pneg %p420
        $region70: #{transformer_forward.1} parent=11 // pred_check_branch
          %547 = sbr.rel (%p545) target = $region72
        $region71: #{transformer_forward.1} parent=11 // pred_region
          _
        $region72: #{transformer_forward.1} parent=11 // pred_fallthru
          _
        // Predicated region
        $region73: #{transformer_forward.1} parent=11 // pred_check
          %p548 = pneg %p441
        $region74: #{transformer_forward.1} parent=11 // pred_check_branch
          %550 = sbr.rel (%p548) target = $region76
        $region75: #{transformer_forward.1} parent=11 // pred_region
          %s552 = ssub.s32 512, 512
          %553 = vsyncadd [#allocation3], %s552
          %s554 = sshll.u32 [#allocation2], 4
          %s555 = int_to_ptr.vmem [resolvable:$true] %s554
          %560 = dma.hbm_to_vmem [thread:$0]  %s18, 512, %s555, [#allocation3], 128, 128, 8
        $region76: #{transformer_forward.1} parent=11 // pred_fallthru
          _
        // Predicated region
        $region77: #{transformer_forward.1} parent=11 // pred_check
          %p561 = pneg %p462
        $region78: #{transformer_forward.1} parent=11 // pred_check_branch
          %563 = sbr.rel (%p561) target = $region80
        $region79: #{transformer_forward.1} parent=11 // pred_region
          _
        $region80: #{transformer_forward.1} parent=11 // pred_fallthru
          _
      $region12: #{transformer_forward.1} parent=5 // pred_fallthru
        _
      %p564 = scmp.lt.s32.totalorder %s27, 2
      // Predicated region
      $region81: #{transformer_forward.1} parent=5 // pred_check
        %p565 = pneg %p564
      $region82: #{transformer_forward.1} parent=5 // pred_check_branch
        %567 = sbr.rel (%p565) target = $region84
      $region83: #{transformer_forward.1} parent=5 // pred_region
        // Predicated region
        $region85: #{transformer_forward.1} parent=83 // pred_check
          %p568 = pneg %p47
        $region86: #{transformer_forward.1} parent=83 // pred_check_branch
          %570 = sbr.rel (%p568) target = $region88
        $region87: #{transformer_forward.1} parent=83 // pred_region
          %p571 = scmp.lt.s32.totalorder %s27, 1
          %s572 = scalar_select %p571, %s27, 1
          %s573 = smul.addr %s572, 8
          %s574 = scalar_lea.vmem %s0, %s573
        $region88: #{transformer_forward.1} parent=83 // pred_fallthru
          _
        // Predicated region
        $region89: #{transformer_forward.1} parent=83 // pred_check
          %p575 = pneg %p73
        $region90: #{transformer_forward.1} parent=83 // pred_check_branch
          %577 = sbr.rel (%p575) target = $region92
        $region91: #{transformer_forward.1} parent=83 // pred_region
          %p578 = scmp.lt.s32.totalorder %s27, 1
          %s579 = scalar_select %p578, %s27, 1
          %s580 = scalar_lea.vmem %s1, %s579
        $region92: #{transformer_forward.1} parent=83 // pred_fallthru
          _
        // Predicated region
        $region93: #{transformer_forward.1} parent=83 // pred_check
          %p581 = pneg %p99
        $region94: #{transformer_forward.1} parent=83 // pred_check_branch
          %583 = sbr.rel (%p581) target = $region96
        $region95: #{transformer_forward.1} parent=83 // pred_region
          %p584 = scmp.lt.s32.totalorder %s27, 1
          %s585 = scalar_select %p584, %s27, 1
          %s586 = scalar_lea.vmem %s2, %s585
        $region96: #{transformer_forward.1} parent=83 // pred_fallthru
          _
      $region84: #{transformer_forward.1} parent=5 // pred_fallthru
        _
      %p587 = scmp.le.s32.totalorder 1, %s27
      %p588 = scmp.lt.s32.totalorder %s27, 3
      %p589 = pnand %p587, %p588
      %p590 = pneg %p589
      // Predicated region
      $region97: #{transformer_forward.1} parent=5 // pred_check
        _
      $region98: #{transformer_forward.1} parent=5 // pred_check_branch
        %592 = sbr.rel (%p589) target = $region100
      $region99: #{transformer_forward.1} parent=5 // pred_region
        %s593 = ssub.s32 %s27, 1
        // Predicated region
        $region101: #{transformer_forward.1} parent=99 // pred_check
          %p594 = pneg %p441
        $region102: #{transformer_forward.1} parent=99 // pred_check_branch
          %596 = sbr.rel (%p594) target = $region104
        $region103: #{transformer_forward.1} parent=99 // pred_region
          %597 = dma.done [#allocation3], 512
        $region104: #{transformer_forward.1} parent=99 // pred_fallthru
          _
        %p598 = scmp.lt.s32.totalorder %s32, 1
        %s599 = scalar_select %p598, %s32, 1
        %s600 = smul.addr %s599, 8
        %s601 = scalar_lea.vmem %s0, %s600
        %p602 = pneg %p53
        %p603 = pneg %p50
        %p604 = scmp.lt.s32.totalorder %s32, 1
        %s605 = scalar_select %p604, %s32, 1
        %s606 = scalar_lea.vmem %s1, %s605
        %p607 = pneg %p79
        %p608 = pneg %p76
        %p609 = scmp.lt.s32.totalorder %s32, 1
        %s610 = scalar_select %p609, %s32, 1
        %s611 = scalar_lea.vmem %s2, %s610
        %p612 = pneg %p105
        %p613 = pneg %p102
        %p614 = pneg %p126
        %p615 = pneg %p123
        %p616 = pneg %p147
        %p617 = pneg %p144
        %p618 = pneg %p168
        %p619 = pneg %p165
        %p620 = pneg %p189
        %p621 = pneg %p186
        %p622 = pneg %p210
        %p623 = pneg %p207
        %p624 = pneg %p231
        %p625 = pneg %p228
        %p626 = pneg %p252
        %p627 = pneg %p249
        %p628 = pneg %p273
        %p629 = pneg %p270
        %p630 = pneg %p294
        %p631 = pneg %p291
        %p632 = pneg %p315
        %p633 = pneg %p312
        %p634 = pneg %p336
        %p635 = pneg %p333
        %p636 = pneg %p357
        %p637 = pneg %p354
        %p638 = pneg %p378
        %p639 = pneg %p375
        %p640 = pneg %p399
        %p641 = pneg %p396
        %p642 = pneg %p420
        %p643 = pneg %p417
        %p644 = pneg %p441
        %p645 = pneg %p438
        %p646 = pneg %p462
        %p647 = pneg %p459
        %p648 = pneg %p488
        %p649 = pneg %p485
        %p650 = scmp.lt.s32.totalorder %s32, 1
        %s651 = scalar_select %p650, %s32, 1
        %s652 = smul.addr %s651, 8
        %s653 = scalar_lea.vmem %s20, %s652
        %p654 = scmp.lt.s32.totalorder %s32, 1
        %s655 = scalar_select %p654, %s32, 1
        %s656 = smul.addr %s655, 8
        %s657 = scalar_lea.vmem %s0, %s656
        %p658 = scmp.lt.s32.totalorder %s32, 1
        %s659 = scalar_select %p658, %s32, 1
        %s660 = scalar_lea.vmem %s1, %s659
        %p661 = scmp.lt.s32.totalorder %s32, 1
        %s662 = scalar_select %p661, %s32, 1
        %s663 = scalar_lea.vmem %s2, %s662
        %p664 = scmp.lt.s32.totalorder %s32, 1
        %s665 = scalar_select %p664, %s32, 1
        %s666 = smul.addr %s665, 8
        %s667 = scalar_lea.vmem %s20, %s666
        %v668 = vlaneseq
        %v669 = vshrl.u32 %v668, 7
        %v670 = vlaneseq
        %v671 = vand.u32 %v670, 127
        %vm672 = vcmp.gt.s32.totalorder %v671, %v669
        %v673 = vsel %vm672, -1e+30, 0.0
        %v674 = vld [vmem:[%s663] sm:$0x1]
        %v676 = vlaneseq
        %v677 = vshrl.u32 %v676, 7
        %v678 = vsub.s32 0, %v677
        %v679 = vrot.slane %v674, %v678
        %v681 = vadd.f32 %v673, %v679
        %v682 = vld [vmem:[%s657] sm:$0xff]
        %v683 = vmul.f32 %v682, 5.656854
        %v684 = vld [vmem:[%s660] sm:$0x1]
        %v686 = vlaneseq
        %v687 = vshrl.u32 %v686, 7
        %v688 = vsub.s32 0, %v687
        %v689 = vrot.slane %v684, %v688
        %v691 = vadd.f32 %v683, %v689
        %v692 = vld [vmem:[%s3] sm:$0xff]
        %v693 = vld [vmem:[%s3 + $0x8] sm:$0xff]
        %v694 = vld [vmem:[%s3 + $0x10] sm:$0xff]
        %v695 = vld [vmem:[%s3 + $0x18] sm:$0xff]
        %v696 = vld [vmem:[%s4] sm:$0x1]
        %v698 = vlaneseq
        %v699 = vshrl.u32 %v698, 7
        %v700 = vsub.s32 0, %v699
        %v701 = vrot.slane %v696, %v700
        %vm703 = vcmask 261120
        %v705 = vsel %vm703, %v691, 0
        %707 = vmatprep.subr.mxu0 0.0
        %708 = vmatpush1.msra.mxu0 %v692
        %709 = vmatprep.subr.mxu0 0.0
        %710 = vmatpush1.msra.mxu0 %v693
        %711 = vmatprep.subr.mxu0 0.0
        %712 = vmatpush1.msra.mxu0 %v694
        %713 = vmatprep.subr.mxu0 0.0
        %714 = vmatpush1.msra.mxu0 %v695
        %715 = vmatprep.subr.mxu0 0.0
        %716 = vmatpush1.msra.mxu0 0.0
        %717 = vmatprep.subr.mxu0 0.0
        %718 = vmatpush1.msra.mxu0 0.0
        %719 = vmatprep.subr.mxu0 0.0
        %720 = vmatpush1.msra.mxu0 0.0
        %721 = vmatprep.subr.mxu0 0.0
        %722 = vmatpush1.msra.mxu0 0.0
        %723 = vmatprep.subr.mxu0 0.0
        %724 = vmatpush1.msra.mxu0 0.0
        %725 = vmatprep.subr.mxu0 0.0
        %726 = vmatpush1.msra.mxu0 0.0
        %727 = vmatprep.subr.mxu0 0.0
        %728 = vmatpush1.msra.mxu0 0.0
        %729 = vmatprep.subr.mxu0 0.0
        %730 = vmatpush1.msra.mxu0 0.0
        %731 = vmatprep.subr.mxu0 0.0
        %732 = vmatpush1.msra.mxu0 0.0
        %733 = vmatprep.subr.mxu0 0.0
        %734 = vmatpush1.msra.mxu0 0.0
        %735 = vmatprep.subr.mxu0 0.0
        %736 = vmatpush1.msra.mxu0 0.0
        %737 = vmatprep.subr.mxu0 0.0
        %738 = vmatpush1.msra.mxu0 0.0
        %739 = vmatprep.subr.mxu0 0.0
        %740 = vmatpush1.msra.mxu0 0.0
        %741 = vmatprep.subr.mxu0 0.0
        %742 = vmatpush1.msra.mxu0 0.0
        %743 = vmatprep.subr.mxu0 0.0
        %744 = vmatpush1.msra.mxu0 0.0
        %745 = vmatprep.subr.mxu0 0.0
        %746 = vmatpush1.msra.mxu0 0.0
        %747 = vmatprep.subr.mxu0 0.0
        %748 = vmatpush1.msra.mxu0 0.0
        %749 = vmatprep.subr.mxu0 0.0
        %750 = vmatpush1.msra.mxu0 0.0
        %751 = vmatprep.subr.mxu0 0.0
        %752 = vmatpush1.msra.mxu0 0.0
        %753 = vmatprep.subr.mxu0 0.0
        %754 = vmatpush1.msra.mxu0 0.0
        %755 = vmatprep.subr.mxu0 0.0
        %756 = vmatpush1.msra.mxu0 0.0
        %757 = vmatprep.subr.mxu0 0.0
        %758 = vmatpush1.msra.mxu0 0.0
        %759 = vmatprep.subr.mxu0 0.0
        %760 = vmatpush1.msra.mxu0 0.0
        %761 = vmatprep.subr.mxu0 0.0
        %762 = vmatpush1.msra.mxu0 0.0
        %763 = vmatprep.subr.mxu0 0.0
        %764 = vmatpush1.msra.mxu0 0.0
        %765 = vmatprep.subr.mxu0 0.0
        %766 = vmatpush1.msra.mxu0 0.0
        %767 = vmatprep.subr.mxu0 0.0
        %768 = vmatpush1.msra.mxu0 0.0
        %769 = vmatprep.subr.mxu0 0.0
        %770 = vmatpush1.msra.mxu0 0.0
        %771 = vmatprep.mubr.f32.mxu0 0.0
        %772 = vmatmul.mubr.f32.gmra.mrb[0].mxu0 %v705
        %v773 = vpop.f32.mrb[0].mxu0
        %v774 = vadd.f32 %v701, %v773
        %v775 = vpop.f32.mrb[0].mxu0
        %776 = vdwg.mxu0
        %v777 = vld [vmem:[%s5] sm:$0xff]
        %v778 = vld [vmem:[%s5 + $0x8] sm:$0xff]
        %v779 = vld [vmem:[%s5 + $0x10] sm:$0xff]
        %v780 = vld [vmem:[%s5 + $0x18] sm:$0xff]
        %v781 = vld [vmem:[%s6] sm:$0x1]
        %v783 = vlaneseq
        %v784 = vshrl.u32 %v783, 7
        %v785 = vsub.s32 0, %v784
        %v786 = vrot.slane %v781, %v785
        %788 = vmatprep.subr.mxu0 0.0
        %789 = vmatpush1.msra.mxu0 %v777
        %790 = vmatprep.subr.mxu0 0.0
        %791 = vmatpush1.msra.mxu0 %v778
        %792 = vmatprep.subr.mxu0 0.0
        %793 = vmatpush1.msra.mxu0 %v779
        %794 = vmatprep.subr.mxu0 0.0
        %795 = vmatpush1.msra.mxu0 %v780
        %796 = vmatprep.subr.mxu0 0.0
        %797 = vmatpush1.msra.mxu0 0.0
        %798 = vmatprep.subr.mxu0 0.0
        %799 = vmatpush1.msra.mxu0 0.0
        %800 = vmatprep.subr.mxu0 0.0
        %801 = vmatpush1.msra.mxu0 0.0
        %802 = vmatprep.subr.mxu0 0.0
        %803 = vmatpush1.msra.mxu0 0.0
        %804 = vmatprep.subr.mxu0 0.0
        %805 = vmatpush1.msra.mxu0 0.0
        %806 = vmatprep.subr.mxu0 0.0
        %807 = vmatpush1.msra.mxu0 0.0
        %808 = vmatprep.subr.mxu0 0.0
        %809 = vmatpush1.msra.mxu0 0.0
        %810 = vmatprep.subr.mxu0 0.0
        %811 = vmatpush1.msra.mxu0 0.0
        %812 = vmatprep.subr.mxu0 0.0
        %813 = vmatpush1.msra.mxu0 0.0
        %814 = vmatprep.subr.mxu0 0.0
        %815 = vmatpush1.msra.mxu0 0.0
        %816 = vmatprep.subr.mxu0 0.0
        %817 = vmatpush1.msra.mxu0 0.0
        %818 = vmatprep.subr.mxu0 0.0
        %819 = vmatpush1.msra.mxu0 0.0
        %820 = vmatprep.subr.mxu0 0.0
        %821 = vmatpush1.msra.mxu0 0.0
        %822 = vmatprep.subr.mxu0 0.0
        %823 = vmatpush1.msra.mxu0 0.0
        %824 = vmatprep.subr.mxu0 0.0
        %825 = vmatpush1.msra.mxu0 0.0
        %826 = vmatprep.subr.mxu0 0.0
        %827 = vmatpush1.msra.mxu0 0.0
        %828 = vmatprep.subr.mxu0 0.0
        %829 = vmatpush1.msra.mxu0 0.0
        %830 = vmatprep.subr.mxu0 0.0
        %831 = vmatpush1.msra.mxu0 0.0
        %832 = vmatprep.subr.mxu0 0.0
        %833 = vmatpush1.msra.mxu0 0.0
        %834 = vmatprep.subr.mxu0 0.0
        %835 = vmatpush1.msra.mxu0 0.0
        %836 = vmatprep.subr.mxu0 0.0
        %837 = vmatpush1.msra.mxu0 0.0
        %838 = vmatprep.subr.mxu0 0.0
        %839 = vmatpush1.msra.mxu0 0.0
        %840 = vmatprep.subr.mxu0 0.0
        %841 = vmatpush1.msra.mxu0 0.0
        %842 = vmatprep.subr.mxu0 0.0
        %843 = vmatpush1.msra.mxu0 0.0
        %844 = vmatprep.subr.mxu0 0.0
        %845 = vmatpush1.msra.mxu0 0.0
        %846 = vmatprep.subr.mxu0 0.0
        %847 = vmatpush1.msra.mxu0 0.0
        %848 = vmatprep.subr.mxu0 0.0
        %849 = vmatpush1.msra.mxu0 0.0
        %850 = vmatprep.subr.mxu0 0.0
        %851 = vmatpush1.msra.mxu0 0.0
        %852 = vmatprep.mubr.f32.mxu0 0.0
        %853 = vmatmul.mubr.f32.gmra.mrb[0].mxu0 %v705
        %v854 = vpop.f32.mrb[0].mxu0
        %v855 = vadd.f32 %v786, %v854
        %v856 = vpop.f32.mrb[0].mxu0
        %857 = vdwg.mxu0
        %859 = vrot.lane.b32.xlu0 %v774, 96
        %v860 = vpop.permute.xlu0 %859
        %vm861 = vcmask 64512
        %v862 = vsel %vm861, %v774, 0
        %v864 = vsel %vm861, %v860, 0
        %866 = vmatprep.subr.mxu0 0.0
        %867 = vmatpush1.xpose.msra.mxu0 %v864
        %868 = vmatprep.subr.mxu0 0.0
        %869 = vmatpush1.xpose.msra.mxu0 0.0
        %870 = vmatprep.subr.mxu0 0.0
        %871 = vmatpush1.xpose.msra.mxu0 0.0
        %872 = vmatprep.subr.mxu0 0.0
        %873 = vmatpush1.xpose.msra.mxu0 0.0
        %874 = vmatprep.subr.mxu0 0.0
        %875 = vmatpush1.xpose.msra.mxu0 0.0
        %876 = vmatprep.subr.mxu0 0.0
        %877 = vmatpush1.xpose.msra.mxu0 0.0
        %878 = vmatprep.subr.mxu0 0.0
        %879 = vmatpush1.xpose.msra.mxu0 0.0
        %880 = vmatprep.subr.mxu0 0.0
        %881 = vmatpush1.xpose.msra.mxu0 0.0
        %882 = vmatprep.subr.mxu0 0.0
        %883 = vmatpush1.xpose.msra.mxu0 0.0
        %884 = vmatprep.subr.mxu0 0.0
        %885 = vmatpush1.xpose.msra.mxu0 0.0
        %886 = vmatprep.subr.mxu0 0.0
        %887 = vmatpush1.xpose.msra.mxu0 0.0
        %888 = vmatprep.subr.mxu0 0.0
        %889 = vmatpush1.xpose.msra.mxu0 0.0
        %890 = vmatprep.subr.mxu0 0.0
        %891 = vmatpush1.xpose.msra.mxu0 0.0
        %892 = vmatprep.subr.mxu0 0.0
        %893 = vmatpush1.xpose.msra.mxu0 0.0
        %894 = vmatprep.subr.mxu0 0.0
        %895 = vmatpush1.xpose.msra.mxu0 0.0
        %896 = vmatprep.subr.mxu0 0.0
        %897 = vmatpush1.xpose.msra.mxu0 0.0
        %898 = vmatprep.subr.mxu0 0.0
        %899 = vmatpush1.xpose.msra.mxu0 0.0
        %900 = vmatprep.subr.mxu0 0.0
        %901 = vmatpush1.xpose.msra.mxu0 0.0
        %902 = vmatprep.subr.mxu0 0.0
        %903 = vmatpush1.xpose.msra.mxu0 0.0
        %904 = vmatprep.subr.mxu0 0.0
        %905 = vmatpush1.xpose.msra.mxu0 0.0
        %906 = vmatprep.subr.mxu0 0.0
        %907 = vmatpush1.xpose.msra.mxu0 0.0
        %908 = vmatprep.subr.mxu0 0.0
        %909 = vmatpush1.xpose.msra.mxu0 0.0
        %910 = vmatprep.subr.mxu0 0.0
        %911 = vmatpush1.xpose.msra.mxu0 0.0
        %912 = vmatprep.subr.mxu0 0.0
        %913 = vmatpush1.xpose.msra.mxu0 0.0
        %914 = vmatprep.subr.mxu0 0.0
        %915 = vmatpush1.xpose.msra.mxu0 0.0
        %916 = vmatprep.subr.mxu0 0.0
        %917 = vmatpush1.xpose.msra.mxu0 0.0
        %918 = vmatprep.subr.mxu0 0.0
        %919 = vmatpush1.xpose.msra.mxu0 0.0
        %920 = vmatprep.subr.mxu0 0.0
        %921 = vmatpush1.xpose.msra.mxu0 0.0
        %922 = vmatprep.subr.mxu0 0.0
        %923 = vmatpush1.xpose.msra.mxu0 0.0
        %924 = vmatprep.subr.mxu0 0.0
        %925 = vmatpush1.xpose.msra.mxu0 0.0
        %926 = vmatprep.subr.mxu0 0.0
        %927 = vmatpush1.xpose.msra.mxu0 0.0
        %928 = vmatprep.subr.mxu0 0.0
        %929 = vmatpush1.xpose.msra.mxu0 0.0
        %930 = vmatprep.mubr.f32.mxu0 0.0
        %931 = vmatmul.mubr.f32.gmra.mrb[0].mxu0 %v862
        %v932 = vpop.f32.mrb[0].mxu0
        %v933 = vadd.f32 %v681, %v932
        %v934 = vpop.f32.mrb[0].mxu0
        %935 = vdwg.mxu0
        %v936 = vsel %vm861, %v933, -inf
        %937 = vmax.xlane.f32.xlu0 %v936
        %v938 = vpop.xlane.xlu0 %937
        %v939 = vsub.f32 %v933, %v938
        %v940 = vmul.f32 %v939, 1.442695
        %v941 = vpow.pop %v940
        %v942 = vsel %vm861, %v941, 0.0
        %943 = vadd.xlane.f32.xlu0 %v942
        %v944 = vpop.xlane.xlu0 %943
        %v945 = vrcp.pop %v944
        %v947 = vsel %vm861, %v941, 0
        %949 = vmatprep.subr.mxu0 0.0
        %950 = vmatpush1.msra.mxu0 %v855
        %951 = vmatprep.subr.mxu0 0.0
        %952 = vmatpush1.msra.mxu0 0.0
        %953 = vmatprep.subr.mxu0 0.0
        %954 = vmatpush1.msra.mxu0 0.0
        %955 = vmatprep.subr.mxu0 0.0
        %956 = vmatpush1.msra.mxu0 0.0
        %957 = vmatprep.subr.mxu0 0.0
        %958 = vmatpush1.msra.mxu0 0.0
        %959 = vmatprep.subr.mxu0 0.0
        %960 = vmatpush1.msra.mxu0 0.0
        %961 = vmatprep.subr.mxu0 0.0
        %962 = vmatpush1.msra.mxu0 0.0
        %963 = vmatprep.subr.mxu0 0.0
        %964 = vmatpush1.msra.mxu0 0.0
        %965 = vmatprep.subr.mxu0 0.0
        %966 = vmatpush1.msra.mxu0 0.0
        %967 = vmatprep.subr.mxu0 0.0
        %968 = vmatpush1.msra.mxu0 0.0
        %969 = vmatprep.subr.mxu0 0.0
        %970 = vmatpush1.msra.mxu0 0.0
        %971 = vmatprep.subr.mxu0 0.0
        %972 = vmatpush1.msra.mxu0 0.0
        %973 = vmatprep.subr.mxu0 0.0
        %974 = vmatpush1.msra.mxu0 0.0
        %975 = vmatprep.subr.mxu0 0.0
        %976 = vmatpush1.msra.mxu0 0.0
        %977 = vmatprep.subr.mxu0 0.0
        %978 = vmatpush1.msra.mxu0 0.0
        %979 = vmatprep.subr.mxu0 0.0
        %980 = vmatpush1.msra.mxu0 0.0
        %981 = vmatprep.subr.mxu0 0.0
        %982 = vmatpush1.msra.mxu0 0.0
        %983 = vmatprep.subr.mxu0 0.0
        %984 = vmatpush1.msra.mxu0 0.0
        %985 = vmatprep.subr.mxu0 0.0
        %986 = vmatpush1.msra.mxu0 0.0
        %987 = vmatprep.subr.mxu0 0.0
        %988 = vmatpush1.msra.mxu0 0.0
        %989 = vmatprep.subr.mxu0 0.0
        %990 = vmatpush1.msra.mxu0 0.0
        %991 = vmatprep.subr.mxu0 0.0
        %992 = vmatpush1.msra.mxu0 0.0
        %993 = vmatprep.subr.mxu0 0.0
        %994 = vmatpush1.msra.mxu0 0.0
        %995 = vmatprep.subr.mxu0 0.0
        %996 = vmatpush1.msra.mxu0 0.0
        %997 = vmatprep.subr.mxu0 0.0
        %998 = vmatpush1.msra.mxu0 0.0
        %999 = vmatprep.subr.mxu0 0.0
        %1000 = vmatpush1.msra.mxu0 0.0
        %1001 = vmatprep.subr.mxu0 0.0
        %1002 = vmatpush1.msra.mxu0 0.0
        %1003 = vmatprep.subr.mxu0 0.0
        %1004 = vmatpush1.msra.mxu0 0.0
        %1005 = vmatprep.subr.mxu0 0.0
        %1006 = vmatpush1.msra.mxu0 0.0
        %1007 = vmatprep.subr.mxu0 0.0
        %1008 = vmatpush1.msra.mxu0 0.0
        %1009 = vmatprep.subr.mxu0 0.0
        %1010 = vmatpush1.msra.mxu0 0.0
        %1011 = vmatprep.subr.mxu0 0.0
        %1012 = vmatpush1.msra.mxu0 0.0
        %1013 = vmatprep.mubr.f32.mxu0 0.0
        %1014 = vmatmul.mubr.f32.gmra.mrb[0].mxu0 %v947
        %v1015 = vpop.f32.mrb[0].mxu0
        %v1016 = vadd.f32 0.0, %v1015
        %v1017 = vpop.f32.mrb[0].mxu0
        %1018 = vdwg.mxu0
        %v1019 = vmul.f32 %v1016, %v945
        %1020 = vrot.lane.b32.xlu0 %v774, 120
        %v1021 = vpop.permute.xlu0 %1020
        %1022 = vrot.lane.b32.xlu0 %v774, 88
        %v1023 = vpop.permute.xlu0 %1022
        %v1024 = vsel %vm861, %v1021, 0
        %v1026 = vsel %vm861, %v1023, 0
        %1028 = vmatprep.subr.mxu0 0.0
        %1029 = vmatpush1.xpose.msra.mxu0 %v1026
        %1030 = vmatprep.subr.mxu0 0.0
        %1031 = vmatpush1.xpose.msra.mxu0 0.0
        %1032 = vmatprep.subr.mxu0 0.0
        %1033 = vmatpush1.xpose.msra.mxu0 0.0
        %1034 = vmatprep.subr.mxu0 0.0
        %1035 = vmatpush1.xpose.msra.mxu0 0.0
        %1036 = vmatprep.subr.mxu0 0.0
        %1037 = vmatpush1.xpose.msra.mxu0 0.0
        %1038 = vmatprep.subr.mxu0 0.0
        %1039 = vmatpush1.xpose.msra.mxu0 0.0
        %1040 = vmatprep.subr.mxu0 0.0
        %1041 = vmatpush1.xpose.msra.mxu0 0.0
        %1042 = vmatprep.subr.mxu0 0.0
        %1043 = vmatpush1.xpose.msra.mxu0 0.0
        %1044 = vmatprep.subr.mxu0 0.0
        %1045 = vmatpush1.xpose.msra.mxu0 0.0
        %1046 = vmatprep.subr.mxu0 0.0
        %1047 = vmatpush1.xpose.msra.mxu0 0.0
        %1048 = vmatprep.subr.mxu0 0.0
        %1049 = vmatpush1.xpose.msra.mxu0 0.0
        %1050 = vmatprep.subr.mxu0 0.0
        %1051 = vmatpush1.xpose.msra.mxu0 0.0
        %1052 = vmatprep.subr.mxu0 0.0
        %1053 = vmatpush1.xpose.msra.mxu0 0.0
        %1054 = vmatprep.subr.mxu0 0.0
        %1055 = vmatpush1.xpose.msra.mxu0 0.0
        %1056 = vmatprep.subr.mxu0 0.0
        %1057 = vmatpush1.xpose.msra.mxu0 0.0
        %1058 = vmatprep.subr.mxu0 0.0
        %1059 = vmatpush1.xpose.msra.mxu0 0.0
        %1060 = vmatprep.subr.mxu0 0.0
        %1061 = vmatpush1.xpose.msra.mxu0 0.0
        %1062 = vmatprep.subr.mxu0 0.0
        %1063 = vmatpush1.xpose.msra.mxu0 0.0
        %1064 = vmatprep.subr.mxu0 0.0
        %1065 = vmatpush1.xpose.msra.mxu0 0.0
        %1066 = vmatprep.subr.mxu0 0.0
        %1067 = vmatpush1.xpose.msra.mxu0 0.0
        %1068 = vmatprep.subr.mxu0 0.0
        %1069 = vmatpush1.xpose.msra.mxu0 0.0
        %1070 = vmatprep.subr.mxu0 0.0
        %1071 = vmatpush1.xpose.msra.mxu0 0.0
        %1072 = vmatprep.subr.mxu0 0.0
        %1073 = vmatpush1.xpose.msra.mxu0 0.0
        %1074 = vmatprep.subr.mxu0 0.0
        %1075 = vmatpush1.xpose.msra.mxu0 0.0
        %1076 = vmatprep.subr.mxu0 0.0
        %1077 = vmatpush1.xpose.msra.mxu0 0.0
        %1078 = vmatprep.subr.mxu0 0.0
        %1079 = vmatpush1.xpose.msra.mxu0 0.0
        %1080 = vmatprep.subr.mxu0 0.0
        %1081 = vmatpush1.xpose.msra.mxu0 0.0
        %1082 = vmatprep.subr.mxu0 0.0
        %1083 = vmatpush1.xpose.msra.mxu0 0.0
        %1084 = vmatprep.subr.mxu0 0.0
        %1085 = vmatpush1.xpose.msra.mxu0 0.0
        %1086 = vmatprep.subr.mxu0 0.0
        %1087 = vmatpush1.xpose.msra.mxu0 0.0
        %1088 = vmatprep.subr.mxu0 0.0
        %1089 = vmatpush1.xpose.msra.mxu0 0.0
        %1090 = vmatprep.subr.mxu0 0.0
        %1091 = vmatpush1.xpose.msra.mxu0 0.0
        %1092 = vmatprep.mubr.f32.mxu0 0.0
        %1093 = vmatmul.mubr.f32.gmra.mrb[0].mxu0 %v1024
        %v1094 = vpop.f32.mrb[0].mxu0
        %v1095 = vadd.f32 %v681, %v1094
        %v1096 = vpop.f32.mrb[0].mxu0
        %1097 = vdwg.mxu0
        %v1098 = vsel %vm861, %v1095, -inf
        %1099 = vmax.xlane.f32.xlu0 %v1098
        %v1100 = vpop.xlane.xlu0 %1099
        %v1101 = vsub.f32 %v1095, %v1100
        %v1102 = vmul.f32 %v1101, 1.442695
        %v1103 = vpow.pop %v1102
        %v1104 = vsel %vm861, %v1103, 0.0
        %1105 = vadd.xlane.f32.xlu0 %v1104
        %v1106 = vpop.xlane.xlu0 %1105
        %v1107 = vrcp.pop %v1106
        %1109 = vrot.lane.b32.xlu0 %v855, 96
        %v1110 = vpop.permute.xlu0 %1109
        %v1113 = vsel %vm861, %v1103, 0
        %1115 = vmatprep.subr.mxu0 0.0
        %1116 = vmatpush1.msra.mxu0 %v1110
        %1117 = vmatprep.subr.mxu0 0.0
        %1118 = vmatpush1.msra.mxu0 0.0
        %1119 = vmatprep.subr.mxu0 0.0
        %1120 = vmatpush1.msra.mxu0 0.0
        %1121 = vmatprep.subr.mxu0 0.0
        %1122 = vmatpush1.msra.mxu0 0.0
        %1123 = vmatprep.subr.mxu0 0.0
        %1124 = vmatpush1.msra.mxu0 0.0
        %1125 = vmatprep.subr.mxu0 0.0
        %1126 = vmatpush1.msra.mxu0 0.0
        %1127 = vmatprep.subr.mxu0 0.0
        %1128 = vmatpush1.msra.mxu0 0.0
        %1129 = vmatprep.subr.mxu0 0.0
        %1130 = vmatpush1.msra.mxu0 0.0
        %1131 = vmatprep.subr.mxu0 0.0
        %1132 = vmatpush1.msra.mxu0 0.0
        %1133 = vmatprep.subr.mxu0 0.0
        %1134 = vmatpush1.msra.mxu0 0.0
        %1135 = vmatprep.subr.mxu0 0.0
        %1136 = vmatpush1.msra.mxu0 0.0
        %1137 = vmatprep.subr.mxu0 0.0
        %1138 = vmatpush1.msra.mxu0 0.0
        %1139 = vmatprep.subr.mxu0 0.0
        %1140 = vmatpush1.msra.mxu0 0.0
        %1141 = vmatprep.subr.mxu0 0.0
        %1142 = vmatpush1.msra.mxu0 0.0
        %1143 = vmatprep.subr.mxu0 0.0
        %1144 = vmatpush1.msra.mxu0 0.0
        %1145 = vmatprep.subr.mxu0 0.0
        %1146 = vmatpush1.msra.mxu0 0.0
        %1147 = vmatprep.subr.mxu0 0.0
        %1148 = vmatpush1.msra.mxu0 0.0
        %1149 = vmatprep.subr.mxu0 0.0
        %1150 = vmatpush1.msra.mxu0 0.0
        %1151 = vmatprep.subr.mxu0 0.0
        %1152 = vmatpush1.msra.mxu0 0.0
        %1153 = vmatprep.subr.mxu0 0.0
        %1154 = vmatpush1.msra.mxu0 0.0
        %1155 = vmatprep.subr.mxu0 0.0
        %1156 = vmatpush1.msra.mxu0 0.0
        %1157 = vmatprep.subr.mxu0 0.0
        %1158 = vmatpush1.msra.mxu0 0.0
        %1159 = vmatprep.subr.mxu0 0.0
        %1160 = vmatpush1.msra.mxu0 0.0
        %1161 = vmatprep.subr.mxu0 0.0
        %1162 = vmatpush1.msra.mxu0 0.0
        %1163 = vmatprep.subr.mxu0 0.0
        %1164 = vmatpush1.msra.mxu0 0.0
        %1165 = vmatprep.subr.mxu0 0.0
        %1166 = vmatpush1.msra.mxu0 0.0
        %1167 = vmatprep.subr.mxu0 0.0
        %1168 = vmatpush1.msra.mxu0 0.0
        %1169 = vmatprep.subr.mxu0 0.0
        %1170 = vmatpush1.msra.mxu0 0.0
        %1171 = vmatprep.subr.mxu0 0.0
        %1172 = vmatpush1.msra.mxu0 0.0
        %1173 = vmatprep.subr.mxu0 0.0
        %1174 = vmatpush1.msra.mxu0 0.0
        %1175 = vmatprep.subr.mxu0 0.0
        %1176 = vmatpush1.msra.mxu0 0.0
        %1177 = vmatprep.subr.mxu0 0.0
        %1178 = vmatpush1.msra.mxu0 0.0
        %1179 = vmatprep.mubr.f32.mxu0 0.0
        %1180 = vmatmul.mubr.f32.gmra.mrb[0].mxu0 %v1113
        %v1181 = vpop.f32.mrb[0].mxu0
        %v1182 = vadd.f32 0.0, %v1181
        %v1183 = vpop.f32.mrb[0].mxu0
        %1184 = vdwg.mxu0
        %v1185 = vmul.f32 %v1182, %v1107
        %v1186 = vadd.f32 %v1019, %v1185
        %1187 = vrot.lane.b32.xlu0 %v774, 112
        %v1188 = vpop.permute.xlu0 %1187
        %1189 = vrot.lane.b32.xlu0 %v774, 80
        %v1190 = vpop.permute.xlu0 %1189
        %v1191 = vsel %vm861, %v1188, 0
        %v1193 = vsel %vm861, %v1190, 0
        %1195 = vmatprep.subr.mxu0 0.0
        %1196 = vmatpush1.xpose.msra.mxu0 %v1193
        %1197 = vmatprep.subr.mxu0 0.0
        %1198 = vmatpush1.xpose.msra.mxu0 0.0
        %1199 = vmatprep.subr.mxu0 0.0
        %1200 = vmatpush1.xpose.msra.mxu0 0.0
        %1201 = vmatprep.subr.mxu0 0.0
        %1202 = vmatpush1.xpose.msra.mxu0 0.0
        %1203 = vmatprep.subr.mxu0 0.0
        %1204 = vmatpush1.xpose.msra.mxu0 0.0
        %1205 = vmatprep.subr.mxu0 0.0
        %1206 = vmatpush1.xpose.msra.mxu0 0.0
        %1207 = vmatprep.subr.mxu0 0.0
        %1208 = vmatpush1.xpose.msra.mxu0 0.0
        %1209 = vmatprep.subr.mxu0 0.0
        %1210 = vmatpush1.xpose.msra.mxu0 0.0
        %1211 = vmatprep.subr.mxu0 0.0
        %1212 = vmatpush1.xpose.msra.mxu0 0.0
        %1213 = vmatprep.subr.mxu0 0.0
        %1214 = vmatpush1.xpose.msra.mxu0 0.0
        %1215 = vmatprep.subr.mxu0 0.0
        %1216 = vmatpush1.xpose.msra.mxu0 0.0
        %1217 = vmatprep.subr.mxu0 0.0
        %1218 = vmatpush1.xpose.msra.mxu0 0.0
        %1219 = vmatprep.subr.mxu0 0.0
        %1220 = vmatpush1.xpose.msra.mxu0 0.0
        %1221 = vmatprep.subr.mxu0 0.0
        %1222 = vmatpush1.xpose.msra.mxu0 0.0
        %1223 = vmatprep.subr.mxu0 0.0
        %1224 = vmatpush1.xpose.msra.mxu0 0.0
        %1225 = vmatprep.subr.mxu0 0.0
        %1226 = vmatpush1.xpose.msra.mxu0 0.0
        %1227 = vmatprep.subr.mxu0 0.0
        %1228 = vmatpush1.xpose.msra.mxu0 0.0
        %1229 = vmatprep.subr.mxu0 0.0
        %1230 = vmatpush1.xpose.msra.mxu0 0.0
        %1231 = vmatprep.subr.mxu0 0.0
        %1232 = vmatpush1.xpose.msra.mxu0 0.0
        %1233 = vmatprep.subr.mxu0 0.0
        %1234 = vmatpush1.xpose.msra.mxu0 0.0
        %1235 = vmatprep.subr.mxu0 0.0
        %1236 = vmatpush1.xpose.msra.mxu0 0.0
        %1237 = vmatprep.subr.mxu0 0.0
        %1238 = vmatpush1.xpose.msra.mxu0 0.0
        %1239 = vmatprep.subr.mxu0 0.0
        %1240 = vmatpush1.xpose.msra.mxu0 0.0
        %1241 = vmatprep.subr.mxu0 0.0
        %1242 = vmatpush1.xpose.msra.mxu0 0.0
        %1243 = vmatprep.subr.mxu0 0.0
        %1244 = vmatpush1.xpose.msra.mxu0 0.0
        %1245 = vmatprep.subr.mxu0 0.0
        %1246 = vmatpush1.xpose.msra.mxu0 0.0
        %1247 = vmatprep.subr.mxu0 0.0
        %1248 = vmatpush1.xpose.msra.mxu0 0.0
        %1249 = vmatprep.subr.mxu0 0.0
        %1250 = vmatpush1.xpose.msra.mxu0 0.0
        %1251 = vmatprep.subr.mxu0 0.0
        %1252 = vmatpush1.xpose.msra.mxu0 0.0
        %1253 = vmatprep.subr.mxu0 0.0
        %1254 = vmatpush1.xpose.msra.mxu0 0.0
        %1255 = vmatprep.subr.mxu0 0.0
        %1256 = vmatpush1.xpose.msra.mxu0 0.0
        %1257 = vmatprep.subr.mxu0 0.0
        %1258 = vmatpush1.xpose.msra.mxu0 0.0
        %1259 = vmatprep.mubr.f32.mxu0 0.0
        %1260 = vmatmul.mubr.f32.gmra.mrb[0].mxu0 %v1191
        %v1261 = vpop.f32.mrb[0].mxu0
        %v1262 = vadd.f32 %v681, %v1261
        %v1263 = vpop.f32.mrb[0].mxu0
        %1264 = vdwg.mxu0
        %v1265 = vsel %vm861, %v1262, -inf
        %1266 = vmax.xlane.f32.xlu0 %v1265
        %v1267 = vpop.xlane.xlu0 %1266
        %v1268 = vsub.f32 %v1262, %v1267
        %v1269 = vmul.f32 %v1268, 1.442695
        %v1270 = vpow.pop %v1269
        %v1271 = vsel %vm861, %v1270, 0.0
        %1272 = vadd.xlane.f32.xlu0 %v1271
        %v1273 = vpop.xlane.xlu0 %1272
        %v1274 = vrcp.pop %v1273
        %1275 = vrot.lane.b32.xlu0 %v855, 64
        %v1276 = vpop.permute.xlu0 %1275
        %v1279 = vsel %vm861, %v1270, 0
        %1281 = vmatprep.subr.mxu0 0.0
        %1282 = vmatpush1.msra.mxu0 %v1276
        %1283 = vmatprep.subr.mxu0 0.0
        %1284 = vmatpush1.msra.mxu0 0.0
        %1285 = vmatprep.subr.mxu0 0.0
        %1286 = vmatpush1.msra.mxu0 0.0
        %1287 = vmatprep.subr.mxu0 0.0
        %1288 = vmatpush1.msra.mxu0 0.0
        %1289 = vmatprep.subr.mxu0 0.0
        %1290 = vmatpush1.msra.mxu0 0.0
        %1291 = vmatprep.subr.mxu0 0.0
        %1292 = vmatpush1.msra.mxu0 0.0
        %1293 = vmatprep.subr.mxu0 0.0
        %1294 = vmatpush1.msra.mxu0 0.0
        %1295 = vmatprep.subr.mxu0 0.0
        %1296 = vmatpush1.msra.mxu0 0.0
        %1297 = vmatprep.subr.mxu0 0.0
        %1298 = vmatpush1.msra.mxu0 0.0
        %1299 = vmatprep.subr.mxu0 0.0
        %1300 = vmatpush1.msra.mxu0 0.0
        %1301 = vmatprep.subr.mxu0 0.0
        %1302 = vmatpush1.msra.mxu0 0.0
        %1303 = vmatprep.subr.mxu0 0.0
        %1304 = vmatpush1.msra.mxu0 0.0
        %1305 = vmatprep.subr.mxu0 0.0
        %1306 = vmatpush1.msra.mxu0 0.0
        %1307 = vmatprep.subr.mxu0 0.0
        %1308 = vmatpush1.msra.mxu0 0.0
        %1309 = vmatprep.subr.mxu0 0.0
        %1310 = vmatpush1.msra.mxu0 0.0
        %1311 = vmatprep.subr.mxu0 0.0
        %1312 = vmatpush1.msra.mxu0 0.0
        %1313 = vmatprep.subr.mxu0 0.0
        %1314 = vmatpush1.msra.mxu0 0.0
        %1315 = vmatprep.subr.mxu0 0.0
        %1316 = vmatpush1.msra.mxu0 0.0
        %1317 = vmatprep.subr.mxu0 0.0
        %1318 = vmatpush1.msra.mxu0 0.0
        %1319 = vmatprep.subr.mxu0 0.0
        %1320 = vmatpush1.msra.mxu0 0.0
        %1321 = vmatprep.subr.mxu0 0.0
        %1322 = vmatpush1.msra.mxu0 0.0
        %1323 = vmatprep.subr.mxu0 0.0
        %1324 = vmatpush1.msra.mxu0 0.0
        %1325 = vmatprep.subr.mxu0 0.0
        %1326 = vmatpush1.msra.mxu0 0.0
        %1327 = vmatprep.subr.mxu0 0.0
        %1328 = vmatpush1.msra.mxu0 0.0
        %1329 = vmatprep.subr.mxu0 0.0
        %1330 = vmatpush1.msra.mxu0 0.0
        %1331 = vmatprep.subr.mxu0 0.0
        %1332 = vmatpush1.msra.mxu0 0.0
        %1333 = vmatprep.subr.mxu0 0.0
        %1334 = vmatpush1.msra.mxu0 0.0
        %1335 = vmatprep.subr.mxu0 0.0
        %1336 = vmatpush1.msra.mxu0 0.0
        %1337 = vmatprep.subr.mxu0 0.0
        %1338 = vmatpush1.msra.mxu0 0.0
        %1339 = vmatprep.subr.mxu0 0.0
        %1340 = vmatpush1.msra.mxu0 0.0
        %1341 = vmatprep.subr.mxu0 0.0
        %1342 = vmatpush1.msra.mxu0 0.0
        %1343 = vmatprep.subr.mxu0 0.0
        %1344 = vmatpush1.msra.mxu0 0.0
        %1345 = vmatprep.mubr.f32.mxu0 0.0
        %1346 = vmatmul.mubr.f32.gmra.mrb[0].mxu0 %v1279
        %v1347 = vpop.f32.mrb[0].mxu0
        %v1348 = vadd.f32 0.0, %v1347
        %v1349 = vpop.f32.mrb[0].mxu0
        %1350 = vdwg.mxu0
        %v1351 = vmul.f32 %v1348, %v1274
        %v1352 = vadd.f32 %v1186, %v1351
        %1353 = vrot.lane.b32.xlu0 %v774, 104
        %v1354 = vpop.permute.xlu0 %1353
        %1355 = vrot.lane.b32.xlu0 %v774, 72
        %v1356 = vpop.permute.xlu0 %1355
        %v1357 = vsel %vm861, %v1354, 0
        %v1359 = vsel %vm861, %v1356, 0
        %1361 = vmatprep.subr.mxu0 0.0
        %1362 = vmatpush1.xpose.msra.mxu0 %v1359
        %1363 = vmatprep.subr.mxu0 0.0
        %1364 = vmatpush1.xpose.msra.mxu0 0.0
        %1365 = vmatprep.subr.mxu0 0.0
        %1366 = vmatpush1.xpose.msra.mxu0 0.0
        %1367 = vmatprep.subr.mxu0 0.0
        %1368 = vmatpush1.xpose.msra.mxu0 0.0
        %1369 = vmatprep.subr.mxu0 0.0
        %1370 = vmatpush1.xpose.msra.mxu0 0.0
        %1371 = vmatprep.subr.mxu0 0.0
        %1372 = vmatpush1.xpose.msra.mxu0 0.0
        %1373 = vmatprep.subr.mxu0 0.0
        %1374 = vmatpush1.xpose.msra.mxu0 0.0
        %1375 = vmatprep.subr.mxu0 0.0
        %1376 = vmatpush1.xpose.msra.mxu0 0.0
        %1377 = vmatprep.subr.mxu0 0.0
        %1378 = vmatpush1.xpose.msra.mxu0 0.0
        %1379 = vmatprep.subr.mxu0 0.0
        %1380 = vmatpush1.xpose.msra.mxu0 0.0
        %1381 = vmatprep.subr.mxu0 0.0
        %1382 = vmatpush1.xpose.msra.mxu0 0.0
        %1383 = vmatprep.subr.mxu0 0.0
        %1384 = vmatpush1.xpose.msra.mxu0 0.0
        %1385 = vmatprep.subr.mxu0 0.0
        %1386 = vmatpush1.xpose.msra.mxu0 0.0
        %1387 = vmatprep.subr.mxu0 0.0
        %1388 = vmatpush1.xpose.msra.mxu0 0.0
        %1389 = vmatprep.subr.mxu0 0.0
        %1390 = vmatpush1.xpose.msra.mxu0 0.0
        %1391 = vmatprep.subr.mxu0 0.0
        %1392 = vmatpush1.xpose.msra.mxu0 0.0
        %1393 = vmatprep.subr.mxu0 0.0
        %1394 = vmatpush1.xpose.msra.mxu0 0.0
        %1395 = vmatprep.subr.mxu0 0.0
        %1396 = vmatpush1.xpose.msra.mxu0 0.0
        %1397 = vmatprep.subr.mxu0 0.0
        %1398 = vmatpush1.xpose.msra.mxu0 0.0
        %1399 = vmatprep.subr.mxu0 0.0
        %1400 = vmatpush1.xpose.msra.mxu0 0.0
        %1401 = vmatprep.subr.mxu0 0.0
        %1402 = vmatpush1.xpose.msra.mxu0 0.0
        %1403 = vmatprep.subr.mxu0 0.0
        %1404 = vmatpush1.xpose.msra.mxu0 0.0
        %1405 = vmatprep.subr.mxu0 0.0
        %1406 = vmatpush1.xpose.msra.mxu0 0.0
        %1407 = vmatprep.subr.mxu0 0.0
        %1408 = vmatpush1.xpose.msra.mxu0 0.0
        %1409 = vmatprep.subr.mxu0 0.0
        %1410 = vmatpush1.xpose.msra.mxu0 0.0
        %1411 = vmatprep.subr.mxu0 0.0
        %1412 = vmatpush1.xpose.msra.mxu0 0.0
        %1413 = vmatprep.subr.mxu0 0.0
        %1414 = vmatpush1.xpose.msra.mxu0 0.0
        %1415 = vmatprep.subr.mxu0 0.0
        %1416 = vmatpush1.xpose.msra.mxu0 0.0
        %1417 = vmatprep.subr.mxu0 0.0
        %1418 = vmatpush1.xpose.msra.mxu0 0.0
        %1419 = vmatprep.subr.mxu0 0.0
        %1420 = vmatpush1.xpose.msra.mxu0 0.0
        %1421 = vmatprep.subr.mxu0 0.0
        %1422 = vmatpush1.xpose.msra.mxu0 0.0
        %1423 = vmatprep.subr.mxu0 0.0
        %1424 = vmatpush1.xpose.msra.mxu0 0.0
        %1425 = vmatprep.mubr.f32.mxu0 0.0
        %1426 = vmatmul.mubr.f32.gmra.mrb[0].mxu0 %v1357
        %v1427 = vpop.f32.mrb[0].mxu0
        %v1428 = vadd.f32 %v681, %v1427
        %v1429 = vpop.f32.mrb[0].mxu0
        %1430 = vdwg.mxu0
        %v1431 = vsel %vm861, %v1428, -inf
        %1432 = vmax.xlane.f32.xlu0 %v1431
        %v1433 = vpop.xlane.xlu0 %1432
        %v1434 = vsub.f32 %v1428, %v1433
        %v1435 = vmul.f32 %v1434, 1.442695
        %v1436 = vpow.pop %v1435
        %v1437 = vsel %vm861, %v1436, 0.0
        %1438 = vadd.xlane.f32.xlu0 %v1437
        %v1439 = vpop.xlane.xlu0 %1438
        %v1440 = vrcp.pop %v1439
        %1441 = vrot.lane.b32.xlu0 %v855, 32
        %v1442 = vpop.permute.xlu0 %1441
        %v1445 = vsel %vm861, %v1436, 0
        %1447 = vmatprep.subr.mxu0 0.0
        %1448 = vmatpush1.msra.mxu0 %v1442
        %1449 = vmatprep.subr.mxu0 0.0
        %1450 = vmatpush1.msra.mxu0 0.0
        %1451 = vmatprep.subr.mxu0 0.0
        %1452 = vmatpush1.msra.mxu0 0.0
        %1453 = vmatprep.subr.mxu0 0.0
        %1454 = vmatpush1.msra.mxu0 0.0
        %1455 = vmatprep.subr.mxu0 0.0
        %1456 = vmatpush1.msra.mxu0 0.0
        %1457 = vmatprep.subr.mxu0 0.0
        %1458 = vmatpush1.msra.mxu0 0.0
        %1459 = vmatprep.subr.mxu0 0.0
        %1460 = vmatpush1.msra.mxu0 0.0
        %1461 = vmatprep.subr.mxu0 0.0
        %1462 = vmatpush1.msra.mxu0 0.0
        %1463 = vmatprep.subr.mxu0 0.0
        %1464 = vmatpush1.msra.mxu0 0.0
        %1465 = vmatprep.subr.mxu0 0.0
        %1466 = vmatpush1.msra.mxu0 0.0
        %1467 = vmatprep.subr.mxu0 0.0
        %1468 = vmatpush1.msra.mxu0 0.0
        %1469 = vmatprep.subr.mxu0 0.0
        %1470 = vmatpush1.msra.mxu0 0.0
        %1471 = vmatprep.subr.mxu0 0.0
        %1472 = vmatpush1.msra.mxu0 0.0
        %1473 = vmatprep.subr.mxu0 0.0
        %1474 = vmatpush1.msra.mxu0 0.0
        %1475 = vmatprep.subr.mxu0 0.0
        %1476 = vmatpush1.msra.mxu0 0.0
        %1477 = vmatprep.subr.mxu0 0.0
        %1478 = vmatpush1.msra.mxu0 0.0
        %1479 = vmatprep.subr.mxu0 0.0
        %1480 = vmatpush1.msra.mxu0 0.0
        %1481 = vmatprep.subr.mxu0 0.0
        %1482 = vmatpush1.msra.mxu0 0.0
        %1483 = vmatprep.subr.mxu0 0.0
        %1484 = vmatpush1.msra.mxu0 0.0
        %1485 = vmatprep.subr.mxu0 0.0
        %1486 = vmatpush1.msra.mxu0 0.0
        %1487 = vmatprep.subr.mxu0 0.0
        %1488 = vmatpush1.msra.mxu0 0.0
        %1489 = vmatprep.subr.mxu0 0.0
        %1490 = vmatpush1.msra.mxu0 0.0
        %1491 = vmatprep.subr.mxu0 0.0
        %1492 = vmatpush1.msra.mxu0 0.0
        %1493 = vmatprep.subr.mxu0 0.0
        %1494 = vmatpush1.msra.mxu0 0.0
        %1495 = vmatprep.subr.mxu0 0.0
        %1496 = vmatpush1.msra.mxu0 0.0
        %1497 = vmatprep.subr.mxu0 0.0
        %1498 = vmatpush1.msra.mxu0 0.0
        %1499 = vmatprep.subr.mxu0 0.0
        %1500 = vmatpush1.msra.mxu0 0.0
        %1501 = vmatprep.subr.mxu0 0.0
        %1502 = vmatpush1.msra.mxu0 0.0
        %1503 = vmatprep.subr.mxu0 0.0
        %1504 = vmatpush1.msra.mxu0 0.0
        %1505 = vmatprep.subr.mxu0 0.0
        %1506 = vmatpush1.msra.mxu0 0.0
        %1507 = vmatprep.subr.mxu0 0.0
        %1508 = vmatpush1.msra.mxu0 0.0
        %1509 = vmatprep.subr.mxu0 0.0
        %1510 = vmatpush1.msra.mxu0 0.0
        %1511 = vmatprep.mubr.f32.mxu0 0.0
        %1512 = vmatmul.mubr.f32.gmra.mrb[0].mxu0 %v1445
        %v1513 = vpop.f32.mrb[0].mxu0
        %v1514 = vadd.f32 0.0, %v1513
        %v1515 = vpop.f32.mrb[0].mxu0
        %1516 = vdwg.mxu0
        %v1517 = vmul.f32 %v1514, %v1440
        %v1518 = vadd.f32 %v1352, %v1517
        %v1519 = vld [vmem:[%s7] sm:$0x1]
        %v1521 = vlaneseq
        %v1522 = vshrl.u32 %v1521, 7
        %v1523 = vsub.s32 0, %v1522
        %v1524 = vrot.slane %v1519, %v1523
        %v1526 = vadd.f32 %v1518, %v1524
        %v1527 = vadd.f32 %v691, %v1526
        %v1528 = vld [vmem:[%s8] sm:$0x1]
        %v1529 = vld [vmem:[%s9] sm:$0x1]
        %v1530 = vsel %vm703, %v1527, 0.0
        %1531 = vadd.xlane.f32.xlu0 %v1530
        %v1532 = vpop.xlane.xlu0 %1531
        %v1533 = vrcp.pop 32.0
        %v1534 = vmul.f32 %v1532, %v1533
        %v1535 = vsub.f32 %v1527, %v1534
        %v1536 = vmul.f32 %v1535, %v1535
        %v1537 = vsel %vm703, %v1536, 0.0
        %1538 = vadd.xlane.f32.xlu0 %v1537
        %v1539 = vpop.xlane.xlu0 %1538
        %v1540 = vmul.f32 %v1539, %v1533
        %v1541 = vadd.f32 %v1540, 1e-05
        %v1542 = vrsqrt.pop %v1541
        %v1543 = vmul.f32 %v1535, %v1542
        %v1545 = vlaneseq
        %v1546 = vshrl.u32 %v1545, 7
        %v1547 = vsub.s32 0, %v1546
        %v1548 = vrot.slane %v1528, %v1547
        %v1550 = vmul.f32 %v1543, %v1548
        %v1552 = vlaneseq
        %v1553 = vshrl.u32 %v1552, 7
        %v1554 = vsub.s32 0, %v1553
        %v1555 = vrot.slane %v1529, %v1554
        %v1557 = vadd.f32 %v1550, %v1555
        %v1558 = vld [vmem:[%s10] sm:$0xff]
        %v1559 = vld [vmem:[%s10 + $0x8] sm:$0xff]
        %v1560 = vld [vmem:[%s10 + $0x10] sm:$0xff]
        %v1561 = vld [vmem:[%s10 + $0x18] sm:$0xff]
        %v1562 = vld [vmem:[%s11] sm:$0x1]
        %v1564 = vlaneseq
        %v1565 = vshrl.u32 %v1564, 7
        %v1566 = vsub.s32 0, %v1565
        %v1567 = vrot.slane %v1562, %v1566
        %v1570 = vsel %vm703, %v1557, 0
        %1572 = vmatprep.subr.mxu0 0.0
        %1573 = vmatpush1.msra.mxu0 %v1558
        %1574 = vmatprep.subr.mxu0 0.0
        %1575 = vmatpush1.msra.mxu0 %v1559
        %1576 = vmatprep.subr.mxu0 0.0
        %1577 = vmatpush1.msra.mxu0 %v1560
        %1578 = vmatprep.subr.mxu0 0.0
        %1579 = vmatpush1.msra.mxu0 %v1561
        %1580 = vmatprep.subr.mxu0 0.0
        %1581 = vmatpush1.msra.mxu0 0.0
        %1582 = vmatprep.subr.mxu0 0.0
        %1583 = vmatpush1.msra.mxu0 0.0
        %1584 = vmatprep.subr.mxu0 0.0
        %1585 = vmatpush1.msra.mxu0 0.0
        %1586 = vmatprep.subr.mxu0 0.0
        %1587 = vmatpush1.msra.mxu0 0.0
        %1588 = vmatprep.subr.mxu0 0.0
        %1589 = vmatpush1.msra.mxu0 0.0
        %1590 = vmatprep.subr.mxu0 0.0
        %1591 = vmatpush1.msra.mxu0 0.0
        %1592 = vmatprep.subr.mxu0 0.0
        %1593 = vmatpush1.msra.mxu0 0.0
        %1594 = vmatprep.subr.mxu0 0.0
        %1595 = vmatpush1.msra.mxu0 0.0
        %1596 = vmatprep.subr.mxu0 0.0
        %1597 = vmatpush1.msra.mxu0 0.0
        %1598 = vmatprep.subr.mxu0 0.0
        %1599 = vmatpush1.msra.mxu0 0.0
        %1600 = vmatprep.subr.mxu0 0.0
        %1601 = vmatpush1.msra.mxu0 0.0
        %1602 = vmatprep.subr.mxu0 0.0
        %1603 = vmatpush1.msra.mxu0 0.0
        %1604 = vmatprep.subr.mxu0 0.0
        %1605 = vmatpush1.msra.mxu0 0.0
        %1606 = vmatprep.subr.mxu0 0.0
        %1607 = vmatpush1.msra.mxu0 0.0
        %1608 = vmatprep.subr.mxu0 0.0
        %1609 = vmatpush1.msra.mxu0 0.0
        %1610 = vmatprep.subr.mxu0 0.0
        %1611 = vmatpush1.msra.mxu0 0.0
        %1612 = vmatprep.subr.mxu0 0.0
        %1613 = vmatpush1.msra.mxu0 0.0
        %1614 = vmatprep.subr.mxu0 0.0
        %1615 = vmatpush1.msra.mxu0 0.0
        %1616 = vmatprep.subr.mxu0 0.0
        %1617 = vmatpush1.msra.mxu0 0.0
        %1618 = vmatprep.subr.mxu0 0.0
        %1619 = vmatpush1.msra.mxu0 0.0
        %1620 = vmatprep.subr.mxu0 0.0
        %1621 = vmatpush1.msra.mxu0 0.0
        %1622 = vmatprep.subr.mxu0 0.0
        %1623 = vmatpush1.msra.mxu0 0.0
        %1624 = vmatprep.subr.mxu0 0.0
        %1625 = vmatpush1.msra.mxu0 0.0
        %1626 = vmatprep.subr.mxu0 0.0
        %1627 = vmatpush1.msra.mxu0 0.0
        %1628 = vmatprep.subr.mxu0 0.0
        %1629 = vmatpush1.msra.mxu0 0.0
        %1630 = vmatprep.subr.mxu0 0.0
        %1631 = vmatpush1.msra.mxu0 0.0
        %1632 = vmatprep.subr.mxu0 0.0
        %1633 = vmatpush1.msra.mxu0 0.0
        %1634 = vmatprep.subr.mxu0 0.0
        %1635 = vmatpush1.msra.mxu0 0.0
        %1636 = vmatprep.mubr.f32.mxu0 0.0
        %1637 = vmatmul.mubr.f32.gmra.mrb[0].mxu0 %v1570
        %v1638 = vpop.f32.mrb[0].mxu0
        %v1639 = vadd.f32 %v1567, %v1638
        %v1640 = vpop.f32.mrb[0].mxu0
        %1641 = vdwg.mxu0
        %v1642 = vmax.f32 %v1639, 0.0
        %v1643 = vld [vmem:[%s12] sm:$0xff]
        %v1644 = vld [vmem:[%s12 + $0x8] sm:$0xff]
        %v1645 = vld [vmem:[%s12 + $0x10] sm:$0xff]
        %v1646 = vld [vmem:[%s12 + $0x18] sm:$0xff]
        %v1647 = vld [vmem:[%s12 + $0x20] sm:$0xff]
        %v1648 = vld [vmem:[%s12 + $0x28] sm:$0xff]
        %v1649 = vld [vmem:[%s12 + $0x30] sm:$0xff]
        %v1650 = vld [vmem:[%s12 + $0x38] sm:$0xff]
        %v1651 = vld [vmem:[%s13] sm:$0x1]
        %v1653 = vlaneseq
        %v1654 = vshrl.u32 %v1653, 7
        %v1655 = vsub.s32 0, %v1654
        %v1656 = vrot.slane %v1651, %v1655
        %vm1658 = vcmask 523264
        %v1660 = vsel %vm1658, %v1642, 0
        %1662 = vmatprep.subr.mxu0 0.0
        %1663 = vmatpush1.msra.mxu0 %v1643
        %1664 = vmatprep.subr.mxu0 0.0
        %1665 = vmatpush1.msra.mxu0 %v1644
        %1666 = vmatprep.subr.mxu0 0.0
        %1667 = vmatpush1.msra.mxu0 %v1645
        %1668 = vmatprep.subr.mxu0 0.0
        %1669 = vmatpush1.msra.mxu0 %v1646
        %1670 = vmatprep.subr.mxu0 0.0
        %1671 = vmatpush1.msra.mxu0 %v1647
        %1672 = vmatprep.subr.mxu0 0.0
        %1673 = vmatpush1.msra.mxu0 %v1648
        %1674 = vmatprep.subr.mxu0 0.0
        %1675 = vmatpush1.msra.mxu0 %v1649
        %1676 = vmatprep.subr.mxu0 0.0
        %1677 = vmatpush1.msra.mxu0 %v1650
        %1678 = vmatprep.subr.mxu0 0.0
        %1679 = vmatpush1.msra.mxu0 0.0
        %1680 = vmatprep.subr.mxu0 0.0
        %1681 = vmatpush1.msra.mxu0 0.0
        %1682 = vmatprep.subr.mxu0 0.0
        %1683 = vmatpush1.msra.mxu0 0.0
        %1684 = vmatprep.subr.mxu0 0.0
        %1685 = vmatpush1.msra.mxu0 0.0
        %1686 = vmatprep.subr.mxu0 0.0
        %1687 = vmatpush1.msra.mxu0 0.0
        %1688 = vmatprep.subr.mxu0 0.0
        %1689 = vmatpush1.msra.mxu0 0.0
        %1690 = vmatprep.subr.mxu0 0.0
        %1691 = vmatpush1.msra.mxu0 0.0
        %1692 = vmatprep.subr.mxu0 0.0
        %1693 = vmatpush1.msra.mxu0 0.0
        %1694 = vmatprep.subr.mxu0 0.0
        %1695 = vmatpush1.msra.mxu0 0.0
        %1696 = vmatprep.subr.mxu0 0.0
        %1697 = vmatpush1.msra.mxu0 0.0
        %1698 = vmatprep.subr.mxu0 0.0
        %1699 = vmatpush1.msra.mxu0 0.0
        %1700 = vmatprep.subr.mxu0 0.0
        %1701 = vmatpush1.msra.mxu0 0.0
        %1702 = vmatprep.subr.mxu0 0.0
        %1703 = vmatpush1.msra.mxu0 0.0
        %1704 = vmatprep.subr.mxu0 0.0
        %1705 = vmatpush1.msra.mxu0 0.0
        %1706 = vmatprep.subr.mxu0 0.0
        %1707 = vmatpush1.msra.mxu0 0.0
        %1708 = vmatprep.subr.mxu0 0.0
        %1709 = vmatpush1.msra.mxu0 0.0
        %1710 = vmatprep.subr.mxu0 0.0
        %1711 = vmatpush1.msra.mxu0 0.0
        %1712 = vmatprep.subr.mxu0 0.0
        %1713 = vmatpush1.msra.mxu0 0.0
        %1714 = vmatprep.subr.mxu0 0.0
        %1715 = vmatpush1.msra.mxu0 0.0
        %1716 = vmatprep.subr.mxu0 0.0
        %1717 = vmatpush1.msra.mxu0 0.0
        %1718 = vmatprep.subr.mxu0 0.0
        %1719 = vmatpush1.msra.mxu0 0.0
        %1720 = vmatprep.subr.mxu0 0.0
        %1721 = vmatpush1.msra.mxu0 0.0
        %1722 = vmatprep.subr.mxu0 0.0
        %1723 = vmatpush1.msra.mxu0 0.0
        %1724 = vmatprep.subr.mxu0 0.0
        %1725 = vmatpush1.msra.mxu0 0.0
        %1726 = vmatprep.mubr.f32.mxu0 0.0
        %1727 = vmatmul.mubr.f32.gmra.mrb[0].mxu0 %v1660
        %v1728 = vpop.f32.mrb[0].mxu0
        %v1729 = vadd.f32 %v1656, %v1728
        %v1730 = vpop.f32.mrb[0].mxu0
        %1731 = vdwg.mxu0
        %v1732 = vadd.f32 %v1557, %v1729
        %v1733 = vld [vmem:[%s14] sm:$0x1]
        %v1734 = vld [vmem:[%s15] sm:$0x1]
        %v1735 = vsel %vm703, %v1732, 0.0
        %1736 = vadd.xlane.f32.xlu0 %v1735
        %v1737 = vpop.xlane.xlu0 %1736
        %v1738 = vmul.f32 %v1737, %v1533
        %v1739 = vsub.f32 %v1732, %v1738
        %v1740 = vmul.f32 %v1739, %v1739
        %v1741 = vsel %vm703, %v1740, 0.0
        %1742 = vadd.xlane.f32.xlu0 %v1741
        %v1743 = vpop.xlane.xlu0 %1742
        %v1744 = vmul.f32 %v1743, %v1533
        %v1745 = vadd.f32 %v1744, 1e-05
        %v1746 = vrsqrt.pop %v1745
        %v1747 = vmul.f32 %v1739, %v1746
        %v1749 = vlaneseq
        %v1750 = vshrl.u32 %v1749, 7
        %v1751 = vsub.s32 0, %v1750
        %v1752 = vrot.slane %v1733, %v1751
        %v1754 = vmul.f32 %v1747, %v1752
        %v1756 = vlaneseq
        %v1757 = vshrl.u32 %v1756, 7
        %v1758 = vsub.s32 0, %v1757
        %v1759 = vrot.slane %v1734, %v1758
        %v1761 = vadd.f32 %v1754, %v1759
        %s1762 = scalar_lea.vmem %s3, 32
        %v1763 = vld [vmem:[%s1762] sm:$0xff]
        %v1764 = vld [vmem:[%s1762 + $0x8] sm:$0xff]
        %v1765 = vld [vmem:[%s1762 + $0x10] sm:$0xff]
        %v1766 = vld [vmem:[%s1762 + $0x18] sm:$0xff]
        %s1767 = scalar_lea.vmem %s4, 1
        %v1768 = vld [vmem:[%s1767] sm:$0x1]
        %v1770 = vlaneseq
        %v1771 = vshrl.u32 %v1770, 7
        %v1772 = vsub.s32 0, %v1771
        %v1773 = vrot.slane %v1768, %v1772
        %v1776 = vsel %vm703, %v1761, 0
        %1778 = vmatprep.subr.mxu0 0.0
        %1779 = vmatpush1.msra.mxu0 %v1763
        %1780 = vmatprep.subr.mxu0 0.0
        %1781 = vmatpush1.msra.mxu0 %v1764
        %1782 = vmatprep.subr.mxu0 0.0
        %1783 = vmatpush1.msra.mxu0 %v1765
        %1784 = vmatprep.subr.mxu0 0.0
        %1785 = vmatpush1.msra.mxu0 %v1766
        %1786 = vmatprep.subr.mxu0 0.0
        %1787 = vmatpush1.msra.mxu0 0.0
        %1788 = vmatprep.subr.mxu0 0.0
        %1789 = vmatpush1.msra.mxu0 0.0
        %1790 = vmatprep.subr.mxu0 0.0
        %1791 = vmatpush1.msra.mxu0 0.0
        %1792 = vmatprep.subr.mxu0 0.0
        %1793 = vmatpush1.msra.mxu0 0.0
        %1794 = vmatprep.subr.mxu0 0.0
        %1795 = vmatpush1.msra.mxu0 0.0
        %1796 = vmatprep.subr.mxu0 0.0
        %1797 = vmatpush1.msra.mxu0 0.0
        %1798 = vmatprep.subr.mxu0 0.0
        %1799 = vmatpush1.msra.mxu0 0.0
        %1800 = vmatprep.subr.mxu0 0.0
        %1801 = vmatpush1.msra.mxu0 0.0
        %1802 = vmatprep.subr.mxu0 0.0
        %1803 = vmatpush1.msra.mxu0 0.0
        %1804 = vmatprep.subr.mxu0 0.0
        %1805 = vmatpush1.msra.mxu0 0.0
        %1806 = vmatprep.subr.mxu0 0.0
        %1807 = vmatpush1.msra.mxu0 0.0
        %1808 = vmatprep.subr.mxu0 0.0
        %1809 = vmatpush1.msra.mxu0 0.0
        %1810 = vmatprep.subr.mxu0 0.0
        %1811 = vmatpush1.msra.mxu0 0.0
        %1812 = vmatprep.subr.mxu0 0.0
        %1813 = vmatpush1.msra.mxu0 0.0
        %1814 = vmatprep.subr.mxu0 0.0
        %1815 = vmatpush1.msra.mxu0 0.0
        %1816 = vmatprep.subr.mxu0 0.0
        %1817 = vmatpush1.msra.mxu0 0.0
        %1818 = vmatprep.subr.mxu0 0.0
        %1819 = vmatpush1.msra.mxu0 0.0
        %1820 = vmatprep.subr.mxu0 0.0
        %1821 = vmatpush1.msra.mxu0 0.0
        %1822 = vmatprep.subr.mxu0 0.0
        %1823 = vmatpush1.msra.mxu0 0.0
        %1824 = vmatprep.subr.mxu0 0.0
        %1825 = vmatpush1.msra.mxu0 0.0
        %1826 = vmatprep.subr.mxu0 0.0
        %1827 = vmatpush1.msra.mxu0 0.0
        %1828 = vmatprep.subr.mxu0 0.0
        %1829 = vmatpush1.msra.mxu0 0.0
        %1830 = vmatprep.subr.mxu0 0.0
        %1831 = vmatpush1.msra.mxu0 0.0
        %1832 = vmatprep.subr.mxu0 0.0
        %1833 = vmatpush1.msra.mxu0 0.0
        %1834 = vmatprep.subr.mxu0 0.0
        %1835 = vmatpush1.msra.mxu0 0.0
        %1836 = vmatprep.subr.mxu0 0.0
        %1837 = vmatpush1.msra.mxu0 0.0
        %1838 = vmatprep.subr.mxu0 0.0
        %1839 = vmatpush1.msra.mxu0 0.0
        %1840 = vmatprep.subr.mxu0 0.0
        %1841 = vmatpush1.msra.mxu0 0.0
        %1842 = vmatprep.mubr.f32.mxu0 0.0
        %1843 = vmatmul.mubr.f32.gmra.mrb[0].mxu0 %v1776
        %v1844 = vpop.f32.mrb[0].mxu0
        %v1845 = vadd.f32 %v1773, %v1844
        %v1846 = vpop.f32.mrb[0].mxu0
        %1847 = vdwg.mxu0
        %s1848 = scalar_lea.vmem %s5, 32
        %v1849 = vld [vmem:[%s1848] sm:$0xff]
        %v1850 = vld [vmem:[%s1848 + $0x8] sm:$0xff]
        %v1851 = vld [vmem:[%s1848 + $0x10] sm:$0xff]
        %v1852 = vld [vmem:[%s1848 + $0x18] sm:$0xff]
        %s1853 = scalar_lea.vmem %s6, 1
        %v1854 = vld [vmem:[%s1853] sm:$0x1]
        %v1856 = vlaneseq
        %v1857 = vshrl.u32 %v1856, 7
        %v1858 = vsub.s32 0, %v1857
        %v1859 = vrot.slane %v1854, %v1858
        %1861 = vmatprep.subr.mxu0 0.0
        %1862 = vmatpush1.msra.mxu0 %v1849
        %1863 = vmatprep.subr.mxu0 0.0
        %1864 = vmatpush1.msra.mxu0 %v1850
        %1865 = vmatprep.subr.mxu0 0.0
        %1866 = vmatpush1.msra.mxu0 %v1851
        %1867 = vmatprep.subr.mxu0 0.0
        %1868 = vmatpush1.msra.mxu0 %v1852
        %1869 = vmatprep.subr.mxu0 0.0
        %1870 = vmatpush1.msra.mxu0 0.0
        %1871 = vmatprep.subr.mxu0 0.0
        %1872 = vmatpush1.msra.mxu0 0.0
        %1873 = vmatprep.subr.mxu0 0.0
        %1874 = vmatpush1.msra.mxu0 0.0
        %1875 = vmatprep.subr.mxu0 0.0
        %1876 = vmatpush1.msra.mxu0 0.0
        %1877 = vmatprep.subr.mxu0 0.0
        %1878 = vmatpush1.msra.mxu0 0.0
        %1879 = vmatprep.subr.mxu0 0.0
        %1880 = vmatpush1.msra.mxu0 0.0
        %1881 = vmatprep.subr.mxu0 0.0
        %1882 = vmatpush1.msra.mxu0 0.0
        %1883 = vmatprep.subr.mxu0 0.0
        %1884 = vmatpush1.msra.mxu0 0.0
        %1885 = vmatprep.subr.mxu0 0.0
        %1886 = vmatpush1.msra.mxu0 0.0
        %1887 = vmatprep.subr.mxu0 0.0
        %1888 = vmatpush1.msra.mxu0 0.0
        %1889 = vmatprep.subr.mxu0 0.0
        %1890 = vmatpush1.msra.mxu0 0.0
        %1891 = vmatprep.subr.mxu0 0.0
        %1892 = vmatpush1.msra.mxu0 0.0
        %1893 = vmatprep.subr.mxu0 0.0
        %1894 = vmatpush1.msra.mxu0 0.0
        %1895 = vmatprep.subr.mxu0 0.0
        %1896 = vmatpush1.msra.mxu0 0.0
        %1897 = vmatprep.subr.mxu0 0.0
        %1898 = vmatpush1.msra.mxu0 0.0
        %1899 = vmatprep.subr.mxu0 0.0
        %1900 = vmatpush1.msra.mxu0 0.0
        %1901 = vmatprep.subr.mxu0 0.0
        %1902 = vmatpush1.msra.mxu0 0.0
        %1903 = vmatprep.subr.mxu0 0.0
        %1904 = vmatpush1.msra.mxu0 0.0
        %1905 = vmatprep.subr.mxu0 0.0
        %1906 = vmatpush1.msra.mxu0 0.0
        %1907 = vmatprep.subr.mxu0 0.0
        %1908 = vmatpush1.msra.mxu0 0.0
        %1909 = vmatprep.subr.mxu0 0.0
        %1910 = vmatpush1.msra.mxu0 0.0
        %1911 = vmatprep.subr.mxu0 0.0
        %1912 = vmatpush1.msra.mxu0 0.0
        %1913 = vmatprep.subr.mxu0 0.0
        %1914 = vmatpush1.msra.mxu0 0.0
        %1915 = vmatprep.subr.mxu0 0.0
        %1916 = vmatpush1.msra.mxu0 0.0
        %1917 = vmatprep.subr.mxu0 0.0
        %1918 = vmatpush1.msra.mxu0 0.0
        %1919 = vmatprep.subr.mxu0 0.0
        %1920 = vmatpush1.msra.mxu0 0.0
        %1921 = vmatprep.subr.mxu0 0.0
        %1922 = vmatpush1.msra.mxu0 0.0
        %1923 = vmatprep.subr.mxu0 0.0
        %1924 = vmatpush1.msra.mxu0 0.0
        %1925 = vmatprep.mubr.f32.mxu0 0.0
        %1926 = vmatmul.mubr.f32.gmra.mrb[0].mxu0 %v1776
        %v1927 = vpop.f32.mrb[0].mxu0
        %v1928 = vadd.f32 %v1859, %v1927
        %v1929 = vpop.f32.mrb[0].mxu0
        %1930 = vdwg.mxu0
        %1932 = vrot.lane.b32.xlu0 %v1845, 96
        %v1933 = vpop.permute.xlu0 %1932
        %v1934 = vsel %vm861, %v1845, 0
        %v1936 = vsel %vm861, %v1933, 0
        %1938 = vmatprep.subr.mxu0 0.0
        %1939 = vmatpush1.xpose.msra.mxu0 %v1936
        %1940 = vmatprep.subr.mxu0 0.0
        %1941 = vmatpush1.xpose.msra.mxu0 0.0
        %1942 = vmatprep.subr.mxu0 0.0
        %1943 = vmatpush1.xpose.msra.mxu0 0.0
        %1944 = vmatprep.subr.mxu0 0.0
        %1945 = vmatpush1.xpose.msra.mxu0 0.0
        %1946 = vmatprep.subr.mxu0 0.0
        %1947 = vmatpush1.xpose.msra.mxu0 0.0
        %1948 = vmatprep.subr.mxu0 0.0
        %1949 = vmatpush1.xpose.msra.mxu0 0.0
        %1950 = vmatprep.subr.mxu0 0.0
        %1951 = vmatpush1.xpose.msra.mxu0 0.0
        %1952 = vmatprep.subr.mxu0 0.0
        %1953 = vmatpush1.xpose.msra.mxu0 0.0
        %1954 = vmatprep.subr.mxu0 0.0
        %1955 = vmatpush1.xpose.msra.mxu0 0.0
        %1956 = vmatprep.subr.mxu0 0.0
        %1957 = vmatpush1.xpose.msra.mxu0 0.0
        %1958 = vmatprep.subr.mxu0 0.0
        %1959 = vmatpush1.xpose.msra.mxu0 0.0
        %1960 = vmatprep.subr.mxu0 0.0
        %1961 = vmatpush1.xpose.msra.mxu0 0.0
        %1962 = vmatprep.subr.mxu0 0.0
        %1963 = vmatpush1.xpose.msra.mxu0 0.0
        %1964 = vmatprep.subr.mxu0 0.0
        %1965 = vmatpush1.xpose.msra.mxu0 0.0
        %1966 = vmatprep.subr.mxu0 0.0
        %1967 = vmatpush1.xpose.msra.mxu0 0.0
        %1968 = vmatprep.subr.mxu0 0.0
        %1969 = vmatpush1.xpose.msra.mxu0 0.0
        %1970 = vmatprep.subr.mxu0 0.0
        %1971 = vmatpush1.xpose.msra.mxu0 0.0
        %1972 = vmatprep.subr.mxu0 0.0
        %1973 = vmatpush1.xpose.msra.mxu0 0.0
        %1974 = vmatprep.subr.mxu0 0.0
        %1975 = vmatpush1.xpose.msra.mxu0 0.0
        %1976 = vmatprep.subr.mxu0 0.0
        %1977 = vmatpush1.xpose.msra.mxu0 0.0
        %1978 = vmatprep.subr.mxu0 0.0
        %1979 = vmatpush1.xpose.msra.mxu0 0.0
        %1980 = vmatprep.subr.mxu0 0.0
        %1981 = vmatpush1.xpose.msra.mxu0 0.0
        %1982 = vmatprep.subr.mxu0 0.0
        %1983 = vmatpush1.xpose.msra.mxu0 0.0
        %1984 = vmatprep.subr.mxu0 0.0
        %1985 = vmatpush1.xpose.msra.mxu0 0.0
        %1986 = vmatprep.subr.mxu0 0.0
        %1987 = vmatpush1.xpose.msra.mxu0 0.0
        %1988 = vmatprep.subr.mxu0 0.0
        %1989 = vmatpush1.xpose.msra.mxu0 0.0
        %1990 = vmatprep.subr.mxu0 0.0
        %1991 = vmatpush1.xpose.msra.mxu0 0.0
        %1992 = vmatprep.subr.mxu0 0.0
        %1993 = vmatpush1.xpose.msra.mxu0 0.0
        %1994 = vmatprep.subr.mxu0 0.0
        %1995 = vmatpush1.xpose.msra.mxu0 0.0
        %1996 = vmatprep.subr.mxu0 0.0
        %1997 = vmatpush1.xpose.msra.mxu0 0.0
        %1998 = vmatprep.subr.mxu0 0.0
        %1999 = vmatpush1.xpose.msra.mxu0 0.0
        %2000 = vmatprep.subr.mxu0 0.0
        %2001 = vmatpush1.xpose.msra.mxu0 0.0
        %2002 = vmatprep.mubr.f32.mxu0 0.0
        %2003 = vmatmul.mubr.f32.gmra.mrb[0].mxu0 %v1934
        %v2004 = vpop.f32.mrb[0].mxu0
        %v2005 = vadd.f32 %v681, %v2004
        %v2006 = vpop.f32.mrb[0].mxu0
        %2007 = vdwg.mxu0
        %v2008 = vsel %vm861, %v2005, -inf
        %2009 = vmax.xlane.f32.xlu0 %v2008
        %v2010 = vpop.xlane.xlu0 %2009
        %v2011 = vsub.f32 %v2005, %v2010
        %v2012 = vmul.f32 %v2011, 1.442695
        %v2013 = vpow.pop %v2012
        %v2014 = vsel %vm861, %v2013, 0.0
        %2015 = vadd.xlane.f32.xlu0 %v2014
        %v2016 = vpop.xlane.xlu0 %2015
        %v2017 = vrcp.pop %v2016
        %v2019 = vsel %vm861, %v2013, 0
        %2021 = vmatprep.subr.mxu0 0.0
        %2022 = vmatpush1.msra.mxu0 %v1928
        %2023 = vmatprep.subr.mxu0 0.0
        %2024 = vmatpush1.msra.mxu0 0.0
        %2025 = vmatprep.subr.mxu0 0.0
        %2026 = vmatpush1.msra.mxu0 0.0
        %2027 = vmatprep.subr.mxu0 0.0
        %2028 = vmatpush1.msra.mxu0 0.0
        %2029 = vmatprep.subr.mxu0 0.0
        %2030 = vmatpush1.msra.mxu0 0.0
        %2031 = vmatprep.subr.mxu0 0.0
        %2032 = vmatpush1.msra.mxu0 0.0
        %2033 = vmatprep.subr.mxu0 0.0
        %2034 = vmatpush1.msra.mxu0 0.0
        %2035 = vmatprep.subr.mxu0 0.0
        %2036 = vmatpush1.msra.mxu0 0.0
        %2037 = vmatprep.subr.mxu0 0.0
        %2038 = vmatpush1.msra.mxu0 0.0
        %2039 = vmatprep.subr.mxu0 0.0
        %2040 = vmatpush1.msra.mxu0 0.0
        %2041 = vmatprep.subr.mxu0 0.0
        %2042 = vmatpush1.msra.mxu0 0.0
        %2043 = vmatprep.subr.mxu0 0.0
        %2044 = vmatpush1.msra.mxu0 0.0
        %2045 = vmatprep.subr.mxu0 0.0
        %2046 = vmatpush1.msra.mxu0 0.0
        %2047 = vmatprep.subr.mxu0 0.0
        %2048 = vmatpush1.msra.mxu0 0.0
        %2049 = vmatprep.subr.mxu0 0.0
        %2050 = vmatpush1.msra.mxu0 0.0
        %2051 = vmatprep.subr.mxu0 0.0
        %2052 = vmatpush1.msra.mxu0 0.0
        %2053 = vmatprep.subr.mxu0 0.0
        %2054 = vmatpush1.msra.mxu0 0.0
        %2055 = vmatprep.subr.mxu0 0.0
        %2056 = vmatpush1.msra.mxu0 0.0
        %2057 = vmatprep.subr.mxu0 0.0
        %2058 = vmatpush1.msra.mxu0 0.0
        %2059 = vmatprep.subr.mxu0 0.0
        %2060 = vmatpush1.msra.mxu0 0.0
        %2061 = vmatprep.subr.mxu0 0.0
        %2062 = vmatpush1.msra.mxu0 0.0
        %2063 = vmatprep.subr.mxu0 0.0
        %2064 = vmatpush1.msra.mxu0 0.0
        %2065 = vmatprep.subr.mxu0 0.0
        %2066 = vmatpush1.msra.mxu0 0.0
        %2067 = vmatprep.subr.mxu0 0.0
        %2068 = vmatpush1.msra.mxu0 0.0
        %2069 = vmatprep.subr.mxu0 0.0
        %2070 = vmatpush1.msra.mxu0 0.0
        %2071 = vmatprep.subr.mxu0 0.0
        %2072 = vmatpush1.msra.mxu0 0.0
        %2073 = vmatprep.subr.mxu0 0.0
        %2074 = vmatpush1.msra.mxu0 0.0
        %2075 = vmatprep.subr.mxu0 0.0
        %2076 = vmatpush1.msra.mxu0 0.0
        %2077 = vmatprep.subr.mxu0 0.0
        %2078 = vmatpush1.msra.mxu0 0.0
        %2079 = vmatprep.subr.mxu0 0.0
        %2080 = vmatpush1.msra.mxu0 0.0
        %2081 = vmatprep.subr.mxu0 0.0
        %2082 = vmatpush1.msra.mxu0 0.0
        %2083 = vmatprep.subr.mxu0 0.0
        %2084 = vmatpush1.msra.mxu0 0.0
        %2085 = vmatprep.mubr.f32.mxu0 0.0
        %2086 = vmatmul.mubr.f32.gmra.mrb[0].mxu0 %v2019
        %v2087 = vpop.f32.mrb[0].mxu0
        %v2088 = vadd.f32 0.0, %v2087
        %v2089 = vpop.f32.mrb[0].mxu0
        %2090 = vdwg.mxu0
        %v2091 = vmul.f32 %v2088, %v2017
        %2092 = vrot.lane.b32.xlu0 %v1845, 120
        %v2093 = vpop.permute.xlu0 %2092
        %2094 = vrot.lane.b32.xlu0 %v1845, 88
        %v2095 = vpop.permute.xlu0 %2094
        %v2096 = vsel %vm861, %v2093, 0
        %v2098 = vsel %vm861, %v2095, 0
        %2100 = vmatprep.subr.mxu0 0.0
        %2101 = vmatpush1.xpose.msra.mxu0 %v2098
        %2102 = vmatprep.subr.mxu0 0.0
        %2103 = vmatpush1.xpose.msra.mxu0 0.0
        %2104 = vmatprep.subr.mxu0 0.0
        %2105 = vmatpush1.xpose.msra.mxu0 0.0
        %2106 = vmatprep.subr.mxu0 0.0
        %2107 = vmatpush1.xpose.msra.mxu0 0.0
        %2108 = vmatprep.subr.mxu0 0.0
        %2109 = vmatpush1.xpose.msra.mxu0 0.0
        %2110 = vmatprep.subr.mxu0 0.0
        %2111 = vmatpush1.xpose.msra.mxu0 0.0
        %2112 = vmatprep.subr.mxu0 0.0
        %2113 = vmatpush1.xpose.msra.mxu0 0.0
        %2114 = vmatprep.subr.mxu0 0.0
        %2115 = vmatpush1.xpose.msra.mxu0 0.0
        %2116 = vmatprep.subr.mxu0 0.0
        %2117 = vmatpush1.xpose.msra.mxu0 0.0
        %2118 = vmatprep.subr.mxu0 0.0
        %2119 = vmatpush1.xpose.msra.mxu0 0.0
        %2120 = vmatprep.subr.mxu0 0.0
        %2121 = vmatpush1.xpose.msra.mxu0 0.0
        %2122 = vmatprep.subr.mxu0 0.0
        %2123 = vmatpush1.xpose.msra.mxu0 0.0
        %2124 = vmatprep.subr.mxu0 0.0
        %2125 = vmatpush1.xpose.msra.mxu0 0.0
        %2126 = vmatprep.subr.mxu0 0.0
        %2127 = vmatpush1.xpose.msra.mxu0 0.0
        %2128 = vmatprep.subr.mxu0 0.0
        %2129 = vmatpush1.xpose.msra.mxu0 0.0
        %2130 = vmatprep.subr.mxu0 0.0
        %2131 = vmatpush1.xpose.msra.mxu0 0.0
        %2132 = vmatprep.subr.mxu0 0.0
        %2133 = vmatpush1.xpose.msra.mxu0 0.0
        %2134 = vmatprep.subr.mxu0 0.0
        %2135 = vmatpush1.xpose.msra.mxu0 0.0
        %2136 = vmatprep.subr.mxu0 0.0
        %2137 = vmatpush1.xpose.msra.mxu0 0.0
        %2138 = vmatprep.subr.mxu0 0.0
        %2139 = vmatpush1.xpose.msra.mxu0 0.0
        %2140 = vmatprep.subr.mxu0 0.0
        %2141 = vmatpush1.xpose.msra.mxu0 0.0
        %2142 = vmatprep.subr.mxu0 0.0
        %2143 = vmatpush1.xpose.msra.mxu0 0.0
        %2144 = vmatprep.subr.mxu0 0.0
        %2145 = vmatpush1.xpose.msra.mxu0 0.0
        %2146 = vmatprep.subr.mxu0 0.0
        %2147 = vmatpush1.xpose.msra.mxu0 0.0
        %2148 = vmatprep.subr.mxu0 0.0
        %2149 = vmatpush1.xpose.msra.mxu0 0.0
        %2150 = vmatprep.subr.mxu0 0.0
        %2151 = vmatpush1.xpose.msra.mxu0 0.0
        %2152 = vmatprep.subr.mxu0 0.0
        %2153 = vmatpush1.xpose.msra.mxu0 0.0
        %2154 = vmatprep.subr.mxu0 0.0
        %2155 = vmatpush1.xpose.msra.mxu0 0.0
        %2156 = vmatprep.subr.mxu0 0.0
        %2157 = vmatpush1.xpose.msra.mxu0 0.0
        %2158 = vmatprep.subr.mxu0 0.0
        %2159 = vmatpush1.xpose.msra.mxu0 0.0
        %2160 = vmatprep.subr.mxu0 0.0
        %2161 = vmatpush1.xpose.msra.mxu0 0.0
        %2162 = vmatprep.subr.mxu0 0.0
        %2163 = vmatpush1.xpose.msra.mxu0 0.0
        %2164 = vmatprep.mubr.f32.mxu0 0.0
        %2165 = vmatmul.mubr.f32.gmra.mrb[0].mxu0 %v2096
        %v2166 = vpop.f32.mrb[0].mxu0
        %v2167 = vadd.f32 %v681, %v2166
        %v2168 = vpop.f32.mrb[0].mxu0
        %2169 = vdwg.mxu0
        %v2170 = vsel %vm861, %v2167, -inf
        %2171 = vmax.xlane.f32.xlu0 %v2170
        %v2172 = vpop.xlane.xlu0 %2171
        %v2173 = vsub.f32 %v2167, %v2172
        %v2174 = vmul.f32 %v2173, 1.442695
        %v2175 = vpow.pop %v2174
        %v2176 = vsel %vm861, %v2175, 0.0
        %2177 = vadd.xlane.f32.xlu0 %v2176
        %v2178 = vpop.xlane.xlu0 %2177
        %v2179 = vrcp.pop %v2178
        %2181 = vrot.lane.b32.xlu0 %v1928, 96
        %v2182 = vpop.permute.xlu0 %2181
        %v2185 = vsel %vm861, %v2175, 0
        %2187 = vmatprep.subr.mxu0 0.0
        %2188 = vmatpush1.msra.mxu0 %v2182
        %2189 = vmatprep.subr.mxu0 0.0
        %2190 = vmatpush1.msra.mxu0 0.0
        %2191 = vmatprep.subr.mxu0 0.0
        %2192 = vmatpush1.msra.mxu0 0.0
        %2193 = vmatprep.subr.mxu0 0.0
        %2194 = vmatpush1.msra.mxu0 0.0
        %2195 = vmatprep.subr.mxu0 0.0
        %2196 = vmatpush1.msra.mxu0 0.0
        %2197 = vmatprep.subr.mxu0 0.0
        %2198 = vmatpush1.msra.mxu0 0.0
        %2199 = vmatprep.subr.mxu0 0.0
        %2200 = vmatpush1.msra.mxu0 0.0
        %2201 = vmatprep.subr.mxu0 0.0
        %2202 = vmatpush1.msra.mxu0 0.0
        %2203 = vmatprep.subr.mxu0 0.0
        %2204 = vmatpush1.msra.mxu0 0.0
        %2205 = vmatprep.subr.mxu0 0.0
        %2206 = vmatpush1.msra.mxu0 0.0
        %2207 = vmatprep.subr.mxu0 0.0
        %2208 = vmatpush1.msra.mxu0 0.0
        %2209 = vmatprep.subr.mxu0 0.0
        %2210 = vmatpush1.msra.mxu0 0.0
        %2211 = vmatprep.subr.mxu0 0.0
        %2212 = vmatpush1.msra.mxu0 0.0
        %2213 = vmatprep.subr.mxu0 0.0
        %2214 = vmatpush1.msra.mxu0 0.0
        %2215 = vmatprep.subr.mxu0 0.0
        %2216 = vmatpush1.msra.mxu0 0.0
        %2217 = vmatprep.subr.mxu0 0.0
        %2218 = vmatpush1.msra.mxu0 0.0
        %2219 = vmatprep.subr.mxu0 0.0
        %2220 = vmatpush1.msra.mxu0 0.0
        %2221 = vmatprep.subr.mxu0 0.0
        %2222 = vmatpush1.msra.mxu0 0.0
        %2223 = vmatprep.subr.mxu0 0.0
        %2224 = vmatpush1.msra.mxu0 0.0
        %2225 = vmatprep.subr.mxu0 0.0
        %2226 = vmatpush1.msra.mxu0 0.0
        %2227 = vmatprep.subr.mxu0 0.0
        %2228 = vmatpush1.msra.mxu0 0.0
        %2229 = vmatprep.subr.mxu0 0.0
        %2230 = vmatpush1.msra.mxu0 0.0
        %2231 = vmatprep.subr.mxu0 0.0
        %2232 = vmatpush1.msra.mxu0 0.0
        %2233 = vmatprep.subr.mxu0 0.0
        %2234 = vmatpush1.msra.mxu0 0.0
        %2235 = vmatprep.subr.mxu0 0.0
        %2236 = vmatpush1.msra.mxu0 0.0
        %2237 = vmatprep.subr.mxu0 0.0
        %2238 = vmatpush1.msra.mxu0 0.0
        %2239 = vmatprep.subr.mxu0 0.0
        %2240 = vmatpush1.msra.mxu0 0.0
        %2241 = vmatprep.subr.mxu0 0.0
        %2242 = vmatpush1.msra.mxu0 0.0
        %2243 = vmatprep.subr.mxu0 0.0
        %2244 = vmatpush1.msra.mxu0 0.0
        %2245 = vmatprep.subr.mxu0 0.0
        %2246 = vmatpush1.msra.mxu0 0.0
        %2247 = vmatprep.subr.mxu0 0.0
        %2248 = vmatpush1.msra.mxu0 0.0
        %2249 = vmatprep.subr.mxu0 0.0
        %2250 = vmatpush1.msra.mxu0 0.0
        %2251 = vmatprep.mubr.f32.mxu0 0.0
        %2252 = vmatmul.mubr.f32.gmra.mrb[0].mxu0 %v2185
        %v2253 = vpop.f32.mrb[0].mxu0
        %v2254 = vadd.f32 0.0, %v2253
        %v2255 = vpop.f32.mrb[0].mxu0
        %2256 = vdwg.mxu0
        %v2257 = vmul.f32 %v2254, %v2179
        %v2258 = vadd.f32 %v2091, %v2257
        %2259 = vrot.lane.b32.xlu0 %v1845, 112
        %v2260 = vpop.permute.xlu0 %2259
        %2261 = vrot.lane.b32.xlu0 %v1845, 80
        %v2262 = vpop.permute.xlu0 %2261
        %v2263 = vsel %vm861, %v2260, 0
        %v2265 = vsel %vm861, %v2262, 0
        %2267 = vmatprep.subr.mxu0 0.0
        %2268 = vmatpush1.xpose.msra.mxu0 %v2265
        %2269 = vmatprep.subr.mxu0 0.0
        %2270 = vmatpush1.xpose.msra.mxu0 0.0
        %2271 = vmatprep.subr.mxu0 0.0
        %2272 = vmatpush1.xpose.msra.mxu0 0.0
        %2273 = vmatprep.subr.mxu0 0.0
        %2274 = vmatpush1.xpose.msra.mxu0 0.0
        %2275 = vmatprep.subr.mxu0 0.0
        %2276 = vmatpush1.xpose.msra.mxu0 0.0
        %2277 = vmatprep.subr.mxu0 0.0
        %2278 = vmatpush1.xpose.msra.mxu0 0.0
        %2279 = vmatprep.subr.mxu0 0.0
        %2280 = vmatpush1.xpose.msra.mxu0 0.0
        %2281 = vmatprep.subr.mxu0 0.0
        %2282 = vmatpush1.xpose.msra.mxu0 0.0
        %2283 = vmatprep.subr.mxu0 0.0
        %2284 = vmatpush1.xpose.msra.mxu0 0.0
        %2285 = vmatprep.subr.mxu0 0.0
        %2286 = vmatpush1.xpose.msra.mxu0 0.0
        %2287 = vmatprep.subr.mxu0 0.0
        %2288 = vmatpush1.xpose.msra.mxu0 0.0
        %2289 = vmatprep.subr.mxu0 0.0
        %2290 = vmatpush1.xpose.msra.mxu0 0.0
        %2291 = vmatprep.subr.mxu0 0.0
        %2292 = vmatpush1.xpose.msra.mxu0 0.0
        %2293 = vmatprep.subr.mxu0 0.0
        %2294 = vmatpush1.xpose.msra.mxu0 0.0
        %2295 = vmatprep.subr.mxu0 0.0
        %2296 = vmatpush1.xpose.msra.mxu0 0.0
        %2297 = vmatprep.subr.mxu0 0.0
        %2298 = vmatpush1.xpose.msra.mxu0 0.0
        %2299 = vmatprep.subr.mxu0 0.0
        %2300 = vmatpush1.xpose.msra.mxu0 0.0
        %2301 = vmatprep.subr.mxu0 0.0
        %2302 = vmatpush1.xpose.msra.mxu0 0.0
        %2303 = vmatprep.subr.mxu0 0.0
        %2304 = vmatpush1.xpose.msra.mxu0 0.0
        %2305 = vmatprep.subr.mxu0 0.0
        %2306 = vmatpush1.xpose.msra.mxu0 0.0
        %2307 = vmatprep.subr.mxu0 0.0
        %2308 = vmatpush1.xpose.msra.mxu0 0.0
        %2309 = vmatprep.subr.mxu0 0.0
        %2310 = vmatpush1.xpose.msra.mxu0 0.0
        %2311 = vmatprep.subr.mxu0 0.0
        %2312 = vmatpush1.xpose.msra.mxu0 0.0
        %2313 = vmatprep.subr.mxu0 0.0
        %2314 = vmatpush1.xpose.msra.mxu0 0.0
        %2315 = vmatprep.subr.mxu0 0.0
        %2316 = vmatpush1.xpose.msra.mxu0 0.0
        %2317 = vmatprep.subr.mxu0 0.0
        %2318 = vmatpush1.xpose.msra.mxu0 0.0
        %2319 = vmatprep.subr.mxu0 0.0
        %2320 = vmatpush1.xpose.msra.mxu0 0.0
        %2321 = vmatprep.subr.mxu0 0.0
        %2322 = vmatpush1.xpose.msra.mxu0 0.0
        %2323 = vmatprep.subr.mxu0 0.0
        %2324 = vmatpush1.xpose.msra.mxu0 0.0
        %2325 = vmatprep.subr.mxu0 0.0
        %2326 = vmatpush1.xpose.msra.mxu0 0.0
        %2327 = vmatprep.subr.mxu0 0.0
        %2328 = vmatpush1.xpose.msra.mxu0 0.0
        %2329 = vmatprep.subr.mxu0 0.0
        %2330 = vmatpush1.xpose.msra.mxu0 0.0
        %2331 = vmatprep.mubr.f32.mxu0 0.0
        %2332 = vmatmul.mubr.f32.gmra.mrb[0].mxu0 %v2263
        %v2333 = vpop.f32.mrb[0].mxu0
        %v2334 = vadd.f32 %v681, %v2333
        %v2335 = vpop.f32.mrb[0].mxu0
        %2336 = vdwg.mxu0
        %v2337 = vsel %vm861, %v2334, -inf
        %2338 = vmax.xlane.f32.xlu0 %v2337
        %v2339 = vpop.xlane.xlu0 %2338
        %v2340 = vsub.f32 %v2334, %v2339
        %v2341 = vmul.f32 %v2340, 1.442695
        %v2342 = vpow.pop %v2341
        %v2343 = vsel %vm861, %v2342, 0.0
        %2344 = vadd.xlane.f32.xlu0 %v2343
        %v2345 = vpop.xlane.xlu0 %2344
        %v2346 = vrcp.pop %v2345
        %2347 = vrot.lane.b32.xlu0 %v1928, 64
        %v2348 = vpop.permute.xlu0 %2347
        %v2351 = vsel %vm861, %v2342, 0
        %2353 = vmatprep.subr.mxu0 0.0
        %2354 = vmatpush1.msra.mxu0 %v2348
        %2355 = vmatprep.subr.mxu0 0.0
        %2356 = vmatpush1.msra.mxu0 0.0
        %2357 = vmatprep.subr.mxu0 0.0
        %2358 = vmatpush1.msra.mxu0 0.0
        %2359 = vmatprep.subr.mxu0 0.0
        %2360 = vmatpush1.msra.mxu0 0.0
        %2361 = vmatprep.subr.mxu0 0.0
        %2362 = vmatpush1.msra.mxu0 0.0
        %2363 = vmatprep.subr.mxu0 0.0
        %2364 = vmatpush1.msra.mxu0 0.0
        %2365 = vmatprep.subr.mxu0 0.0
        %2366 = vmatpush1.msra.mxu0 0.0
        %2367 = vmatprep.subr.mxu0 0.0
        %2368 = vmatpush1.msra.mxu0 0.0
        %2369 = vmatprep.subr.mxu0 0.0
        %2370 = vmatpush1.msra.mxu0 0.0
        %2371 = vmatprep.subr.mxu0 0.0
        %2372 = vmatpush1.msra.mxu0 0.0
        %2373 = vmatprep.subr.mxu0 0.0
        %2374 = vmatpush1.msra.mxu0 0.0
        %2375 = vmatprep.subr.mxu0 0.0
        %2376 = vmatpush1.msra.mxu0 0.0
        %2377 = vmatprep.subr.mxu0 0.0
        %2378 = vmatpush1.msra.mxu0 0.0
        %2379 = vmatprep.subr.mxu0 0.0
        %2380 = vmatpush1.msra.mxu0 0.0
        %2381 = vmatprep.subr.mxu0 0.0
        %2382 = vmatpush1.msra.mxu0 0.0
        %2383 = vmatprep.subr.mxu0 0.0
        %2384 = vmatpush1.msra.mxu0 0.0
        %2385 = vmatprep.subr.mxu0 0.0
        %2386 = vmatpush1.msra.mxu0 0.0
        %2387 = vmatprep.subr.mxu0 0.0
        %2388 = vmatpush1.msra.mxu0 0.0
        %2389 = vmatprep.subr.mxu0 0.0
        %2390 = vmatpush1.msra.mxu0 0.0
        %2391 = vmatprep.subr.mxu0 0.0
        %2392 = vmatpush1.msra.mxu0 0.0
        %2393 = vmatprep.subr.mxu0 0.0
        %2394 = vmatpush1.msra.mxu0 0.0
        %2395 = vmatprep.subr.mxu0 0.0
        %2396 = vmatpush1.msra.mxu0 0.0
        %2397 = vmatprep.subr.mxu0 0.0
        %2398 = vmatpush1.msra.mxu0 0.0
        %2399 = vmatprep.subr.mxu0 0.0
        %2400 = vmatpush1.msra.mxu0 0.0
        %2401 = vmatprep.subr.mxu0 0.0
        %2402 = vmatpush1.msra.mxu0 0.0
        %2403 = vmatprep.subr.mxu0 0.0
        %2404 = vmatpush1.msra.mxu0 0.0
        %2405 = vmatprep.subr.mxu0 0.0
        %2406 = vmatpush1.msra.mxu0 0.0
        %2407 = vmatprep.subr.mxu0 0.0
        %2408 = vmatpush1.msra.mxu0 0.0
        %2409 = vmatprep.subr.mxu0 0.0
        %2410 = vmatpush1.msra.mxu0 0.0
        %2411 = vmatprep.subr.mxu0 0.0
        %2412 = vmatpush1.msra.mxu0 0.0
        %2413 = vmatprep.subr.mxu0 0.0
        %2414 = vmatpush1.msra.mxu0 0.0
        %2415 = vmatprep.subr.mxu0 0.0
        %2416 = vmatpush1.msra.mxu0 0.0
        %2417 = vmatprep.mubr.f32.mxu0 0.0
        %2418 = vmatmul.mubr.f32.gmra.mrb[0].mxu0 %v2351
        %v2419 = vpop.f32.mrb[0].mxu0
        %v2420 = vadd.f32 0.0, %v2419
        %v2421 = vpop.f32.mrb[0].mxu0
        %2422 = vdwg.mxu0
        %v2423 = vmul.f32 %v2420, %v2346
        %v2424 = vadd.f32 %v2258, %v2423
        %2425 = vrot.lane.b32.xlu0 %v1845, 104
        %v2426 = vpop.permute.xlu0 %2425
        %2427 = vrot.lane.b32.xlu0 %v1845, 72
        %v2428 = vpop.permute.xlu0 %2427
        %v2429 = vsel %vm861, %v2426, 0
        %v2431 = vsel %vm861, %v2428, 0
        %2433 = vmatprep.subr.mxu0 0.0
        %2434 = vmatpush1.xpose.msra.mxu0 %v2431
        %2435 = vmatprep.subr.mxu0 0.0
        %2436 = vmatpush1.xpose.msra.mxu0 0.0
        %2437 = vmatprep.subr.mxu0 0.0
        %2438 = vmatpush1.xpose.msra.mxu0 0.0
        %2439 = vmatprep.subr.mxu0 0.0
        %2440 = vmatpush1.xpose.msra.mxu0 0.0
        %2441 = vmatprep.subr.mxu0 0.0
        %2442 = vmatpush1.xpose.msra.mxu0 0.0
        %2443 = vmatprep.subr.mxu0 0.0
        %2444 = vmatpush1.xpose.msra.mxu0 0.0
        %2445 = vmatprep.subr.mxu0 0.0
        %2446 = vmatpush1.xpose.msra.mxu0 0.0
        %2447 = vmatprep.subr.mxu0 0.0
        %2448 = vmatpush1.xpose.msra.mxu0 0.0
        %2449 = vmatprep.subr.mxu0 0.0
        %2450 = vmatpush1.xpose.msra.mxu0 0.0
        %2451 = vmatprep.subr.mxu0 0.0
        %2452 = vmatpush1.xpose.msra.mxu0 0.0
        %2453 = vmatprep.subr.mxu0 0.0
        %2454 = vmatpush1.xpose.msra.mxu0 0.0
        %2455 = vmatprep.subr.mxu0 0.0
        %2456 = vmatpush1.xpose.msra.mxu0 0.0
        %2457 = vmatprep.subr.mxu0 0.0
        %2458 = vmatpush1.xpose.msra.mxu0 0.0
        %2459 = vmatprep.subr.mxu0 0.0
        %2460 = vmatpush1.xpose.msra.mxu0 0.0
        %2461 = vmatprep.subr.mxu0 0.0
        %2462 = vmatpush1.xpose.msra.mxu0 0.0
        %2463 = vmatprep.subr.mxu0 0.0
        %2464 = vmatpush1.xpose.msra.mxu0 0.0
        %2465 = vmatprep.subr.mxu0 0.0
        %2466 = vmatpush1.xpose.msra.mxu0 0.0
        %2467 = vmatprep.subr.mxu0 0.0
        %2468 = vmatpush1.xpose.msra.mxu0 0.0
        %2469 = vmatprep.subr.mxu0 0.0
        %2470 = vmatpush1.xpose.msra.mxu0 0.0
        %2471 = vmatprep.subr.mxu0 0.0
        %2472 = vmatpush1.xpose.msra.mxu0 0.0
        %2473 = vmatprep.subr.mxu0 0.0
        %2474 = vmatpush1.xpose.msra.mxu0 0.0
        %2475 = vmatprep.subr.mxu0 0.0
        %2476 = vmatpush1.xpose.msra.mxu0 0.0
        %2477 = vmatprep.subr.mxu0 0.0
        %2478 = vmatpush1.xpose.msra.mxu0 0.0
        %2479 = vmatprep.subr.mxu0 0.0
        %2480 = vmatpush1.xpose.msra.mxu0 0.0
        %2481 = vmatprep.subr.mxu0 0.0
        %2482 = vmatpush1.xpose.msra.mxu0 0.0
        %2483 = vmatprep.subr.mxu0 0.0
        %2484 = vmatpush1.xpose.msra.mxu0 0.0
        %2485 = vmatprep.subr.mxu0 0.0
        %2486 = vmatpush1.xpose.msra.mxu0 0.0
        %2487 = vmatprep.subr.mxu0 0.0
        %2488 = vmatpush1.xpose.msra.mxu0 0.0
        %2489 = vmatprep.subr.mxu0 0.0
        %2490 = vmatpush1.xpose.msra.mxu0 0.0
        %2491 = vmatprep.subr.mxu0 0.0
        %2492 = vmatpush1.xpose.msra.mxu0 0.0
        %2493 = vmatprep.subr.mxu0 0.0
        %2494 = vmatpush1.xpose.msra.mxu0 0.0
        %2495 = vmatprep.subr.mxu0 0.0
        %2496 = vmatpush1.xpose.msra.mxu0 0.0
        %2497 = vmatprep.mubr.f32.mxu0 0.0
        %2498 = vmatmul.mubr.f32.gmra.mrb[0].mxu0 %v2429
        %v2499 = vpop.f32.mrb[0].mxu0
        %v2500 = vadd.f32 %v681, %v2499
        %v2501 = vpop.f32.mrb[0].mxu0
        %2502 = vdwg.mxu0
        %v2503 = vsel %vm861, %v2500, -inf
        %2504 = vmax.xlane.f32.xlu0 %v2503
        %v2505 = vpop.xlane.xlu0 %2504
        %v2506 = vsub.f32 %v2500, %v2505
        %v2507 = vmul.f32 %v2506, 1.442695
        %v2508 = vpow.pop %v2507
        %v2509 = vsel %vm861, %v2508, 0.0
        %2510 = vadd.xlane.f32.xlu0 %v2509
        %v2511 = vpop.xlane.xlu0 %2510
        %v2512 = vrcp.pop %v2511
        %2513 = vrot.lane.b32.xlu0 %v1928, 32
        %v2514 = vpop.permute.xlu0 %2513
        %v2517 = vsel %vm861, %v2508, 0
        %2519 = vmatprep.subr.mxu0 0.0
        %2520 = vmatpush1.msra.mxu0 %v2514
        %2521 = vmatprep.subr.mxu0 0.0
        %2522 = vmatpush1.msra.mxu0 0.0
        %2523 = vmatprep.subr.mxu0 0.0
        %2524 = vmatpush1.msra.mxu0 0.0
        %2525 = vmatprep.subr.mxu0 0.0
        %2526 = vmatpush1.msra.mxu0 0.0
        %2527 = vmatprep.subr.mxu0 0.0
        %2528 = vmatpush1.msra.mxu0 0.0
        %2529 = vmatprep.subr.mxu0 0.0
        %2530 = vmatpush1.msra.mxu0 0.0
        %2531 = vmatprep.subr.mxu0 0.0
        %2532 = vmatpush1.msra.mxu0 0.0
        %2533 = vmatprep.subr.mxu0 0.0
        %2534 = vmatpush1.msra.mxu0 0.0
        %2535 = vmatprep.subr.mxu0 0.0
        %2536 = vmatpush1.msra.mxu0 0.0
        %2537 = vmatprep.subr.mxu0 0.0
        %2538 = vmatpush1.msra.mxu0 0.0
        %2539 = vmatprep.subr.mxu0 0.0
        %2540 = vmatpush1.msra.mxu0 0.0
        %2541 = vmatprep.subr.mxu0 0.0
        %2542 = vmatpush1.msra.mxu0 0.0
        %2543 = vmatprep.subr.mxu0 0.0
        %2544 = vmatpush1.msra.mxu0 0.0
        %2545 = vmatprep.subr.mxu0 0.0
        %2546 = vmatpush1.msra.mxu0 0.0
        %2547 = vmatprep.subr.mxu0 0.0
        %2548 = vmatpush1.msra.mxu0 0.0
        %2549 = vmatprep.subr.mxu0 0.0
        %2550 = vmatpush1.msra.mxu0 0.0
        %2551 = vmatprep.subr.mxu0 0.0
        %2552 = vmatpush1.msra.mxu0 0.0
        %2553 = vmatprep.subr.mxu0 0.0
        %2554 = vmatpush1.msra.mxu0 0.0
        %2555 = vmatprep.subr.mxu0 0.0
        %2556 = vmatpush1.msra.mxu0 0.0
        %2557 = vmatprep.subr.mxu0 0.0
        %2558 = vmatpush1.msra.mxu0 0.0
        %2559 = vmatprep.subr.mxu0 0.0
        %2560 = vmatpush1.msra.mxu0 0.0
        %2561 = vmatprep.subr.mxu0 0.0
        %2562 = vmatpush1.msra.mxu0 0.0
        %2563 = vmatprep.subr.mxu0 0.0
        %2564 = vmatpush1.msra.mxu0 0.0
        %2565 = vmatprep.subr.mxu0 0.0
        %2566 = vmatpush1.msra.mxu0 0.0
        %2567 = vmatprep.subr.mxu0 0.0
        %2568 = vmatpush1.msra.mxu0 0.0
        %2569 = vmatprep.subr.mxu0 0.0
        %2570 = vmatpush1.msra.mxu0 0.0
        %2571 = vmatprep.subr.mxu0 0.0
        %2572 = vmatpush1.msra.mxu0 0.0
        %2573 = vmatprep.subr.mxu0 0.0
        %2574 = vmatpush1.msra.mxu0 0.0
        %2575 = vmatprep.subr.mxu0 0.0
        %2576 = vmatpush1.msra.mxu0 0.0
        %2577 = vmatprep.subr.mxu0 0.0
        %2578 = vmatpush1.msra.mxu0 0.0
        %2579 = vmatprep.subr.mxu0 0.0
        %2580 = vmatpush1.msra.mxu0 0.0
        %2581 = vmatprep.subr.mxu0 0.0
        %2582 = vmatpush1.msra.mxu0 0.0
        %2583 = vmatprep.mubr.f32.mxu0 0.0
        %2584 = vmatmul.mubr.f32.gmra.mrb[0].mxu0 %v2517
        %v2585 = vpop.f32.mrb[0].mxu0
        %v2586 = vadd.f32 0.0, %v2585
        %v2587 = vpop.f32.mrb[0].mxu0
        %2588 = vdwg.mxu0
        %v2589 = vmul.f32 %v2586, %v2512
        %v2590 = vadd.f32 %v2424, %v2589
        %s2591 = scalar_lea.vmem %s7, 1
        %v2592 = vld [vmem:[%s2591] sm:$0x1]
        %v2594 = vlaneseq
        %v2595 = vshrl.u32 %v2594, 7
        %v2596 = vsub.s32 0, %v2595
        %v2597 = vrot.slane %v2592, %v2596
        %v2599 = vadd.f32 %v2590, %v2597
        %v2600 = vadd.f32 %v1761, %v2599
        %s2601 = scalar_lea.vmem %s8, 1
        %v2602 = vld [vmem:[%s2601] sm:$0x1]
        %s2603 = scalar_lea.vmem %s9, 1
        %v2604 = vld [vmem:[%s2603] sm:$0x1]
        %v2605 = vsel %vm703, %v2600, 0.0
        %2606 = vadd.xlane.f32.xlu0 %v2605
        %v2607 = vpop.xlane.xlu0 %2606
        %v2608 = vmul.f32 %v2607, %v1533
        %v2609 = vsub.f32 %v2600, %v2608
        %v2610 = vmul.f32 %v2609, %v2609
        %v2611 = vsel %vm703, %v2610, 0.0
        %2612 = vadd.xlane.f32.xlu0 %v2611
        %v2613 = vpop.xlane.xlu0 %2612
        %v2614 = vmul.f32 %v2613, %v1533
        %v2615 = vadd.f32 %v2614, 1e-05
        %v2616 = vrsqrt.pop %v2615
        %v2617 = vmul.f32 %v2609, %v2616
        %v2619 = vlaneseq
        %v2620 = vshrl.u32 %v2619, 7
        %v2621 = vsub.s32 0, %v2620
        %v2622 = vrot.slane %v2602, %v2621
        %v2624 = vmul.f32 %v2617, %v2622
        %v2626 = vlaneseq
        %v2627 = vshrl.u32 %v2626, 7
        %v2628 = vsub.s32 0, %v2627
        %v2629 = vrot.slane %v2604, %v2628
        %v2631 = vadd.f32 %v2624, %v2629
        %s2632 = scalar_lea.vmem %s10, 32
        %v2633 = vld [vmem:[%s2632] sm:$0xff]
        %v2634 = vld [vmem:[%s2632 + $0x8] sm:$0xff]
        %v2635 = vld [vmem:[%s2632 + $0x10] sm:$0xff]
        %v2636 = vld [vmem:[%s2632 + $0x18] sm:$0xff]
        %s2637 = scalar_lea.vmem %s11, 1
        %v2638 = vld [vmem:[%s2637] sm:$0x1]
        %v2640 = vlaneseq
        %v2641 = vshrl.u32 %v2640, 7
        %v2642 = vsub.s32 0, %v2641
        %v2643 = vrot.slane %v2638, %v2642
        %v2646 = vsel %vm703, %v2631, 0
        %2648 = vmatprep.subr.mxu0 0.0
        %2649 = vmatpush1.msra.mxu0 %v2633
        %2650 = vmatprep.subr.mxu0 0.0
        %2651 = vmatpush1.msra.mxu0 %v2634
        %2652 = vmatprep.subr.mxu0 0.0
        %2653 = vmatpush1.msra.mxu0 %v2635
        %2654 = vmatprep.subr.mxu0 0.0
        %2655 = vmatpush1.msra.mxu0 %v2636
        %2656 = vmatprep.subr.mxu0 0.0
        %2657 = vmatpush1.msra.mxu0 0.0
        %2658 = vmatprep.subr.mxu0 0.0
        %2659 = vmatpush1.msra.mxu0 0.0
        %2660 = vmatprep.subr.mxu0 0.0
        %2661 = vmatpush1.msra.mxu0 0.0
        %2662 = vmatprep.subr.mxu0 0.0
        %2663 = vmatpush1.msra.mxu0 0.0
        %2664 = vmatprep.subr.mxu0 0.0
        %2665 = vmatpush1.msra.mxu0 0.0
        %2666 = vmatprep.subr.mxu0 0.0
        %2667 = vmatpush1.msra.mxu0 0.0
        %2668 = vmatprep.subr.mxu0 0.0
        %2669 = vmatpush1.msra.mxu0 0.0
        %2670 = vmatprep.subr.mxu0 0.0
        %2671 = vmatpush1.msra.mxu0 0.0
        %2672 = vmatprep.subr.mxu0 0.0
        %2673 = vmatpush1.msra.mxu0 0.0
        %2674 = vmatprep.subr.mxu0 0.0
        %2675 = vmatpush1.msra.mxu0 0.0
        %2676 = vmatprep.subr.mxu0 0.0
        %2677 = vmatpush1.msra.mxu0 0.0
        %2678 = vmatprep.subr.mxu0 0.0
        %2679 = vmatpush1.msra.mxu0 0.0
        %2680 = vmatprep.subr.mxu0 0.0
        %2681 = vmatpush1.msra.mxu0 0.0
        %2682 = vmatprep.subr.mxu0 0.0
        %2683 = vmatpush1.msra.mxu0 0.0
        %2684 = vmatprep.subr.mxu0 0.0
        %2685 = vmatpush1.msra.mxu0 0.0
        %2686 = vmatprep.subr.mxu0 0.0
        %2687 = vmatpush1.msra.mxu0 0.0
        %2688 = vmatprep.subr.mxu0 0.0
        %2689 = vmatpush1.msra.mxu0 0.0
        %2690 = vmatprep.subr.mxu0 0.0
        %2691 = vmatpush1.msra.mxu0 0.0
        %2692 = vmatprep.subr.mxu0 0.0
        %2693 = vmatpush1.msra.mxu0 0.0
        %2694 = vmatprep.subr.mxu0 0.0
        %2695 = vmatpush1.msra.mxu0 0.0
        %2696 = vmatprep.subr.mxu0 0.0
        %2697 = vmatpush1.msra.mxu0 0.0
        %2698 = vmatprep.subr.mxu0 0.0
        %2699 = vmatpush1.msra.mxu0 0.0
        %2700 = vmatprep.subr.mxu0 0.0
        %2701 = vmatpush1.msra.mxu0 0.0
        %2702 = vmatprep.subr.mxu0 0.0
        %2703 = vmatpush1.msra.mxu0 0.0
        %2704 = vmatprep.subr.mxu0 0.0
        %2705 = vmatpush1.msra.mxu0 0.0
        %2706 = vmatprep.subr.mxu0 0.0
        %2707 = vmatpush1.msra.mxu0 0.0
        %2708 = vmatprep.subr.mxu0 0.0
        %2709 = vmatpush1.msra.mxu0 0.0
        %2710 = vmatprep.subr.mxu0 0.0
        %2711 = vmatpush1.msra.mxu0 0.0
        %2712 = vmatprep.mubr.f32.mxu0 0.0
        %2713 = vmatmul.mubr.f32.gmra.mrb[0].mxu0 %v2646
        %v2714 = vpop.f32.mrb[0].mxu0
        %v2715 = vadd.f32 %v2643, %v2714
        %v2716 = vpop.f32.mrb[0].mxu0
        %2717 = vdwg.mxu0
        %v2718 = vmax.f32 %v2715, 0.0
        %s2719 = scalar_lea.vmem %s12, 64
        %v2720 = vld [vmem:[%s2719] sm:$0xff]
        %v2721 = vld [vmem:[%s2719 + $0x8] sm:$0xff]
        %v2722 = vld [vmem:[%s2719 + $0x10] sm:$0xff]
        %v2723 = vld [vmem:[%s2719 + $0x18] sm:$0xff]
        %v2724 = vld [vmem:[%s2719 + $0x20] sm:$0xff]
        %v2725 = vld [vmem:[%s2719 + $0x28] sm:$0xff]
        %v2726 = vld [vmem:[%s2719 + $0x30] sm:$0xff]
        %v2727 = vld [vmem:[%s2719 + $0x38] sm:$0xff]
        %s2728 = scalar_lea.vmem %s13, 1
        %v2729 = vld [vmem:[%s2728] sm:$0x1]
        %v2731 = vlaneseq
        %v2732 = vshrl.u32 %v2731, 7
        %v2733 = vsub.s32 0, %v2732
        %v2734 = vrot.slane %v2729, %v2733
        %v2737 = vsel %vm1658, %v2718, 0
        %2739 = vmatprep.subr.mxu0 0.0
        %2740 = vmatpush1.msra.mxu0 %v2720
        %2741 = vmatprep.subr.mxu0 0.0
        %2742 = vmatpush1.msra.mxu0 %v2721
        %2743 = vmatprep.subr.mxu0 0.0
        %2744 = vmatpush1.msra.mxu0 %v2722
        %2745 = vmatprep.subr.mxu0 0.0
        %2746 = vmatpush1.msra.mxu0 %v2723
        %2747 = vmatprep.subr.mxu0 0.0
        %2748 = vmatpush1.msra.mxu0 %v2724
        %2749 = vmatprep.subr.mxu0 0.0
        %2750 = vmatpush1.msra.mxu0 %v2725
        %2751 = vmatprep.subr.mxu0 0.0
        %2752 = vmatpush1.msra.mxu0 %v2726
        %2753 = vmatprep.subr.mxu0 0.0
        %2754 = vmatpush1.msra.mxu0 %v2727
        %2755 = vmatprep.subr.mxu0 0.0
        %2756 = vmatpush1.msra.mxu0 0.0
        %2757 = vmatprep.subr.mxu0 0.0
        %2758 = vmatpush1.msra.mxu0 0.0
        %2759 = vmatprep.subr.mxu0 0.0
        %2760 = vmatpush1.msra.mxu0 0.0
        %2761 = vmatprep.subr.mxu0 0.0
        %2762 = vmatpush1.msra.mxu0 0.0
        %2763 = vmatprep.subr.mxu0 0.0
        %2764 = vmatpush1.msra.mxu0 0.0
        %2765 = vmatprep.subr.mxu0 0.0
        %2766 = vmatpush1.msra.mxu0 0.0
        %2767 = vmatprep.subr.mxu0 0.0
        %2768 = vmatpush1.msra.mxu0 0.0
        %2769 = vmatprep.subr.mxu0 0.0
        %2770 = vmatpush1.msra.mxu0 0.0
        %2771 = vmatprep.subr.mxu0 0.0
        %2772 = vmatpush1.msra.mxu0 0.0
        %2773 = vmatprep.subr.mxu0 0.0
        %2774 = vmatpush1.msra.mxu0 0.0
        %2775 = vmatprep.subr.mxu0 0.0
        %2776 = vmatpush1.msra.mxu0 0.0
        %2777 = vmatprep.subr.mxu0 0.0
        %2778 = vmatpush1.msra.mxu0 0.0
        %2779 = vmatprep.subr.mxu0 0.0
        %2780 = vmatpush1.msra.mxu0 0.0
        %2781 = vmatprep.subr.mxu0 0.0
        %2782 = vmatpush1.msra.mxu0 0.0
        %2783 = vmatprep.subr.mxu0 0.0
        %2784 = vmatpush1.msra.mxu0 0.0
        %2785 = vmatprep.subr.mxu0 0.0
        %2786 = vmatpush1.msra.mxu0 0.0
        %2787 = vmatprep.subr.mxu0 0.0
        %2788 = vmatpush1.msra.mxu0 0.0
        %2789 = vmatprep.subr.mxu0 0.0
        %2790 = vmatpush1.msra.mxu0 0.0
        %2791 = vmatprep.subr.mxu0 0.0
        %2792 = vmatpush1.msra.mxu0 0.0
        %2793 = vmatprep.subr.mxu0 0.0
        %2794 = vmatpush1.msra.mxu0 0.0
        %2795 = vmatprep.subr.mxu0 0.0
        %2796 = vmatpush1.msra.mxu0 0.0
        %2797 = vmatprep.subr.mxu0 0.0
        %2798 = vmatpush1.msra.mxu0 0.0
        %2799 = vmatprep.subr.mxu0 0.0
        %2800 = vmatpush1.msra.mxu0 0.0
        %2801 = vmatprep.subr.mxu0 0.0
        %2802 = vmatpush1.msra.mxu0 0.0
        %2803 = vmatprep.mubr.f32.mxu0 0.0
        %2804 = vmatmul.mubr.f32.gmra.mrb[0].mxu0 %v2737
        %v2805 = vpop.f32.mrb[0].mxu0
        %v2806 = vadd.f32 %v2734, %v2805
        %v2807 = vpop.f32.mrb[0].mxu0
        %2808 = vdwg.mxu0
        %v2809 = vadd.f32 %v2631, %v2806
        %s2810 = scalar_lea.vmem %s14, 1
        %v2811 = vld [vmem:[%s2810] sm:$0x1]
        %s2812 = scalar_lea.vmem %s15, 1
        %v2813 = vld [vmem:[%s2812] sm:$0x1]
        %v2814 = vsel %vm703, %v2809, 0.0
        %2815 = vadd.xlane.f32.xlu0 %v2814
        %v2816 = vpop.xlane.xlu0 %2815
        %v2817 = vmul.f32 %v2816, %v1533
        %v2818 = vsub.f32 %v2809, %v2817
        %v2819 = vmul.f32 %v2818, %v2818
        %v2820 = vsel %vm703, %v2819, 0.0
        %2821 = vadd.xlane.f32.xlu0 %v2820
        %v2822 = vpop.xlane.xlu0 %2821
        %v2823 = vmul.f32 %v2822, %v1533
        %v2824 = vadd.f32 %v2823, 1e-05
        %v2825 = vrsqrt.pop %v2824
        %v2826 = vmul.f32 %v2818, %v2825
        %v2828 = vlaneseq
        %v2829 = vshrl.u32 %v2828, 7
        %v2830 = vsub.s32 0, %v2829
        %v2831 = vrot.slane %v2811, %v2830
        %v2833 = vmul.f32 %v2826, %v2831
        %v2835 = vlaneseq
        %v2836 = vshrl.u32 %v2835, 7
        %v2837 = vsub.s32 0, %v2836
        %v2838 = vrot.slane %v2813, %v2837
        %v2840 = vadd.f32 %v2833, %v2838
        %v2841 = vld [vmem:[%s16] sm:$0x1]
        %v2842 = vld [vmem:[%s17] sm:$0x1]
        %v2843 = vsel %vm703, %v2840, 0.0
        %2844 = vadd.xlane.f32.xlu0 %v2843
        %v2845 = vpop.xlane.xlu0 %2844
        %v2846 = vmul.f32 %v2845, %v1533
        %v2847 = vsub.f32 %v2840, %v2846
        %v2848 = vmul.f32 %v2847, %v2847
        %v2849 = vsel %vm703, %v2848, 0.0
        %2850 = vadd.xlane.f32.xlu0 %v2849
        %v2851 = vpop.xlane.xlu0 %2850
        %v2852 = vmul.f32 %v2851, %v1533
        %v2853 = vadd.f32 %v2852, 1e-05
        %v2854 = vrsqrt.pop %v2853
        %v2855 = vmul.f32 %v2847, %v2854
        %v2857 = vlaneseq
        %v2858 = vshrl.u32 %v2857, 7
        %v2859 = vsub.s32 0, %v2858
        %v2860 = vrot.slane %v2841, %v2859
        %v2862 = vmul.f32 %v2855, %v2860
        %v2864 = vlaneseq
        %v2865 = vshrl.u32 %v2864, 7
        %v2866 = vsub.s32 0, %v2865
        %v2867 = vrot.slane %v2842, %v2866
        %v2869 = vadd.f32 %v2862, %v2867
        %v2870 = vld [vmem:[#allocation2] sm:$0xff]
        %v2871 = vld [vmem:[#allocation2 + $0x8] sm:$0xff]
        %v2872 = vld [vmem:[#allocation2 + $0x10] sm:$0xff]
        %v2873 = vld [vmem:[#allocation2 + $0x18] sm:$0xff]
        %v2874 = vld [vmem:[%s19] sm:$0x1]
        %v2876 = vlaneseq
        %v2877 = vshrl.u32 %v2876, 7
        %v2878 = vsub.s32 0, %v2877
        %v2879 = vrot.slane %v2874, %v2878
        %v2882 = vsel %vm703, %v2869, 0
        %2884 = vmatprep.subr.mxu0 0.0
        %2885 = vmatpush1.msra.mxu0 %v2870
        %2886 = vmatprep.subr.mxu0 0.0
        %2887 = vmatpush1.msra.mxu0 %v2871
        %2888 = vmatprep.subr.mxu0 0.0
        %2889 = vmatpush1.msra.mxu0 %v2872
        %2890 = vmatprep.subr.mxu0 0.0
        %2891 = vmatpush1.msra.mxu0 %v2873
        %2892 = vmatprep.subr.mxu0 0.0
        %2893 = vmatpush1.msra.mxu0 0.0
        %2894 = vmatprep.subr.mxu0 0.0
        %2895 = vmatpush1.msra.mxu0 0.0
        %2896 = vmatprep.subr.mxu0 0.0
        %2897 = vmatpush1.msra.mxu0 0.0
        %2898 = vmatprep.subr.mxu0 0.0
        %2899 = vmatpush1.msra.mxu0 0.0
        %2900 = vmatprep.subr.mxu0 0.0
        %2901 = vmatpush1.msra.mxu0 0.0
        %2902 = vmatprep.subr.mxu0 0.0
        %2903 = vmatpush1.msra.mxu0 0.0
        %2904 = vmatprep.subr.mxu0 0.0
        %2905 = vmatpush1.msra.mxu0 0.0
        %2906 = vmatprep.subr.mxu0 0.0
        %2907 = vmatpush1.msra.mxu0 0.0
        %2908 = vmatprep.subr.mxu0 0.0
        %2909 = vmatpush1.msra.mxu0 0.0
        %2910 = vmatprep.subr.mxu0 0.0
        %2911 = vmatpush1.msra.mxu0 0.0
        %2912 = vmatprep.subr.mxu0 0.0
        %2913 = vmatpush1.msra.mxu0 0.0
        %2914 = vmatprep.subr.mxu0 0.0
        %2915 = vmatpush1.msra.mxu0 0.0
        %2916 = vmatprep.subr.mxu0 0.0
        %2917 = vmatpush1.msra.mxu0 0.0
        %2918 = vmatprep.subr.mxu0 0.0
        %2919 = vmatpush1.msra.mxu0 0.0
        %2920 = vmatprep.subr.mxu0 0.0
        %2921 = vmatpush1.msra.mxu0 0.0
        %2922 = vmatprep.subr.mxu0 0.0
        %2923 = vmatpush1.msra.mxu0 0.0
        %2924 = vmatprep.subr.mxu0 0.0
        %2925 = vmatpush1.msra.mxu0 0.0
        %2926 = vmatprep.subr.mxu0 0.0
        %2927 = vmatpush1.msra.mxu0 0.0
        %2928 = vmatprep.subr.mxu0 0.0
        %2929 = vmatpush1.msra.mxu0 0.0
        %2930 = vmatprep.subr.mxu0 0.0
        %2931 = vmatpush1.msra.mxu0 0.0
        %2932 = vmatprep.subr.mxu0 0.0
        %2933 = vmatpush1.msra.mxu0 0.0
        %2934 = vmatprep.subr.mxu0 0.0
        %2935 = vmatpush1.msra.mxu0 0.0
        %2936 = vmatprep.subr.mxu0 0.0
        %2937 = vmatpush1.msra.mxu0 0.0
        %2938 = vmatprep.subr.mxu0 0.0
        %2939 = vmatpush1.msra.mxu0 0.0
        %2940 = vmatprep.subr.mxu0 0.0
        %2941 = vmatpush1.msra.mxu0 0.0
        %2942 = vmatprep.subr.mxu0 0.0
        %2943 = vmatpush1.msra.mxu0 0.0
        %2944 = vmatprep.subr.mxu0 0.0
        %2945 = vmatpush1.msra.mxu0 0.0
        %2946 = vmatprep.subr.mxu0 0.0
        %2947 = vmatpush1.msra.mxu0 0.0
        %2948 = vmatprep.mubr.f32.mxu0 0.0
        %2949 = vmatmul.mubr.f32.gmra.mrb[0].mxu0 %v2882
        %v2950 = vpop.f32.mrb[0].mxu0
        %v2951 = vadd.f32 %v2879, %v2950
        %v2952 = vpop.f32.mrb[0].mxu0
        %2953 = vdwg.mxu0
        %2954 = vmax.xlane.f32.xlu0 %v2951
        %v2955 = vpop.xlane.xlu0 %2954
        %v2956 = vsub.f32 %v2951, %v2955
        %v2957 = vmul.f32 %v2956, 1.442695
        %v2958 = vpow.pop %v2957
        %2959 = vadd.xlane.f32.xlu0 %v2958
        %v2960 = vpop.xlane.xlu0 %2959
        %v2961 = vlog2.pop %v2960
        %v2962 = vmul.f32 %v2961, 0.6931472
        %v2963 = vsub.f32 %v2956, %v2962
        %2964 = vst [vmem:[%s667] sm:$0xff] %v2963
        %p2965 = scmp.lt.s32.totalorder %s32, 1
        %s2966 = scalar_select %p2965, %s32, 1
        %s2967 = smul.addr %s2966, 8
        %s2968 = scalar_lea.vmem %s20, %s2967
        // Predicated region
        $region105: #{transformer_forward.1} parent=99 // pred_check
          %p2969 = pneg %p485
        $region106: #{transformer_forward.1} parent=99 // pred_check_branch
          %2971 = sbr.rel (%p2969) target = $region108
        $region107: #{transformer_forward.1} parent=99 // pred_region
          _
        $region108: #{transformer_forward.1} parent=99 // pred_fallthru
          _
      $region100: #{transformer_forward.1} parent=5 // pred_fallthru
        _
      %p2972 = scmp.le.s32.totalorder 2, %s27
      // Predicated region
      $region109: #{transformer_forward.1} parent=5 // pred_check
        %p2973 = pneg %p2972
      $region110: #{transformer_forward.1} parent=5 // pred_check_branch
        %2975 = sbr.rel (%p2973) target = $region112
      $region111: #{transformer_forward.1} parent=5 // pred_region
        %s2976 = ssub.s32 %s27, 2
        // Predicated region
        $region113: #{transformer_forward.1} parent=111 // pred_check
          %p2977 = pneg %p491
        $region114: #{transformer_forward.1} parent=111 // pred_check_branch
          %2979 = sbr.rel (%p2977) target = $region116
        $region115: #{transformer_forward.1} parent=111 // pred_region
          %p2980 = scmp.lt.s32.totalorder %s33, 1
          %s2981 = scalar_select %p2980, %s33, 1
          %s2982 = smul.addr %s2981, 8
          %s2983 = scalar_lea.vmem %s20, %s2982
        $region116: #{transformer_forward.1} parent=111 // pred_fallthru
          _
      $region112: #{transformer_forward.1} parent=5 // pred_fallthru
        _
    $region6: #{transformer_forward.1} parent=1 // loop_footer
      %s31 = sadd.s32 1, %s27
    $region7: #{transformer_forward.1} parent=1 // loop_footer_branch
      %26 = sbr.rel target = $region3
    $region8: #{transformer_forward.1} parent=1 // loop_exit
      _
    %2984 = vsyncpa [#allocation3], 1
    %s2985 = scalar_lea.sflag [#allocation3], 1
    %2986 = vsyncpa %s2985, 1

</llo_original>
